<compile_context>
chip_gen: v7x
topology: tpu7x:2x2x1
jax: 0.10.0
libtpu: 0.0.40
codegen_flags: <defaults>
</compile_context>

<pallas_src>
import functools

import jax
import jax.numpy as jnp
from jax.experimental import pallas as pl
from jax.experimental.pallas import tpu as pltpu

LN_EPS = 1e-5     # torch.nn.LayerNorm default
LANE = 128        # TPU lane width
OUT_PAD = 128     # lane-dense padded head width (true output dim is 2)
BATCH_GRAIN = 16  # batch-tile granularity (sublane-clean for f32 and bf16)


def _round_up(x, m):
    return ((x + m - 1) // m) * m


def _pad2d(a, rows, cols, dtype):
    a = jnp.asarray(a, jnp.float32)
    r, c = a.shape
    if (r, c) != (rows, cols):
        a = jnp.pad(a, ((0, rows - r), (0, cols - c)))
    return a.astype(dtype)


def _regressor_kernel(n_layers, true_hidden_sizes, *refs):
    """refs = (x_ref, [w_l, gamma_l, beta_l] * n_layers, w_head, b_head, o_ref)."""
    x_ref = refs[0]
    o_ref = refs[-1]
    layer_refs = refs[1:1 + 3 * n_layers]
    wh_ref = refs[1 + 3 * n_layers]
    bh_ref = refs[2 + 3 * n_layers]

    compute_dtype = x_ref.dtype

    # Dropout with p=0 (module default) is the identity at inference.
    # TODO(synk): non-zero dropout (training mode) not implemented in-kernel.
    h = x_ref[...]

    for l in range(n_layers):
        w_ref = layer_refs[3 * l + 0]
        g_ref = layer_refs[3 * l + 1]
        b_ref = layer_refs[3 * l + 2]
        inv_n = 1.0 / float(true_hidden_sizes[l])

        # Linear (bias=False because use_ln=True). Padded weight columns are
        # zero, so padded output lanes are exactly 0.0 in the f32 accumulator.
        y = jnp.dot(h, w_ref[...], preferred_element_type=jnp.float32)

        # LayerNorm stats over the TRUE hidden width, one fused f32 pass.
        # Padded lanes are 0 so they don't perturb either sum. The one-pass
        # variance E[y^2] - mean^2 can cancel slightly negative in f32: clamp.
        s1 = jnp.sum(y, axis=-1, keepdims=True)
        s2 = jnp.sum(y * y, axis=-1, keepdims=True)
        mean = s1 * inv_n
        var = jnp.maximum(s2 * inv_n - mean * mean, 0.0)
        # NOTE: zero-padded batch rows go through rsqrt(0 + eps) and produce
        # large *finite* garbage; those rows are sliced off in the wrapper.
        y = (y - mean) * jax.lax.rsqrt(var + LN_EPS)

        # Affine + ReLU in the compute dtype (bf16 on v6e/v7x halves the VPU
        # passes; pass compute_dtype=f32 on v5e). gamma/beta are zero on the
        # padded lanes, which re-zeros them before the next matmul.
        y = y.astype(compute_dtype) * g_ref[...] + b_ref[...]
        h = jnp.maximum(y, 0.0).astype(compute_dtype)

    # Head: Linear(hidden, 2, bias=True) + ReLU, lane-dense padded to 128
    # columns (extra columns are exactly zero; wrapper slices [:, :2]).
    out = jnp.dot(h, wh_ref[...], preferred_element_type=jnp.float32) + bh_ref[...]
    o_ref[...] = jnp.maximum(out, 0.0).astype(o_ref.dtype)


def _choose_batch_tiling(batch, requested):
    """Pick (block_batch, padded_batch) with >=2 balanced tiles when possible."""
    bg = _round_up(max(batch, 1), BATCH_GRAIN)
    bb = max(BATCH_GRAIN, min(_round_up(requested, BATCH_GRAIN), bg))
    if bg > BATCH_GRAIN and bg <= bb:
        # Split into two tiles so both v7x TensorCores get work (free on
        # v5e/v6e where the grid is just a sequential loop).
        bb = _round_up((bg + 1) // 2, BATCH_GRAIN)
    n_steps = -(-bg // bb)
    bb = _round_up(-(-bg // n_steps), BATCH_GRAIN)   # balance tiles, limit padding
    bp = _round_up(bg, bb)
    return bb, bp


def _vmem_hard_cap_bytes():
    try:
        cap = int(pltpu.get_tpu_info().vmem_capacity_bytes)
    except Exception:
        cap = 64 << 20  # conservative: assume the smaller (v7x-style) VMEM
    if cap >= (128 << 20):                     # v5e / v6e: 128 MiB physical
        return 100 << 20
    return max(min(48 << 20, cap - (16 << 20)), 16 << 20)   # 64 MiB parts


def make_regressor_forward(layer_params, head_w, head_b, *,
                           block_batch=512, compute_dtype=jnp.bfloat16):
    """Pads/casts all parameters ONCE and returns a jitted forward(x).

    layer_params: list of (w [in, hidden], gamma [hidden], beta [hidden]).
    head_w: [hidden, 2]; head_b: [2] (or [1, 2]).
    forward(x): x [B, F] float32 -> [B, 2] float32.
    """
    n_layers = len(layer_params)
    feat = layer_params[0][0].shape[0]
    hidden_sizes = [w.shape[1] for (w, _, _) in layer_params]
    hp_list = [_round_up(h, LANE) for h in hidden_sizes]
    in_dims_p = [feat] + hp_list[:-1]          # x feature axis stays UNPADDED

    # ---- parameter padding / casting happens exactly once, here -----------
    padded_params = []
    for l, (w, g, b) in enumerate(layer_params):
        hp = hp_list[l]
        w_p = _pad2d(w, in_dims_p[l], hp, compute_dtype)
        g_p = _pad2d(jnp.asarray(g, jnp.float32).reshape(1, -1), 1, hp, compute_dtype)
        b_p = _pad2d(jnp.asarray(b, jnp.float32).reshape(1, -1), 1, hp, compute_dtype)
        padded_params += [w_p, g_p, b_p]
    head_w_p = _pad2d(head_w, hp_list[-1], OUT_PAD, compute_dtype)
    head_b_p = _pad2d(jnp.asarray(head_b, jnp.float32).reshape(1, -1), 1, OUT_PAD,
                      jnp.float32)            # bias adds into the f32 accumulator
    padded_params += [head_w_p, head_b_p]
    param_bytes = sum(int(p.size) * p.dtype.itemsize for p in padded_params)

    kernel = functools.partial(_regressor_kernel, n_layers, tuple(hidden_sizes))
    hard_cap = _vmem_hard_cap_bytes()
    # TODO(synk): if resident parameter bytes ever approach the scoped budget
    # (~12-16 MiB on v7x, ~40-48 MiB on v5e/v6e), switch to a K/N-tiled inner
    # reduction (fori_loop over hidden chunks + VMEM accumulator) instead of
    # keeping whole weights resident.

    def _build(param_pipeline_mode):
        def fwd(x):
            batch, f = x.shape
            assert f == feat, "feature size mismatch"
            bb, bp = _choose_batch_tiling(batch, block_batch)
            grid = (bp // bb,)

            x_p = x.astype(compute_dtype)
            if bp != batch:
                x_p = jnp.pad(x_p, ((0, bp - batch), (0, 0)))

            def param_spec(shape):
                return pl.BlockSpec(shape, lambda i: (0, 0),
                                    pipeline_mode=param_pipeline_mode)

            in_specs = [pl.BlockSpec((bb, feat), lambda i: (i, 0))]
            in_specs += [param_spec(p.shape) for p in padded_params]
            out_specs = pl.BlockSpec((bb, OUT_PAD), lambda i: (i, 0))

            # scoped-VMEM budget: double-buffered x/out tiles, resident params
            # (single or double buffered), f32 activation working set, headroom.
            itemsize = jnp.dtype(compute_dtype).itemsize
            pbufs = 1 if param_pipeline_mode is not None else 2
            vmem_est = 2 * bb * feat * itemsize
            vmem_est += 2 * bb * OUT_PAD * itemsize
            vmem_est += pbufs * param_bytes
            vmem_est += 4 * bb * max(hp_list) * 4
            vmem_limit = int(min(max(vmem_est + (4 << 20), 32 << 20), hard_cap))

            out_padded = pl.pallas_call(
                kernel,
                out_shape=jax.ShapeDtypeStruct((bp, OUT_PAD), compute_dtype),
                grid_spec=pltpu.PrefetchScalarGridSpec(
                    num_scalar_prefetch=0,
                    grid=grid,
                    in_specs=in_specs,
                    out_specs=out_specs,
                ),
                compiler_params=pltpu.CompilerParams(
                    dimension_semantics=("parallel",),
                    vmem_limit_bytes=vmem_limit,
                ),
            )(x_p, *padded_params)

            # Strip batch / lane padding (layout plumbing) and emit f32.
            return out_padded[:batch, :2].astype(jnp.float32)

        return jax.jit(fwd)

    fwd_single_buf = _build(pl.Buffered(1))   # grid-invariant params: 1 buffer
    fwd_default = _build(None)
    chosen = {}

    def forward(x):
        fn = chosen.get("fn")
        if fn is None:
            try:
                out = fwd_single_buf(x)
                jax.block_until_ready(out)
                chosen["fn"] = fwd_single_buf
                return out
            except Exception:
                # pipeline_mode not supported by this JAX build; default specs.
                chosen["fn"] = fwd_default
            fn = chosen["fn"]
        return fn(x)

    return forward


def _reference_forward(x, layer_params, head_w, head_b):
    h = x.astype(jnp.float32)
    for (w, g, b) in layer_params:
        h = h @ w
        mean = jnp.mean(h, axis=-1, keepdims=True)
        var = jnp.mean((h - mean) ** 2, axis=-1, keepdims=True)
        h = (h - mean) * jax.lax.rsqrt(var + LN_EPS)
        h = h * jnp.asarray(g, jnp.float32).reshape(1, -1) \
            + jnp.asarray(b, jnp.float32).reshape(1, -1)
        h = jnp.maximum(h, 0.0)
    out = h @ head_w + jnp.asarray(head_b, jnp.float32).reshape(1, -1)
    return jnp.maximum(out, 0.0)


if __name__ == "__main__":
    # Config consistent with Regressor(features_size=32, n_layers=2) with
    # defaults dropout=0, use_ln=True, use_bias=True, hidden_size=None.
    # batch=256 exercises the even-grid split (two 128-row tiles -> both v7x TCs).
    batch = 256
    features_size = 32
    hidden_size = features_size
    n_layers = 2

    key = jax.random.PRNGKey(0)
    k_x, k_w, k_g, k_b, k_hw, k_hb = jax.random.split(key, 6)

    x = jax.random.normal(k_x, (batch, features_size), dtype=jnp.float32)

    # Layer params: Linear(in, H, bias=False) + LayerNorm(H).
    layer_params = []
    in_f = features_size
    for l in range(n_layers):
        kw, kg, kb = jax.random.split(jax.random.fold_in(k_w, l), 3)
        bound = 1.0 / (in_f ** 0.5)
        w = jax.random.uniform(kw, (in_f, hidden_size), jnp.float32, -bound, bound)
        # LayerNorm default init gamma=1, beta=0; perturb slightly so the
        # affine path is exercised (deterministic).
        gamma = jnp.ones((hidden_size,), jnp.float32) + \
            0.01 * jax.random.normal(kg, (hidden_size,), jnp.float32)
        beta = 0.01 * jax.random.normal(kb, (hidden_size,), jnp.float32)
        layer_params.append((w, gamma, beta))
        in_f = hidden_size

    bound = 1.0 / (hidden_size ** 0.5)
    head_w = jax.random.uniform(k_hw, (hidden_size, 2), jnp.float32, -bound, bound)
    head_b = jax.random.uniform(k_hb, (2,), jnp.float32, -bound, bound)

    ref = _reference_forward(x, layer_params, head_w, head_b)

    # Strict-precision path (f32 operands everywhere) -> tight tolerance.
    fwd_f32 = make_regressor_forward(layer_params, head_w, head_b,
                                     block_batch=512, compute_dtype=jnp.float32)
    out_f32 = jax.block_until_ready(fwd_f32(x))
    assert out_f32.shape == (batch, 2)
    assert jnp.allclose(out_f32, ref, atol=2e-5, rtol=2e-5), "f32 mismatch vs reference"

    # Fast path (bf16 operands / LN affine, f32 MXU accumulation & LN stats).
    fwd_bf16 = make_regressor_forward(layer_params, head_w, head_b,
                                      block_batch=512, compute_dtype=jnp.bfloat16)
    out_bf16 = jax.block_until_ready(fwd_bf16(x))
    assert out_bf16.shape == (batch, 2)
    assert jnp.allclose(out_bf16, ref, atol=3e-2, rtol=3e-2), "bf16 mismatch vs reference"

    print("KERNEL_OK")
</pallas_src>

<mosaic_0001>
module attributes {stable_mosaic.version = 11 : i64} {
  func.func @_regressor_kernel(%arg0: i32, %arg1: memref<128x32xf32, #tpu.memory_space<vmem>>, %arg2: memref<32x128xf32, #tpu.memory_space<vmem>>, %arg3: memref<1x128xf32, #tpu.memory_space<vmem>>, %arg4: memref<1x128xf32, #tpu.memory_space<vmem>>, %arg5: memref<128x128xf32, #tpu.memory_space<vmem>>, %arg6: memref<1x128xf32, #tpu.memory_space<vmem>>, %arg7: memref<1x128xf32, #tpu.memory_space<vmem>>, %arg8: memref<128x128xf32, #tpu.memory_space<vmem>>, %arg9: memref<1x128xf32, #tpu.memory_space<vmem>>, %arg10: memref<128x128xf32, #tpu.memory_space<vmem>>) attributes {dimension_semantics = [#tpu.dimension_semantics<parallel>], iteration_bounds = array<i64: 2>, scalar_prefetch = 0 : i64, scratch_operands = 0 : i64, tpu.core_type = #tpu.core_type<tc>, window_params = [{transform_indices = @transform_0, window_bounds = array<i64: 128, 32>}, {pipeline_mode = #tpu.pipeline_mode<synchronous>, transform_indices = @transform_1, window_bounds = array<i64: 32, 128>}, {pipeline_mode = #tpu.pipeline_mode<synchronous>, transform_indices = @transform_2, window_bounds = array<i64: 1, 128>}, {pipeline_mode = #tpu.pipeline_mode<synchronous>, transform_indices = @transform_3, window_bounds = array<i64: 1, 128>}, {pipeline_mode = #tpu.pipeline_mode<synchronous>, transform_indices = @transform_4, window_bounds = array<i64: 128, 128>}, {pipeline_mode = #tpu.pipeline_mode<synchronous>, transform_indices = @transform_5, window_bounds = array<i64: 1, 128>}, {pipeline_mode = #tpu.pipeline_mode<synchronous>, transform_indices = @transform_6, window_bounds = array<i64: 1, 128>}, {pipeline_mode = #tpu.pipeline_mode<synchronous>, transform_indices = @transform_7, window_bounds = array<i64: 128, 128>}, {pipeline_mode = #tpu.pipeline_mode<synchronous>, transform_indices = @transform_8, window_bounds = array<i64: 1, 128>}, {transform_indices = @transform_9, window_bounds = array<i64: 128, 128>}]} {
    %c0 = arith.constant 0 : index
    %c0_0 = arith.constant 0 : index
    %0 = vector.load %arg1[%c0, %c0_0] : memref<128x32xf32, #tpu.memory_space<vmem>>, vector<128x32xf32>
    %c0_1 = arith.constant 0 : index
    %c0_2 = arith.constant 0 : index
    %1 = vector.load %arg2[%c0_1, %c0_2] : memref<32x128xf32, #tpu.memory_space<vmem>>, vector<32x128xf32>
    %cst = arith.constant dense<0.000000e+00> : vector<128x128xf32>
    %2 = tpu.matmul %0, %1, %cst {dimension_numbers = #tpu.dot_dimension_numbers<[1], [0], [0], [1], [0, 0, 1, 1], [], []>} : vector<128x32xf32>, vector<32x128xf32>, vector<128x128xf32> -> vector<128x128xf32>
    %cst_3 = arith.constant dense<0.000000e+00> : vector<128xf32>
    %3 = vector.multi_reduction <add>, %2, %cst_3 [1] : vector<128x128xf32> to vector<128xf32>
    %4 = vector.shape_cast %3 : vector<128xf32> to vector<128x1xf32>
    %5 = arith.mulf %2, %2 : vector<128x128xf32>
    %cst_4 = arith.constant dense<0.000000e+00> : vector<128xf32>
    %6 = vector.multi_reduction <add>, %5, %cst_4 [1] : vector<128x128xf32> to vector<128xf32>
    %7 = vector.shape_cast %6 : vector<128xf32> to vector<128x1xf32>
    %cst_5 = arith.constant 3.125000e-02 : f32
    %8 = vector.broadcast %cst_5 : f32 to vector<128x1xf32>
    %9 = arith.mulf %4, %8 : vector<128x1xf32>
    %cst_6 = arith.constant 3.125000e-02 : f32
    %10 = vector.broadcast %cst_6 : f32 to vector<128x1xf32>
    %11 = arith.mulf %7, %10 : vector<128x1xf32>
    %12 = arith.mulf %9, %9 : vector<128x1xf32>
    %13 = arith.subf %11, %12 : vector<128x1xf32>
    %cst_7 = arith.constant 0.000000e+00 : f32
    %14 = vector.broadcast %cst_7 : f32 to vector<128x1xf32>
    %15 = arith.maximumf %13, %14 : vector<128x1xf32>
    %16 = vector.broadcast %9 : vector<128x1xf32> to vector<128x128xf32>
    %17 = arith.subf %2, %16 : vector<128x128xf32>
    %cst_8 = arith.constant 9.99999974E-6 : f32
    %18 = vector.broadcast %cst_8 : f32 to vector<128x1xf32>
    %19 = arith.addf %15, %18 : vector<128x1xf32>
    %20 = math.rsqrt %19 : vector<128x1xf32>
    %21 = vector.broadcast %20 : vector<128x1xf32> to vector<128x128xf32>
    %22 = arith.mulf %17, %21 : vector<128x128xf32>
    %c0_9 = arith.constant 0 : index
    %c0_10 = arith.constant 0 : index
    %23 = vector.load %arg3[%c0_9, %c0_10] : memref<1x128xf32, #tpu.memory_space<vmem>>, vector<1x128xf32>
    %24 = vector.broadcast %23 : vector<1x128xf32> to vector<128x128xf32>
    %25 = arith.mulf %22, %24 : vector<128x128xf32>
    %c0_11 = arith.constant 0 : index
    %c0_12 = arith.constant 0 : index
    %26 = vector.load %arg4[%c0_11, %c0_12] : memref<1x128xf32, #tpu.memory_space<vmem>>, vector<1x128xf32>
    %27 = vector.broadcast %26 : vector<1x128xf32> to vector<128x128xf32>
    %28 = arith.addf %25, %27 : vector<128x128xf32>
    %cst_13 = arith.constant 0.000000e+00 : f32
    %29 = vector.broadcast %cst_13 : f32 to vector<128x128xf32>
    %30 = arith.maximumf %28, %29 : vector<128x128xf32>
    %c0_14 = arith.constant 0 : index
    %c0_15 = arith.constant 0 : index
    %31 = vector.load %arg5[%c0_14, %c0_15] : memref<128x128xf32, #tpu.memory_space<vmem>>, vector<128x128xf32>
    %cst_16 = arith.constant dense<0.000000e+00> : vector<128x128xf32>
    %32 = tpu.matmul %30, %31, %cst_16 {dimension_numbers = #tpu.dot_dimension_numbers<[1], [0], [0], [1], [0, 0, 1, 1], [], []>} : vector<128x128xf32>, vector<128x128xf32>, vector<128x128xf32> -> vector<128x128xf32>
    %cst_17 = arith.constant dense<0.000000e+00> : vector<128xf32>
    %33 = vector.multi_reduction <add>, %32, %cst_17 [1] : vector<128x128xf32> to vector<128xf32>
    %34 = vector.shape_cast %33 : vector<128xf32> to vector<128x1xf32>
    %35 = arith.mulf %32, %32 : vector<128x128xf32>
    %cst_18 = arith.constant dense<0.000000e+00> : vector<128xf32>
    %36 = vector.multi_reduction <add>, %35, %cst_18 [1] : vector<128x128xf32> to vector<128xf32>
    %37 = vector.shape_cast %36 : vector<128xf32> to vector<128x1xf32>
    %cst_19 = arith.constant 3.125000e-02 : f32
    %38 = vector.broadcast %cst_19 : f32 to vector<128x1xf32>
    %39 = arith.mulf %34, %38 : vector<128x1xf32>
    %cst_20 = arith.constant 3.125000e-02 : f32
    %40 = vector.broadcast %cst_20 : f32 to vector<128x1xf32>
    %41 = arith.mulf %37, %40 : vector<128x1xf32>
    %42 = arith.mulf %39, %39 : vector<128x1xf32>
    %43 = arith.subf %41, %42 : vector<128x1xf32>
    %cst_21 = arith.constant 0.000000e+00 : f32
    %44 = vector.broadcast %cst_21 : f32 to vector<128x1xf32>
    %45 = arith.maximumf %43, %44 : vector<128x1xf32>
    %46 = vector.broadcast %39 : vector<128x1xf32> to vector<128x128xf32>
    %47 = arith.subf %32, %46 : vector<128x128xf32>
    %cst_22 = arith.constant 9.99999974E-6 : f32
    %48 = vector.broadcast %cst_22 : f32 to vector<128x1xf32>
    %49 = arith.addf %45, %48 : vector<128x1xf32>
    %50 = math.rsqrt %49 : vector<128x1xf32>
    %51 = vector.broadcast %50 : vector<128x1xf32> to vector<128x128xf32>
    %52 = arith.mulf %47, %51 : vector<128x128xf32>
    %c0_23 = arith.constant 0 : index
    %c0_24 = arith.constant 0 : index
    %53 = vector.load %arg6[%c0_23, %c0_24] : memref<1x128xf32, #tpu.memory_space<vmem>>, vector<1x128xf32>
    %54 = vector.broadcast %53 : vector<1x128xf32> to vector<128x128xf32>
    %55 = arith.mulf %52, %54 : vector<128x128xf32>
    %c0_25 = arith.constant 0 : index
    %c0_26 = arith.constant 0 : index
    %56 = vector.load %arg7[%c0_25, %c0_26] : memref<1x128xf32, #tpu.memory_space<vmem>>, vector<1x128xf32>
    %57 = vector.broadcast %56 : vector<1x128xf32> to vector<128x128xf32>
    %58 = arith.addf %55, %57 : vector<128x128xf32>
    %cst_27 = arith.constant 0.000000e+00 : f32
    %59 = vector.broadcast %cst_27 : f32 to vector<128x128xf32>
    %60 = arith.maximumf %58, %59 : vector<128x128xf32>
    %c0_28 = arith.constant 0 : index
    %c0_29 = arith.constant 0 : index
    %61 = vector.load %arg8[%c0_28, %c0_29] : memref<128x128xf32, #tpu.memory_space<vmem>>, vector<128x128xf32>
    %cst_30 = arith.constant dense<0.000000e+00> : vector<128x128xf32>
    %62 = tpu.matmul %60, %61, %cst_30 {dimension_numbers = #tpu.dot_dimension_numbers<[1], [0], [0], [1], [0, 0, 1, 1], [], []>} : vector<128x128xf32>, vector<128x128xf32>, vector<128x128xf32> -> vector<128x128xf32>
    %c0_31 = arith.constant 0 : index
    %c0_32 = arith.constant 0 : index
    %63 = vector.load %arg9[%c0_31, %c0_32] : memref<1x128xf32, #tpu.memory_space<vmem>>, vector<1x128xf32>
    %64 = vector.broadcast %63 : vector<1x128xf32> to vector<128x128xf32>
    %65 = arith.addf %62, %64 : vector<128x128xf32>
    %cst_33 = arith.constant 0.000000e+00 : f32
    %66 = vector.broadcast %cst_33 : f32 to vector<128x128xf32>
    %67 = arith.maximumf %65, %66 : vector<128x128xf32>
    %c0_34 = arith.constant 0 : index
    %c0_35 = arith.constant 0 : index
    %68 = vector.load %arg10[%c0_34, %c0_35] : memref<128x128xf32, #tpu.memory_space<vmem>>, vector<128x128xf32>
    tpu.vector_store %arg10[%c0_34, %c0_35], %67 {strides = array<i32>} : memref<128x128xf32, #tpu.memory_space<vmem>>, vector<128x128xf32>,
    return
  }
  func.func @transform_0(%arg0: i32) -> (i32, i32) {
    %c0_i32 = arith.constant 0 : i32
    %c0_i32_0 = arith.constant 0 : i32
    return %arg0, %c0_i32 : i32, i32
  }
  func.func @transform_1(%arg0: i32) -> (i32, i32) {
    %c0_i32 = arith.constant 0 : i32
    %c0_i32_0 = arith.constant 0 : i32
    %c0_i32_1 = arith.constant 0 : i32
    return %c0_i32, %c0_i32_0 : i32, i32
  }
  func.func @transform_2(%arg0: i32) -> (i32, i32) {
    %c0_i32 = arith.constant 0 : i32
    %c0_i32_0 = arith.constant 0 : i32
    %c0_i32_1 = arith.constant 0 : i32
    return %c0_i32, %c0_i32_0 : i32, i32
  }
  func.func @transform_3(%arg0: i32) -> (i32, i32) {
    %c0_i32 = arith.constant 0 : i32
    %c0_i32_0 = arith.constant 0 : i32
    %c0_i32_1 = arith.constant 0 : i32
    return %c0_i32, %c0_i32_0 : i32, i32
  }
  func.func @transform_4(%arg0: i32) -> (i32, i32) {
    %c0_i32 = arith.constant 0 : i32
    %c0_i32_0 = arith.constant 0 : i32
    %c0_i32_1 = arith.constant 0 : i32
    return %c0_i32, %c0_i32_0 : i32, i32
  }
  func.func @transform_5(%arg0: i32) -> (i32, i32) {
    %c0_i32 = arith.constant 0 : i32
    %c0_i32_0 = arith.constant 0 : i32
    %c0_i32_1 = arith.constant 0 : i32
    return %c0_i32, %c0_i32_0 : i32, i32
  }
  func.func @transform_6(%arg0: i32) -> (i32, i32) {
    %c0_i32 = arith.constant 0 : i32
    %c0_i32_0 = arith.constant 0 : i32
    %c0_i32_1 = arith.constant 0 : i32
    return %c0_i32, %c0_i32_0 : i32, i32
  }
  func.func @transform_7(%arg0: i32) -> (i32, i32) {
    %c0_i32 = arith.constant 0 : i32
    %c0_i32_0 = arith.constant 0 : i32
    %c0_i32_1 = arith.constant 0 : i32
    return %c0_i32, %c0_i32_0 : i32, i32
  }
  func.func @transform_8(%arg0: i32) -> (i32, i32) {
    %c0_i32 = arith.constant 0 : i32
    %c0_i32_0 = arith.constant 0 : i32
    %c0_i32_1 = arith.constant 0 : i32
    return %c0_i32, %c0_i32_0 : i32, i32
  }
  func.func @transform_9(%arg0: i32) -> (i32, i32) {
    %c0_i32 = arith.constant 0 : i32
    %c0_i32_0 = arith.constant 0 : i32
    return %arg0, %c0_i32 : i32, i32
  }
}

module attributes {stable_mosaic.version = 11 : i64} {
  func.func @_regressor_kernel(%arg0: i32, %arg1: memref<128x32xf32, #tpu.memory_space<vmem>>, %arg2: memref<32x128xf32, #tpu.memory_space<vmem>>, %arg3: memref<1x128xf32, #tpu.memory_space<vmem>>, %arg4: memref<1x128xf32, #tpu.memory_space<vmem>>, %arg5: memref<128x128xf32, #tpu.memory_space<vmem>>, %arg6: memref<1x128xf32, #tpu.memory_space<vmem>>, %arg7: memref<1x128xf32, #tpu.memory_space<vmem>>, %arg8: memref<128x128xf32, #tpu.memory_space<vmem>>, %arg9: memref<1x128xf32, #tpu.memory_space<vmem>>, %arg10: memref<128x128xf32, #tpu.memory_space<vmem>>) attributes {dimension_semantics = [#tpu.dimension_semantics<parallel>], iteration_bounds = array<i64: 2>, scalar_prefetch = 0 : i64, scratch_operands = 0 : i64, tpu.core_type = #tpu.core_type<tc>, window_params = [{transform_indices = @transform_0, window_bounds = array<i64: 128, 32>}, {pipeline_mode = #tpu.pipeline_mode<synchronous>, transform_indices = @transform_1, window_bounds = array<i64: 32, 128>}, {pipeline_mode = #tpu.pipeline_mode<synchronous>, transform_indices = @transform_2, window_bounds = array<i64: 1, 128>}, {pipeline_mode = #tpu.pipeline_mode<synchronous>, transform_indices = @transform_3, window_bounds = array<i64: 1, 128>}, {pipeline_mode = #tpu.pipeline_mode<synchronous>, transform_indices = @transform_4, window_bounds = array<i64: 128, 128>}, {pipeline_mode = #tpu.pipeline_mode<synchronous>, transform_indices = @transform_5, window_bounds = array<i64: 1, 128>}, {pipeline_mode = #tpu.pipeline_mode<synchronous>, transform_indices = @transform_6, window_bounds = array<i64: 1, 128>}, {pipeline_mode = #tpu.pipeline_mode<synchronous>, transform_indices = @transform_7, window_bounds = array<i64: 128, 128>}, {pipeline_mode = #tpu.pipeline_mode<synchronous>, transform_indices = @transform_8, window_bounds = array<i64: 1, 128>}, {transform_indices = @transform_9, window_bounds = array<i64: 128, 128>}]} {
    %c0 = arith.constant 0 : index
    %c0_0 = arith.constant 0 : index
    %0 = vector.load %arg1[%c0, %c0_0] : memref<128x32xf32, #tpu.memory_space<vmem>>, vector<128x32xf32>
    %c0_1 = arith.constant 0 : index
    %c0_2 = arith.constant 0 : index
    %1 = vector.load %arg2[%c0_1, %c0_2] : memref<32x128xf32, #tpu.memory_space<vmem>>, vector<32x128xf32>
    %cst = arith.constant dense<0.000000e+00> : vector<128x128xf32>
    %2 = tpu.matmul %0, %1, %cst {dimension_numbers = #tpu.dot_dimension_numbers<[1], [0], [0], [1], [0, 0, 1, 1], [], []>} : vector<128x32xf32>, vector<32x128xf32>, vector<128x128xf32> -> vector<128x128xf32>
    %cst_3 = arith.constant dense<0.000000e+00> : vector<128xf32>
    %3 = vector.multi_reduction <add>, %2, %cst_3 [1] : vector<128x128xf32> to vector<128xf32>
    %4 = vector.shape_cast %3 : vector<128xf32> to vector<128x1xf32>
    %5 = arith.mulf %2, %2 : vector<128x128xf32>
    %cst_4 = arith.constant dense<0.000000e+00> : vector<128xf32>
    %6 = vector.multi_reduction <add>, %5, %cst_4 [1] : vector<128x128xf32> to vector<128xf32>
    %7 = vector.shape_cast %6 : vector<128xf32> to vector<128x1xf32>
    %cst_5 = arith.constant 3.125000e-02 : f32
    %8 = vector.broadcast %cst_5 : f32 to vector<128x1xf32>
    %9 = arith.mulf %4, %8 : vector<128x1xf32>
    %cst_6 = arith.constant 3.125000e-02 : f32
    %10 = vector.broadcast %cst_6 : f32 to vector<128x1xf32>
    %11 = arith.mulf %7, %10 : vector<128x1xf32>
    %12 = arith.mulf %9, %9 : vector<128x1xf32>
    %13 = arith.subf %11, %12 : vector<128x1xf32>
    %cst_7 = arith.constant 0.000000e+00 : f32
    %14 = vector.broadcast %cst_7 : f32 to vector<128x1xf32>
    %15 = arith.maximumf %13, %14 : vector<128x1xf32>
    %16 = vector.broadcast %9 : vector<128x1xf32> to vector<128x128xf32>
    %17 = arith.subf %2, %16 : vector<128x128xf32>
    %cst_8 = arith.constant 9.99999974E-6 : f32
    %18 = vector.broadcast %cst_8 : f32 to vector<128x1xf32>
    %19 = arith.addf %15, %18 : vector<128x1xf32>
    %20 = math.rsqrt %19 : vector<128x1xf32>
    %21 = vector.broadcast %20 : vector<128x1xf32> to vector<128x128xf32>
    %22 = arith.mulf %17, %21 : vector<128x128xf32>
    %c0_9 = arith.constant 0 : index
    %c0_10 = arith.constant 0 : index
    %23 = vector.load %arg3[%c0_9, %c0_10] : memref<1x128xf32, #tpu.memory_space<vmem>>, vector<1x128xf32>
    %24 = vector.broadcast %23 : vector<1x128xf32> to vector<128x128xf32>
    %25 = arith.mulf %22, %24 : vector<128x128xf32>
    %c0_11 = arith.constant 0 : index
    %c0_12 = arith.constant 0 : index
    %26 = vector.load %arg4[%c0_11, %c0_12] : memref<1x128xf32, #tpu.memory_space<vmem>>, vector<1x128xf32>
    %27 = vector.broadcast %26 : vector<1x128xf32> to vector<128x128xf32>
    %28 = arith.addf %25, %27 : vector<128x128xf32>
    %cst_13 = arith.constant 0.000000e+00 : f32
    %29 = vector.broadcast %cst_13 : f32 to vector<128x128xf32>
    %30 = arith.maximumf %28, %29 : vector<128x128xf32>
    %c0_14 = arith.constant 0 : index
    %c0_15 = arith.constant 0 : index
    %31 = vector.load %arg5[%c0_14, %c0_15] : memref<128x128xf32, #tpu.memory_space<vmem>>, vector<128x128xf32>
    %cst_16 = arith.constant dense<0.000000e+00> : vector<128x128xf32>
    %32 = tpu.matmul %30, %31, %cst_16 {dimension_numbers = #tpu.dot_dimension_numbers<[1], [0], [0], [1], [0, 0, 1, 1], [], []>} : vector<128x128xf32>, vector<128x128xf32>, vector<128x128xf32> -> vector<128x128xf32>
    %cst_17 = arith.constant dense<0.000000e+00> : vector<128xf32>
    %33 = vector.multi_reduction <add>, %32, %cst_17 [1] : vector<128x128xf32> to vector<128xf32>
    %34 = vector.shape_cast %33 : vector<128xf32> to vector<128x1xf32>
    %35 = arith.mulf %32, %32 : vector<128x128xf32>
    %cst_18 = arith.constant dense<0.000000e+00> : vector<128xf32>
    %36 = vector.multi_reduction <add>, %35, %cst_18 [1] : vector<128x128xf32> to vector<128xf32>
    %37 = vector.shape_cast %36 : vector<128xf32> to vector<128x1xf32>
    %cst_19 = arith.constant 3.125000e-02 : f32
    %38 = vector.broadcast %cst_19 : f32 to vector<128x1xf32>
    %39 = arith.mulf %34, %38 : vector<128x1xf32>
    %cst_20 = arith.constant 3.125000e-02 : f32
    %40 = vector.broadcast %cst_20 : f32 to vector<128x1xf32>
    %41 = arith.mulf %37, %40 : vector<128x1xf32>
    %42 = arith.mulf %39, %39 : vector<128x1xf32>
    %43 = arith.subf %41, %42 : vector<128x1xf32>
    %cst_21 = arith.constant 0.000000e+00 : f32
    %44 = vector.broadcast %cst_21 : f32 to vector<128x1xf32>
    %45 = arith.maximumf %43, %44 : vector<128x1xf32>
    %46 = vector.broadcast %39 : vector<128x1xf32> to vector<128x128xf32>
    %47 = arith.subf %32, %46 : vector<128x128xf32>
    %cst_22 = arith.constant 9.99999974E-6 : f32
    %48 = vector.broadcast %cst_22 : f32 to vector<128x1xf32>
    %49 = arith.addf %45, %48 : vector<128x1xf32>
    %50 = math.rsqrt %49 : vector<128x1xf32>
    %51 = vector.broadcast %50 : vector<128x1xf32> to vector<128x128xf32>
    %52 = arith.mulf %47, %51 : vector<128x128xf32>
    %c0_23 = arith.constant 0 : index
    %c0_24 = arith.constant 0 : index
    %53 = vector.load %arg6[%c0_23, %c0_24] : memref<1x128xf32, #tpu.memory_space<vmem>>, vector<1x128xf32>
    %54 = vector.broadcast %53 : vector<1x128xf32> to vector<128x128xf32>
    %55 = arith.mulf %52, %54 : vector<128x128xf32>
    %c0_25 = arith.constant 0 : index
    %c0_26 = arith.constant 0 : index
    %56 = vector.load %arg7[%c0_25, %c0_26] : memref<1x128xf32, #tpu.memory_space<vmem>>, vector<1x128xf32>
    %57 = vector.broadcast %56 : vector<1x128xf32> to vector<128x128xf32>
    %58 = arith.addf %55, %57 : vector<128x128xf32>
    %cst_27 = arith.constant 0.000000e+00 : f32
    %59 = vector.broadcast %cst_27 : f32 to vector<128x128xf32>
    %60 = arith.maximumf %58, %59 : vector<128x128xf32>
    %c0_28 = arith.constant 0 : index
    %c0_29 = arith.constant 0 : index
    %61 = vector.load %arg8[%c0_28, %c0_29] : memref<128x128xf32, #tpu.memory_space<vmem>>, vector<128x128xf32>
    %cst_30 = arith.constant dense<0.000000e+00> : vector<128x128xf32>
    %62 = tpu.matmul %60, %61, %cst_30 {dimension_numbers = #tpu.dot_dimension_numbers<[1], [0], [0], [1], [0, 0, 1, 1], [], []>} : vector<128x128xf32>, vector<128x128xf32>, vector<128x128xf32> -> vector<128x128xf32>
    %c0_31 = arith.constant 0 : index
    %c0_32 = arith.constant 0 : index
    %63 = vector.load %arg9[%c0_31, %c0_32] : memref<1x128xf32, #tpu.memory_space<vmem>>, vector<1x128xf32>
    %64 = vector.broadcast %63 : vector<1x128xf32> to vector<128x128xf32>
    %65 = arith.addf %62, %64 : vector<128x128xf32>
    %cst_33 = arith.constant 0.000000e+00 : f32
    %66 = vector.broadcast %cst_33 : f32 to vector<128x128xf32>
    %67 = arith.maximumf %65, %66 : vector<128x128xf32>
    %c0_34 = arith.constant 0 : index
    %c0_35 = arith.constant 0 : index
    %68 = vector.load %arg10[%c0_34, %c0_35] : memref<128x128xf32, #tpu.memory_space<vmem>>, vector<128x128xf32>
    tpu.vector_store %arg10[%c0_34, %c0_35], %67 {strides = array<i32>} : memref<128x128xf32, #tpu.memory_space<vmem>>, vector<128x128xf32>,
    return
  }
  func.func @transform_0(%arg0: i32) -> (i32, i32) {
    %c0_i32 = arith.constant 0 : i32
    %c0_i32_0 = arith.constant 0 : i32
    return %arg0, %c0_i32 : i32, i32
  }
  func.func @transform_1(%arg0: i32) -> (i32, i32) {
    %c0_i32 = arith.constant 0 : i32
    %c0_i32_0 = arith.constant 0 : i32
    %c0_i32_1 = arith.constant 0 : i32
    return %c0_i32, %c0_i32_0 : i32, i32
  }
  func.func @transform_2(%arg0: i32) -> (i32, i32) {
    %c0_i32 = arith.constant 0 : i32
    %c0_i32_0 = arith.constant 0 : i32
    %c0_i32_1 = arith.constant 0 : i32
    return %c0_i32, %c0_i32_0 : i32, i32
  }
  func.func @transform_3(%arg0: i32) -> (i32, i32) {
    %c0_i32 = arith.constant 0 : i32
    %c0_i32_0 = arith.constant 0 : i32
    %c0_i32_1 = arith.constant 0 : i32
    return %c0_i32, %c0_i32_0 : i32, i32
  }
  func.func @transform_4(%arg0: i32) -> (i32, i32) {
    %c0_i32 = arith.constant 0 : i32
    %c0_i32_0 = arith.constant 0 : i32
    %c0_i32_1 = arith.constant 0 : i32
    return %c0_i32, %c0_i32_0 : i32, i32
  }
  func.func @transform_5(%arg0: i32) -> (i32, i32) {
    %c0_i32 = arith.constant 0 : i32
    %c0_i32_0 = arith.constant 0 : i32
    %c0_i32_1 = arith.constant 0 : i32
    return %c0_i32, %c0_i32_0 : i32, i32
  }
  func.func @transform_6(%arg0: i32) -> (i32, i32) {
    %c0_i32 = arith.constant 0 : i32
    %c0_i32_0 = arith.constant 0 : i32
    %c0_i32_1 = arith.constant 0 : i32
    return %c0_i32, %c0_i32_0 : i32, i32
  }
  func.func @transform_7(%arg0: i32) -> (i32, i32) {
    %c0_i32 = arith.constant 0 : i32
    %c0_i32_0 = arith.constant 0 : i32
    %c0_i32_1 = arith.constant 0 : i32
    return %c0_i32, %c0_i32_0 : i32, i32
  }
  func.func @transform_8(%arg0: i32) -> (i32, i32) {
    %c0_i32 = arith.constant 0 : i32
    %c0_i32_0 = arith.constant 0 : i32
    %c0_i32_1 = arith.constant 0 : i32
    return %c0_i32, %c0_i32_0 : i32, i32
  }
  func.func @transform_9(%arg0: i32) -> (i32, i32) {
    %c0_i32 = arith.constant 0 : i32
    %c0_i32_0 = arith.constant 0 : i32
    return %arg0, %c0_i32 : i32, i32
  }
}

</mosaic_0001>

<llo_original>
// kernel: fwd.1
$region0: #{fwd.1}
  #allocation0 [shape = 'u32[]', space=smem, size = 0x4, offset = 0x4, fixed_abs, tag = 'smem constant byte address 0x4 - core index']
  #allocation1 [shape = 'u32[144,128]{1,0:T(1,128)}', space=vmem, size = 0x12000, scoped, tag = 'internal scratch']
  %s0 = inlined_call_operand.vmem [shape: f32[256,32], index: 0, kind: input, shape index: {}]
  %s1 = inlined_call_operand.vmem [shape: f32[32,128], index: 1, kind: input, shape index: {}]
  %s2 = inlined_call_operand.vmem [shape: f32[1,128], index: 2, kind: input, shape index: {}]
  %s3 = inlined_call_operand.vmem [shape: f32[1,128], index: 3, kind: input, shape index: {}]
  %s4 = inlined_call_operand.vmem [shape: f32[128,128], index: 4, kind: input, shape index: {}]
  %s5 = inlined_call_operand.vmem [shape: f32[1,128], index: 5, kind: input, shape index: {}]
  %s6 = inlined_call_operand.vmem [shape: f32[1,128], index: 6, kind: input, shape index: {}]
  %s7 = inlined_call_operand.vmem [shape: f32[128,128], index: 7, kind: input, shape index: {}]
  %s8 = inlined_call_operand.vmem [shape: f32[1,128], index: 8, kind: input, shape index: {}]
  %s9 = inlined_call_operand.vmem [shape: f32[256,128], index: 9, kind: output, shape index: {}]
  %s10 = sld [smem:[#allocation0]]
  $region69: #{fwd.1} parent=0
    _
  %s12 = ssub.s32 1, %s10
  %s13 = scalar_select 0, %s12, %s10
  loop: start=0, step=1, limit=4
  $region2: #{fwd.1} parent=0 // loop_pre_header
    _
  $region3: #{fwd.1} parent=0 // loop_header
    %s15 = sphi 0, %s19
    %p16 = scmp.ge.s32.totalorder %s15, 4
    %s25 = sphi 0, %s27
    %s28 = sphi 0, %s25
    %s29 = sphi 0, %s28
    %s45 = sphi 0, %s29
    %s49 = sphi 0, %s49
    %s51 = sphi 0, %s49
    %s52 = sphi 0, %s51
    %s66 = sphi 0, %s52
    %s70 = sphi 0, %s70
    %s72 = sphi 0, %s70
    %s73 = sphi 0, %s72
    %s87 = sphi 0, %s73
    %s91 = sphi 0, %s91
    %s93 = sphi 0, %s91
    %s94 = sphi 0, %s93
    %s108 = sphi 0, %s94
    %s112 = sphi 0, %s112
    %s114 = sphi 0, %s112
    %s115 = sphi 0, %s114
    %s129 = sphi 0, %s115
    %s133 = sphi 0, %s133
    %s135 = sphi 0, %s133
    %s136 = sphi 0, %s135
    %s150 = sphi 0, %s136
    %s154 = sphi 0, %s154
    %s156 = sphi 0, %s154
    %s157 = sphi 0, %s156
    %s171 = sphi 0, %s157
    %s175 = sphi 0, %s175
    %s177 = sphi 0, %s175
    %s178 = sphi 0, %s177
    %s192 = sphi 0, %s178
    %s196 = sphi 0, %s196
    %s198 = sphi 0, %s196
    %s199 = sphi 0, %s198
    %s213 = sphi 0, %s199
    %s219 = sphi 0, %s221
    %s222 = sphi 0, %s219
    %s223 = sphi 0, %s222
    %s239 = sphi 0, %s223
  $region4: #{fwd.1} parent=0 // loop_header_branch
    %18 = sbr.rel (%p16) target = $region8
  $region5: #{fwd.1} parent=0 // loop_body
    %s20 = ssub.s32 %s15, 1
    %s21 = ssub.s32 %s15, 2
    %s22 = sadd.s32 %s15, 1
    %s23 = ssub.s32 %s15, %s22
    %p24 = scmp.eq.s32.totalorder %s23, 0
    %s26 = sadd.s32 %s25, 1
    %s27 = scalar_select %p24, %s25, %s26
    %p30 = pneg %p24
    %p31 = scmp.eq.s32.totalorder %s15, 1
    %p32 = por %p30, %p31
    %p33 = scmp.ne.s32.totalorder %s25, %s28
    %p34 = scmp.eq.s32.totalorder %s15, 0
    %p35 = por %p33, %p34
    %p36 = scmp.ne.s32.totalorder %s25, %s28
    %p37 = scmp.eq.s32.totalorder %s20, 1
    %p38 = por %p36, %p37
    %p39 = scmp.ne.s32.totalorder %s28, %s29
    %p40 = scmp.eq.s32.totalorder %s20, 0
    %p41 = por %p39, %p40
    %p42 = scmp.ne.s32.totalorder %s28, %s29
    %p43 = scmp.eq.s32.totalorder %s21, 1
    %p44 = por %p42, %p43
    %p46 = scmp.ne.s32.totalorder %s29, %s45
    %p47 = scmp.eq.s32.totalorder %s21, 0
    %p48 = por %p46, %p47
    %s50 = sadd.s32 %s49, 1
    %p53 = scmp.eq.s32.totalorder %s15, 1
    %p54 = scmp.ne.s32.totalorder %s49, %s51
    %p55 = scmp.eq.s32.totalorder %s15, 0
    %p56 = por %p54, %p55
    %p57 = scmp.ne.s32.totalorder %s49, %s51
    %p58 = scmp.eq.s32.totalorder %s20, 1
    %p59 = por %p57, %p58
    %p60 = scmp.ne.s32.totalorder %s51, %s52
    %p61 = scmp.eq.s32.totalorder %s20, 0
    %p62 = por %p60, %p61
    %p63 = scmp.ne.s32.totalorder %s51, %s52
    %p64 = scmp.eq.s32.totalorder %s21, 1
    %p65 = por %p63, %p64
    %p67 = scmp.ne.s32.totalorder %s52, %s66
    %p68 = scmp.eq.s32.totalorder %s21, 0
    %p69 = por %p67, %p68
    %s71 = sadd.s32 %s70, 1
    %p74 = scmp.eq.s32.totalorder %s15, 1
    %p75 = scmp.ne.s32.totalorder %s70, %s72
    %p76 = scmp.eq.s32.totalorder %s15, 0
    %p77 = por %p75, %p76
    %p78 = scmp.ne.s32.totalorder %s70, %s72
    %p79 = scmp.eq.s32.totalorder %s20, 1
    %p80 = por %p78, %p79
    %p81 = scmp.ne.s32.totalorder %s72, %s73
    %p82 = scmp.eq.s32.totalorder %s20, 0
    %p83 = por %p81, %p82
    %p84 = scmp.ne.s32.totalorder %s72, %s73
    %p85 = scmp.eq.s32.totalorder %s21, 1
    %p86 = por %p84, %p85
    %p88 = scmp.ne.s32.totalorder %s73, %s87
    %p89 = scmp.eq.s32.totalorder %s21, 0
    %p90 = por %p88, %p89
    %s92 = sadd.s32 %s91, 1
    %p95 = scmp.eq.s32.totalorder %s15, 1
    %p96 = scmp.ne.s32.totalorder %s91, %s93
    %p97 = scmp.eq.s32.totalorder %s15, 0
    %p98 = por %p96, %p97
    %p99 = scmp.ne.s32.totalorder %s91, %s93
    %p100 = scmp.eq.s32.totalorder %s20, 1
    %p101 = por %p99, %p100
    %p102 = scmp.ne.s32.totalorder %s93, %s94
    %p103 = scmp.eq.s32.totalorder %s20, 0
    %p104 = por %p102, %p103
    %p105 = scmp.ne.s32.totalorder %s93, %s94
    %p106 = scmp.eq.s32.totalorder %s21, 1
    %p107 = por %p105, %p106
    %p109 = scmp.ne.s32.totalorder %s94, %s108
    %p110 = scmp.eq.s32.totalorder %s21, 0
    %p111 = por %p109, %p110
    %s113 = sadd.s32 %s112, 1
    %p116 = scmp.eq.s32.totalorder %s15, 1
    %p117 = scmp.ne.s32.totalorder %s112, %s114
    %p118 = scmp.eq.s32.totalorder %s15, 0
    %p119 = por %p117, %p118
    %p120 = scmp.ne.s32.totalorder %s112, %s114
    %p121 = scmp.eq.s32.totalorder %s20, 1
    %p122 = por %p120, %p121
    %p123 = scmp.ne.s32.totalorder %s114, %s115
    %p124 = scmp.eq.s32.totalorder %s20, 0
    %p125 = por %p123, %p124
    %p126 = scmp.ne.s32.totalorder %s114, %s115
    %p127 = scmp.eq.s32.totalorder %s21, 1
    %p128 = por %p126, %p127
    %p130 = scmp.ne.s32.totalorder %s115, %s129
    %p131 = scmp.eq.s32.totalorder %s21, 0
    %p132 = por %p130, %p131
    %s134 = sadd.s32 %s133, 1
    %p137 = scmp.eq.s32.totalorder %s15, 1
    %p138 = scmp.ne.s32.totalorder %s133, %s135
    %p139 = scmp.eq.s32.totalorder %s15, 0
    %p140 = por %p138, %p139
    %p141 = scmp.ne.s32.totalorder %s133, %s135
    %p142 = scmp.eq.s32.totalorder %s20, 1
    %p143 = por %p141, %p142
    %p144 = scmp.ne.s32.totalorder %s135, %s136
    %p145 = scmp.eq.s32.totalorder %s20, 0
    %p146 = por %p144, %p145
    %p147 = scmp.ne.s32.totalorder %s135, %s136
    %p148 = scmp.eq.s32.totalorder %s21, 1
    %p149 = por %p147, %p148
    %p151 = scmp.ne.s32.totalorder %s136, %s150
    %p152 = scmp.eq.s32.totalorder %s21, 0
    %p153 = por %p151, %p152
    %s155 = sadd.s32 %s154, 1
    %p158 = scmp.eq.s32.totalorder %s15, 1
    %p159 = scmp.ne.s32.totalorder %s154, %s156
    %p160 = scmp.eq.s32.totalorder %s15, 0
    %p161 = por %p159, %p160
    %p162 = scmp.ne.s32.totalorder %s154, %s156
    %p163 = scmp.eq.s32.totalorder %s20, 1
    %p164 = por %p162, %p163
    %p165 = scmp.ne.s32.totalorder %s156, %s157
    %p166 = scmp.eq.s32.totalorder %s20, 0
    %p167 = por %p165, %p166
    %p168 = scmp.ne.s32.totalorder %s156, %s157
    %p169 = scmp.eq.s32.totalorder %s21, 1
    %p170 = por %p168, %p169
    %p172 = scmp.ne.s32.totalorder %s157, %s171
    %p173 = scmp.eq.s32.totalorder %s21, 0
    %p174 = por %p172, %p173
    %s176 = sadd.s32 %s175, 1
    %p179 = scmp.eq.s32.totalorder %s15, 1
    %p180 = scmp.ne.s32.totalorder %s175, %s177
    %p181 = scmp.eq.s32.totalorder %s15, 0
    %p182 = por %p180, %p181
    %p183 = scmp.ne.s32.totalorder %s175, %s177
    %p184 = scmp.eq.s32.totalorder %s20, 1
    %p185 = por %p183, %p184
    %p186 = scmp.ne.s32.totalorder %s177, %s178
    %p187 = scmp.eq.s32.totalorder %s20, 0
    %p188 = por %p186, %p187
    %p189 = scmp.ne.s32.totalorder %s177, %s178
    %p190 = scmp.eq.s32.totalorder %s21, 1
    %p191 = por %p189, %p190
    %p193 = scmp.ne.s32.totalorder %s178, %s192
    %p194 = scmp.eq.s32.totalorder %s21, 0
    %p195 = por %p193, %p194
    %s197 = sadd.s32 %s196, 1
    %p200 = scmp.eq.s32.totalorder %s15, 1
    %p201 = scmp.ne.s32.totalorder %s196, %s198
    %p202 = scmp.eq.s32.totalorder %s15, 0
    %p203 = por %p201, %p202
    %p204 = scmp.ne.s32.totalorder %s196, %s198
    %p205 = scmp.eq.s32.totalorder %s20, 1
    %p206 = por %p204, %p205
    %p207 = scmp.ne.s32.totalorder %s198, %s199
    %p208 = scmp.eq.s32.totalorder %s20, 0
    %p209 = por %p207, %p208
    %p210 = scmp.ne.s32.totalorder %s198, %s199
    %p211 = scmp.eq.s32.totalorder %s21, 1
    %p212 = por %p210, %p211
    %p214 = scmp.ne.s32.totalorder %s199, %s213
    %p215 = scmp.eq.s32.totalorder %s21, 0
    %p216 = por %p214, %p215
    %s217 = ssub.s32 %s15, %s22
    %p218 = scmp.eq.s32.totalorder %s217, 0
    %s220 = sadd.s32 %s219, 1
    %s221 = scalar_select %p218, %s219, %s220
    %p224 = pneg %p218
    %p225 = scmp.eq.s32.totalorder %s15, 1
    %p226 = por %p224, %p225
    %p227 = scmp.ne.s32.totalorder %s219, %s222
    %p228 = scmp.eq.s32.totalorder %s15, 0
    %p229 = por %p227, %p228
    %p230 = scmp.ne.s32.totalorder %s219, %s222
    %p231 = scmp.eq.s32.totalorder %s20, 1
    %p232 = por %p230, %p231
    %p233 = scmp.ne.s32.totalorder %s222, %s223
    %p234 = scmp.eq.s32.totalorder %s20, 0
    %p235 = por %p233, %p234
    %p236 = scmp.ne.s32.totalorder %s222, %s223
    %p237 = scmp.eq.s32.totalorder %s21, 1
    %p238 = por %p236, %p237
    %p240 = scmp.ne.s32.totalorder %s223, %s239
    %p241 = scmp.eq.s32.totalorder %s21, 0
    %p242 = por %p240, %p241
    %p243 = scmp.le.s32.totalorder 1, %s15
    %p244 = scmp.lt.s32.totalorder %s15, 3
    %p245 = pnand %p243, %p244
    %p246 = pneg %p245
    // Predicated region
    $region9: #{fwd.1} parent=5 // pred_check
      _
    $region10: #{fwd.1} parent=5 // pred_check_branch
      %248 = sbr.rel (%p245) target = $region12
    $region11: #{fwd.1} parent=5 // pred_region
      %s249 = ssub.s32 %s15, 1
      // Predicated region
      $region13: #{fwd.1} parent=11 // pred_check
        %p250 = pneg %p62
      $region14: #{fwd.1} parent=11 // pred_check_branch
        %252 = sbr.rel (%p250) target = $region16
      $region15: #{fwd.1} parent=11 // pred_region
        _
      $region16: #{fwd.1} parent=11 // pred_fallthru
        _
      // Predicated region
      $region17: #{fwd.1} parent=11 // pred_check
        %p253 = pneg %p83
      $region18: #{fwd.1} parent=11 // pred_check_branch
        %255 = sbr.rel (%p253) target = $region20
      $region19: #{fwd.1} parent=11 // pred_region
        _
      $region20: #{fwd.1} parent=11 // pred_fallthru
        _
      // Predicated region
      $region21: #{fwd.1} parent=11 // pred_check
        %p256 = pneg %p104
      $region22: #{fwd.1} parent=11 // pred_check_branch
        %258 = sbr.rel (%p256) target = $region24
      $region23: #{fwd.1} parent=11 // pred_region
        _
      $region24: #{fwd.1} parent=11 // pred_fallthru
        _
      // Predicated region
      $region25: #{fwd.1} parent=11 // pred_check
        %p259 = pneg %p125
      $region26: #{fwd.1} parent=11 // pred_check_branch
        %261 = sbr.rel (%p259) target = $region28
      $region27: #{fwd.1} parent=11 // pred_region
        _
      $region28: #{fwd.1} parent=11 // pred_fallthru
        _
      // Predicated region
      $region29: #{fwd.1} parent=11 // pred_check
        %p262 = pneg %p146
      $region30: #{fwd.1} parent=11 // pred_check_branch
        %264 = sbr.rel (%p262) target = $region32
      $region31: #{fwd.1} parent=11 // pred_region
        _
      $region32: #{fwd.1} parent=11 // pred_fallthru
        _
      // Predicated region
      $region33: #{fwd.1} parent=11 // pred_check
        %p265 = pneg %p167
      $region34: #{fwd.1} parent=11 // pred_check_branch
        %267 = sbr.rel (%p265) target = $region36
      $region35: #{fwd.1} parent=11 // pred_region
        _
      $region36: #{fwd.1} parent=11 // pred_fallthru
        _
      // Predicated region
      $region37: #{fwd.1} parent=11 // pred_check
        %p268 = pneg %p188
      $region38: #{fwd.1} parent=11 // pred_check_branch
        %270 = sbr.rel (%p268) target = $region40
      $region39: #{fwd.1} parent=11 // pred_region
        _
      $region40: #{fwd.1} parent=11 // pred_fallthru
        _
      // Predicated region
      $region41: #{fwd.1} parent=11 // pred_check
        %p271 = pneg %p209
      $region42: #{fwd.1} parent=11 // pred_check_branch
        %273 = sbr.rel (%p271) target = $region44
      $region43: #{fwd.1} parent=11 // pred_region
        _
      $region44: #{fwd.1} parent=11 // pred_fallthru
        _
    $region12: #{fwd.1} parent=5 // pred_fallthru
      _
    %p274 = scmp.lt.s32.totalorder %s15, 2
    // Predicated region
    $region45: #{fwd.1} parent=5 // pred_check
      %p275 = pneg %p274
    $region46: #{fwd.1} parent=5 // pred_check_branch
      %277 = sbr.rel (%p275) target = $region48
    $region47: #{fwd.1} parent=5 // pred_region
      // Predicated region
      $region49: #{fwd.1} parent=47 // pred_check
        %p278 = pneg %p35
      $region50: #{fwd.1} parent=47 // pred_check_branch
        %280 = sbr.rel (%p278) target = $region52
      $region51: #{fwd.1} parent=47 // pred_region
        %s281 = smul.u32 16, %s15
        %p282 = scmp.lt.s32.totalorder %s281, 31
        %s283 = scalar_select %p282, %s281, 31
        %s284 = smul.addr %s283, 8
        %s285 = scalar_lea.vmem %s0, %s284
        %s286 = smul.u32 16, %s15
      $region52: #{fwd.1} parent=47 // pred_fallthru
        _
    $region48: #{fwd.1} parent=5 // pred_fallthru
      _
    %p287 = scmp.le.s32.totalorder 1, %s15
    %p288 = scmp.lt.s32.totalorder %s15, 3
    %p289 = pnand %p287, %p288
    %p290 = pneg %p289
    // Predicated region
    $region53: #{fwd.1} parent=5 // pred_check
      _
    $region54: #{fwd.1} parent=5 // pred_check_branch
      %292 = sbr.rel (%p289) target = $region56
    $region55: #{fwd.1} parent=5 // pred_region
      %s293 = ssub.s32 %s15, 1
      %s294 = smul.u32 16, %s20
      %p295 = scmp.lt.s32.totalorder %s294, 31
      %s296 = scalar_select %p295, %s294, 31
      %s297 = smul.addr %s296, 8
      %s298 = scalar_lea.vmem %s0, %s297
      %p299 = pneg %p41
      %p300 = pneg %p38
      %p301 = pneg %p62
      %p302 = pneg %p59
      %p303 = pneg %p83
      %p304 = pneg %p80
      %p305 = pneg %p104
      %p306 = pneg %p101
      %p307 = pneg %p125
      %p308 = pneg %p122
      %p309 = pneg %p146
      %p310 = pneg %p143
      %p311 = pneg %p167
      %p312 = pneg %p164
      %p313 = pneg %p188
      %p314 = pneg %p185
      %p315 = pneg %p209
      %p316 = pneg %p206
      %p317 = pneg %p235
      %p318 = pneg %p232
      %s319 = smul.u32 16, %s20
      %p320 = scmp.lt.s32.totalorder %s319, 31
      %s321 = scalar_select %p320, %s319, 31
      %s322 = smul.addr %s321, 8
      %s323 = scalar_lea.vmem %s9, %s322
      %s324 = smul.u32 16, %s20
      %p325 = scmp.lt.s32.totalorder %s324, 31
      %s326 = scalar_select %p325, %s324, 31
      %s327 = smul.addr %s326, 8
      %s328 = scalar_lea.vmem %s0, %s327
      %s329 = smul.u32 16, %s20
      %s330 = smul.u32 16, %s20
      %p331 = scmp.lt.s32.totalorder %s330, 31
      %s332 = scalar_select %p331, %s330, 31
      %s333 = smul.addr %s332, 8
      %s334 = scalar_lea.vmem %s9, %s333
      %s335 = smul.u32 16, %s20
      %v336 = vld [vmem:[%s328] sm:$0xff]
      %v337 = vld [vmem:[%s328 + $0x8] sm:$0xff]
      %v338 = vld [vmem:[%s328 + $0x10] sm:$0xff]
      %v339 = vld [vmem:[%s328 + $0x18] sm:$0xff]
      %v340 = vld [vmem:[%s328 + $0x20] sm:$0xff]
      %v341 = vld [vmem:[%s328 + $0x28] sm:$0xff]
      %v342 = vld [vmem:[%s328 + $0x30] sm:$0xff]
      %v343 = vld [vmem:[%s328 + $0x38] sm:$0xff]
      %v344 = vld [vmem:[%s328 + $0x40] sm:$0xff]
      %v345 = vld [vmem:[%s328 + $0x48] sm:$0xff]
      %v346 = vld [vmem:[%s328 + $0x50] sm:$0xff]
      %v347 = vld [vmem:[%s328 + $0x58] sm:$0xff]
      %v348 = vld [vmem:[%s328 + $0x60] sm:$0xff]
      %v349 = vld [vmem:[%s328 + $0x68] sm:$0xff]
      %v350 = vld [vmem:[%s328 + $0x70] sm:$0xff]
      %v351 = vld [vmem:[%s328 + $0x78] sm:$0xff]
      %v352 = vld [vmem:[%s1] sm:$0xff]
      %v353 = vld [vmem:[%s1 + $0x8] sm:$0xff]
      %v354 = vld [vmem:[%s1 + $0x10] sm:$0xff]
      %v355 = vld [vmem:[%s1 + $0x18] sm:$0xff]
      %vm356 = vcmask 261120
      %v358 = vsel %vm356, %v336, 0
      %v361 = vsel %vm356, %v337, 0
      %v364 = vsel %vm356, %v338, 0
      %v367 = vsel %vm356, %v339, 0
      %v370 = vsel %vm356, %v340, 0
      %v373 = vsel %vm356, %v341, 0
      %v376 = vsel %vm356, %v342, 0
      %v379 = vsel %vm356, %v343, 0
      %v382 = vsel %vm356, %v344, 0
      %v385 = vsel %vm356, %v345, 0
      %v388 = vsel %vm356, %v346, 0
      %v391 = vsel %vm356, %v347, 0
      %v394 = vsel %vm356, %v348, 0
      %v397 = vsel %vm356, %v349, 0
      %v400 = vsel %vm356, %v350, 0
      %v403 = vsel %vm356, %v351, 0
      %405 = vmatprep.subr.mxu0 0.0
      %406 = vmatpush1.msra.mxu0 %v352
      %407 = vmatprep.subr.mxu0 0.0
      %408 = vmatpush1.msra.mxu0 %v353
      %409 = vmatprep.subr.mxu0 0.0
      %410 = vmatpush1.msra.mxu0 %v354
      %411 = vmatprep.subr.mxu0 0.0
      %412 = vmatpush1.msra.mxu0 %v355
      %413 = vmatprep.subr.mxu0 0.0
      %414 = vmatpush1.msra.mxu0 0.0
      %415 = vmatprep.subr.mxu0 0.0
      %416 = vmatpush1.msra.mxu0 0.0
      %417 = vmatprep.subr.mxu0 0.0
      %418 = vmatpush1.msra.mxu0 0.0
      %419 = vmatprep.subr.mxu0 0.0
      %420 = vmatpush1.msra.mxu0 0.0
      %421 = vmatprep.subr.mxu0 0.0
      %422 = vmatpush1.msra.mxu0 0.0
      %423 = vmatprep.subr.mxu0 0.0
      %424 = vmatpush1.msra.mxu0 0.0
      %425 = vmatprep.subr.mxu0 0.0
      %426 = vmatpush1.msra.mxu0 0.0
      %427 = vmatprep.subr.mxu0 0.0
      %428 = vmatpush1.msra.mxu0 0.0
      %429 = vmatprep.subr.mxu0 0.0
      %430 = vmatpush1.msra.mxu0 0.0
      %431 = vmatprep.subr.mxu0 0.0
      %432 = vmatpush1.msra.mxu0 0.0
      %433 = vmatprep.subr.mxu0 0.0
      %434 = vmatpush1.msra.mxu0 0.0
      %435 = vmatprep.subr.mxu0 0.0
      %436 = vmatpush1.msra.mxu0 0.0
      %437 = vmatprep.subr.mxu0 0.0
      %438 = vmatpush1.msra.mxu0 0.0
      %439 = vmatprep.subr.mxu0 0.0
      %440 = vmatpush1.msra.mxu0 0.0
      %441 = vmatprep.subr.mxu0 0.0
      %442 = vmatpush1.msra.mxu0 0.0
      %443 = vmatprep.subr.mxu0 0.0
      %444 = vmatpush1.msra.mxu0 0.0
      %445 = vmatprep.subr.mxu0 0.0
      %446 = vmatpush1.msra.mxu0 0.0
      %447 = vmatprep.subr.mxu0 0.0
      %448 = vmatpush1.msra.mxu0 0.0
      %449 = vmatprep.subr.mxu0 0.0
      %450 = vmatpush1.msra.mxu0 0.0
      %451 = vmatprep.subr.mxu0 0.0
      %452 = vmatpush1.msra.mxu0 0.0
      %453 = vmatprep.subr.mxu0 0.0
      %454 = vmatpush1.msra.mxu0 0.0
      %455 = vmatprep.subr.mxu0 0.0
      %456 = vmatpush1.msra.mxu0 0.0
      %457 = vmatprep.subr.mxu0 0.0
      %458 = vmatpush1.msra.mxu0 0.0
      %459 = vmatprep.subr.mxu0 0.0
      %460 = vmatpush1.msra.mxu0 0.0
      %461 = vmatprep.subr.mxu0 0.0
      %462 = vmatpush1.msra.mxu0 0.0
      %463 = vmatprep.subr.mxu0 0.0
      %464 = vmatpush1.msra.mxu0 0.0
      %465 = vmatprep.subr.mxu0 0.0
      %466 = vmatpush1.msra.mxu0 0.0
      %467 = vmatprep.subr.mxu0 0.0
      %468 = vmatpush1.msra.mxu0 0.0
      %469 = vmatprep.mubr.f32.mxu0 0.0
      %470 = vmatmul.mubr.f32.gmra.mrb[0].mxu0 %v358
      %v471 = vpop.f32.mrb[0].mxu0
      %v472 = vadd.f32 0.0, %v471
      %v473 = vpop.f32.mrb[0].mxu0
      %474 = vmatprep.mubr.f32.mxu0 0.0
      %475 = vmatmul.mubr.f32.gmra.mrb[0].mxu0 %v361
      %v476 = vpop.f32.mrb[0].mxu0
      %v477 = vadd.f32 0.0, %v476
      %v478 = vpop.f32.mrb[0].mxu0
      %479 = vmatprep.mubr.f32.mxu0 0.0
      %480 = vmatmul.mubr.f32.gmra.mrb[0].mxu0 %v364
      %v481 = vpop.f32.mrb[0].mxu0
      %v482 = vadd.f32 0.0, %v481
      %v483 = vpop.f32.mrb[0].mxu0
      %484 = vmatprep.mubr.f32.mxu0 0.0
      %485 = vmatmul.mubr.f32.gmra.mrb[0].mxu0 %v367
      %v486 = vpop.f32.mrb[0].mxu0
      %v487 = vadd.f32 0.0, %v486
      %v488 = vpop.f32.mrb[0].mxu0
      %489 = vmatprep.mubr.f32.mxu0 0.0
      %490 = vmatmul.mubr.f32.gmra.mrb[0].mxu0 %v370
      %v491 = vpop.f32.mrb[0].mxu0
      %v492 = vadd.f32 0.0, %v491
      %v493 = vpop.f32.mrb[0].mxu0
      %494 = vmatprep.mubr.f32.mxu0 0.0
      %495 = vmatmul.mubr.f32.gmra.mrb[0].mxu0 %v373
      %v496 = vpop.f32.mrb[0].mxu0
      %v497 = vadd.f32 0.0, %v496
      %v498 = vpop.f32.mrb[0].mxu0
      %499 = vmatprep.mubr.f32.mxu0 0.0
      %500 = vmatmul.mubr.f32.gmra.mrb[0].mxu0 %v376
      %v501 = vpop.f32.mrb[0].mxu0
      %v502 = vadd.f32 0.0, %v501
      %v503 = vpop.f32.mrb[0].mxu0
      %504 = vmatprep.mubr.f32.mxu0 0.0
      %505 = vmatmul.mubr.f32.gmra.mrb[0].mxu0 %v379
      %v506 = vpop.f32.mrb[0].mxu0
      %v507 = vadd.f32 0.0, %v506
      %v508 = vpop.f32.mrb[0].mxu0
      %509 = vmatprep.mubr.f32.mxu0 0.0
      %510 = vmatmul.mubr.f32.gmra.mrb[0].mxu0 %v382
      %v511 = vpop.f32.mrb[0].mxu0
      %v512 = vadd.f32 0.0, %v511
      %v513 = vpop.f32.mrb[0].mxu0
      %514 = vmatprep.mubr.f32.mxu0 0.0
      %515 = vmatmul.mubr.f32.gmra.mrb[0].mxu0 %v385
      %v516 = vpop.f32.mrb[0].mxu0
      %v517 = vadd.f32 0.0, %v516
      %v518 = vpop.f32.mrb[0].mxu0
      %519 = vmatprep.mubr.f32.mxu0 0.0
      %520 = vmatmul.mubr.f32.gmra.mrb[0].mxu0 %v388
      %v521 = vpop.f32.mrb[0].mxu0
      %v522 = vadd.f32 0.0, %v521
      %v523 = vpop.f32.mrb[0].mxu0
      %524 = vmatprep.mubr.f32.mxu0 0.0
      %525 = vmatmul.mubr.f32.gmra.mrb[0].mxu0 %v391
      %v526 = vpop.f32.mrb[0].mxu0
      %v527 = vadd.f32 0.0, %v526
      %v528 = vpop.f32.mrb[0].mxu0
      %529 = vmatprep.mubr.f32.mxu0 0.0
      %530 = vmatmul.mubr.f32.gmra.mrb[0].mxu0 %v394
      %v531 = vpop.f32.mrb[0].mxu0
      %v532 = vadd.f32 0.0, %v531
      %v533 = vpop.f32.mrb[0].mxu0
      %534 = vmatprep.mubr.f32.mxu0 0.0
      %535 = vmatmul.mubr.f32.gmra.mrb[0].mxu0 %v397
      %v536 = vpop.f32.mrb[0].mxu0
      %v537 = vadd.f32 0.0, %v536
      %v538 = vpop.f32.mrb[0].mxu0
      %539 = vmatprep.mubr.f32.mxu0 0.0
      %540 = vmatmul.mubr.f32.gmra.mrb[0].mxu0 %v400
      %v541 = vpop.f32.mrb[0].mxu0
      %v542 = vadd.f32 0.0, %v541
      %v543 = vpop.f32.mrb[0].mxu0
      %544 = vmatprep.mubr.f32.mxu0 0.0
      %545 = vmatmul.mubr.f32.gmra.mrb[0].mxu0 %v403
      %v546 = vpop.f32.mrb[0].mxu0
      %v547 = vadd.f32 0.0, %v546
      %v548 = vpop.f32.mrb[0].mxu0
      %549 = vdwg.mxu0
      %550 = vadd.xlane.f32.xlu0 %v472
      %v551 = vpop.xlane.xlu0 %550
      %552 = vadd.xlane.f32.xlu0 %v477
      %v553 = vpop.xlane.xlu0 %552
      %554 = vadd.xlane.f32.xlu0 %v482
      %v555 = vpop.xlane.xlu0 %554
      %556 = vadd.xlane.f32.xlu0 %v487
      %v557 = vpop.xlane.xlu0 %556
      %558 = vadd.xlane.f32.xlu0 %v492
      %v559 = vpop.xlane.xlu0 %558
      %560 = vadd.xlane.f32.xlu0 %v497
      %v561 = vpop.xlane.xlu0 %560
      %562 = vadd.xlane.f32.xlu0 %v502
      %v563 = vpop.xlane.xlu0 %562
      %564 = vadd.xlane.f32.xlu0 %v507
      %v565 = vpop.xlane.xlu0 %564
      %566 = vadd.xlane.f32.xlu0 %v512
      %v567 = vpop.xlane.xlu0 %566
      %568 = vadd.xlane.f32.xlu0 %v517
      %v569 = vpop.xlane.xlu0 %568
      %570 = vadd.xlane.f32.xlu0 %v522
      %v571 = vpop.xlane.xlu0 %570
      %572 = vadd.xlane.f32.xlu0 %v527
      %v573 = vpop.xlane.xlu0 %572
      %574 = vadd.xlane.f32.xlu0 %v532
      %v575 = vpop.xlane.xlu0 %574
      %576 = vadd.xlane.f32.xlu0 %v537
      %v577 = vpop.xlane.xlu0 %576
      %578 = vadd.xlane.f32.xlu0 %v542
      %v579 = vpop.xlane.xlu0 %578
      %580 = vadd.xlane.f32.xlu0 %v547
      %v581 = vpop.xlane.xlu0 %580
      %v582 = vmul.f32 %v472, %v472
      %v583 = vmul.f32 %v477, %v477
      %v584 = vmul.f32 %v482, %v482
      %v585 = vmul.f32 %v487, %v487
      %v586 = vmul.f32 %v492, %v492
      %v587 = vmul.f32 %v497, %v497
      %v588 = vmul.f32 %v502, %v502
      %v589 = vmul.f32 %v507, %v507
      %v590 = vmul.f32 %v512, %v512
      %v591 = vmul.f32 %v517, %v517
      %v592 = vmul.f32 %v522, %v522
      %v593 = vmul.f32 %v527, %v527
      %v594 = vmul.f32 %v532, %v532
      %v595 = vmul.f32 %v537, %v537
      %v596 = vmul.f32 %v542, %v542
      %v597 = vmul.f32 %v547, %v547
      %598 = vadd.xlane.f32.xlu0 %v582
      %v599 = vpop.xlane.xlu0 %598
      %600 = vadd.xlane.f32.xlu0 %v583
      %v601 = vpop.xlane.xlu0 %600
      %602 = vadd.xlane.f32.xlu0 %v584
      %v603 = vpop.xlane.xlu0 %602
      %604 = vadd.xlane.f32.xlu0 %v585
      %v605 = vpop.xlane.xlu0 %604
      %606 = vadd.xlane.f32.xlu0 %v586
      %v607 = vpop.xlane.xlu0 %606
      %608 = vadd.xlane.f32.xlu0 %v587
      %v609 = vpop.xlane.xlu0 %608
      %610 = vadd.xlane.f32.xlu0 %v588
      %v611 = vpop.xlane.xlu0 %610
      %612 = vadd.xlane.f32.xlu0 %v589
      %v613 = vpop.xlane.xlu0 %612
      %614 = vadd.xlane.f32.xlu0 %v590
      %v615 = vpop.xlane.xlu0 %614
      %616 = vadd.xlane.f32.xlu0 %v591
      %v617 = vpop.xlane.xlu0 %616
      %618 = vadd.xlane.f32.xlu0 %v592
      %v619 = vpop.xlane.xlu0 %618
      %620 = vadd.xlane.f32.xlu0 %v593
      %v621 = vpop.xlane.xlu0 %620
      %622 = vadd.xlane.f32.xlu0 %v594
      %v623 = vpop.xlane.xlu0 %622
      %624 = vadd.xlane.f32.xlu0 %v595
      %v625 = vpop.xlane.xlu0 %624
      %626 = vadd.xlane.f32.xlu0 %v596
      %v627 = vpop.xlane.xlu0 %626
      %628 = vadd.xlane.f32.xlu0 %v597
      %v629 = vpop.xlane.xlu0 %628
      %v630 = vmul.f32 %v551, 0.03125
      %v631 = vmul.f32 %v553, 0.03125
      %v632 = vmul.f32 %v555, 0.03125
      %v633 = vmul.f32 %v557, 0.03125
      %v634 = vmul.f32 %v559, 0.03125
      %v635 = vmul.f32 %v561, 0.03125
      %v636 = vmul.f32 %v563, 0.03125
      %v637 = vmul.f32 %v565, 0.03125
      %v638 = vmul.f32 %v567, 0.03125
      %v639 = vmul.f32 %v569, 0.03125
      %v640 = vmul.f32 %v571, 0.03125
      %v641 = vmul.f32 %v573, 0.03125
      %v642 = vmul.f32 %v575, 0.03125
      %v643 = vmul.f32 %v577, 0.03125
      %v644 = vmul.f32 %v579, 0.03125
      %v645 = vmul.f32 %v581, 0.03125
      %v646 = vmul.f32 %v599, 0.03125
      %v647 = vmul.f32 %v601, 0.03125
      %v648 = vmul.f32 %v603, 0.03125
      %v649 = vmul.f32 %v605, 0.03125
      %v650 = vmul.f32 %v607, 0.03125
      %v651 = vmul.f32 %v609, 0.03125
      %v652 = vmul.f32 %v611, 0.03125
      %v653 = vmul.f32 %v613, 0.03125
      %v654 = vmul.f32 %v615, 0.03125
      %v655 = vmul.f32 %v617, 0.03125
      %v656 = vmul.f32 %v619, 0.03125
      %v657 = vmul.f32 %v621, 0.03125
      %v658 = vmul.f32 %v623, 0.03125
      %v659 = vmul.f32 %v625, 0.03125
      %v660 = vmul.f32 %v627, 0.03125
      %v661 = vmul.f32 %v629, 0.03125
      %v662 = vmul.f32 %v630, %v630
      %v663 = vmul.f32 %v631, %v631
      %v664 = vmul.f32 %v632, %v632
      %v665 = vmul.f32 %v633, %v633
      %v666 = vmul.f32 %v634, %v634
      %v667 = vmul.f32 %v635, %v635
      %v668 = vmul.f32 %v636, %v636
      %v669 = vmul.f32 %v637, %v637
      %v670 = vmul.f32 %v638, %v638
      %v671 = vmul.f32 %v639, %v639
      %v672 = vmul.f32 %v640, %v640
      %v673 = vmul.f32 %v641, %v641
      %v674 = vmul.f32 %v642, %v642
      %v675 = vmul.f32 %v643, %v643
      %v676 = vmul.f32 %v644, %v644
      %v677 = vmul.f32 %v645, %v645
      %v678 = vsub.f32 %v646, %v662
      %v679 = vsub.f32 %v647, %v663
      %v680 = vsub.f32 %v648, %v664
      %v681 = vsub.f32 %v649, %v665
      %v682 = vsub.f32 %v650, %v666
      %v683 = vsub.f32 %v651, %v667
      %v684 = vsub.f32 %v652, %v668
      %v685 = vsub.f32 %v653, %v669
      %v686 = vsub.f32 %v654, %v670
      %v687 = vsub.f32 %v655, %v671
      %v688 = vsub.f32 %v656, %v672
      %v689 = vsub.f32 %v657, %v673
      %v690 = vsub.f32 %v658, %v674
      %v691 = vsub.f32 %v659, %v675
      %v692 = vsub.f32 %v660, %v676
      %v693 = vsub.f32 %v661, %v677
      %v694 = vmax.f32 %v678, 0.0
      %v695 = vmax.f32 %v679, 0.0
      %v696 = vmax.f32 %v680, 0.0
      %v697 = vmax.f32 %v681, 0.0
      %v698 = vmax.f32 %v682, 0.0
      %v699 = vmax.f32 %v683, 0.0
      %v700 = vmax.f32 %v684, 0.0
      %v701 = vmax.f32 %v685, 0.0
      %v702 = vmax.f32 %v686, 0.0
      %v703 = vmax.f32 %v687, 0.0
      %v704 = vmax.f32 %v688, 0.0
      %v705 = vmax.f32 %v689, 0.0
      %v706 = vmax.f32 %v690, 0.0
      %v707 = vmax.f32 %v691, 0.0
      %v708 = vmax.f32 %v692, 0.0
      %v709 = vmax.f32 %v693, 0.0
      %v710 = vsub.f32 %v472, %v630
      %v711 = vsub.f32 %v477, %v631
      %v712 = vsub.f32 %v482, %v632
      %v713 = vsub.f32 %v487, %v633
      %v714 = vsub.f32 %v492, %v634
      %v715 = vsub.f32 %v497, %v635
      %v716 = vsub.f32 %v502, %v636
      %v717 = vsub.f32 %v507, %v637
      %v718 = vsub.f32 %v512, %v638
      %v719 = vsub.f32 %v517, %v639
      %v720 = vsub.f32 %v522, %v640
      %v721 = vsub.f32 %v527, %v641
      %v722 = vsub.f32 %v532, %v642
      %v723 = vsub.f32 %v537, %v643
      %v724 = vsub.f32 %v542, %v644
      %v725 = vsub.f32 %v547, %v645
      %v726 = vadd.f32 %v694, 1e-05
      %v727 = vadd.f32 %v695, 1e-05
      %v728 = vadd.f32 %v696, 1e-05
      %v729 = vadd.f32 %v697, 1e-05
      %v730 = vadd.f32 %v698, 1e-05
      %v731 = vadd.f32 %v699, 1e-05
      %v732 = vadd.f32 %v700, 1e-05
      %v733 = vadd.f32 %v701, 1e-05
      %v734 = vadd.f32 %v702, 1e-05
      %v735 = vadd.f32 %v703, 1e-05
      %v736 = vadd.f32 %v704, 1e-05
      %v737 = vadd.f32 %v705, 1e-05
      %v738 = vadd.f32 %v706, 1e-05
      %v739 = vadd.f32 %v707, 1e-05
      %v740 = vadd.f32 %v708, 1e-05
      %v741 = vadd.f32 %v709, 1e-05
      %v742 = vrsqrt.pop %v726
      %v743 = vrsqrt.pop %v727
      %v744 = vrsqrt.pop %v728
      %v745 = vrsqrt.pop %v729
      %v746 = vrsqrt.pop %v730
      %v747 = vrsqrt.pop %v731
      %v748 = vrsqrt.pop %v732
      %v749 = vrsqrt.pop %v733
      %v750 = vrsqrt.pop %v734
      %v751 = vrsqrt.pop %v735
      %v752 = vrsqrt.pop %v736
      %v753 = vrsqrt.pop %v737
      %v754 = vrsqrt.pop %v738
      %v755 = vrsqrt.pop %v739
      %v756 = vrsqrt.pop %v740
      %v757 = vrsqrt.pop %v741
      %v758 = vmul.f32 %v710, %v742
      %v759 = vmul.f32 %v711, %v743
      %v760 = vmul.f32 %v712, %v744
      %v761 = vmul.f32 %v713, %v745
      %v762 = vmul.f32 %v714, %v746
      %v763 = vmul.f32 %v715, %v747
      %v764 = vmul.f32 %v716, %v748
      %v765 = vmul.f32 %v717, %v749
      %v766 = vmul.f32 %v718, %v750
      %v767 = vmul.f32 %v719, %v751
      %v768 = vmul.f32 %v720, %v752
      %v769 = vmul.f32 %v721, %v753
      %v770 = vmul.f32 %v722, %v754
      %v771 = vmul.f32 %v723, %v755
      %v772 = vmul.f32 %v724, %v756
      %v773 = vmul.f32 %v725, %v757
      %v774 = vld [vmem:[%s2] sm:$0x1]
      %v776 = vlaneseq
      %v777 = vshrl.u32 %v776, 7
      %v778 = vsub.s32 0, %v777
      %v779 = vrot.slane %v774, %v778
      %v781 = vmul.f32 %v758, %v779
      %v782 = vmul.f32 %v759, %v779
      %v783 = vmul.f32 %v760, %v779
      %v784 = vmul.f32 %v761, %v779
      %v785 = vmul.f32 %v762, %v779
      %v786 = vmul.f32 %v763, %v779
      %v787 = vmul.f32 %v764, %v779
      %v788 = vmul.f32 %v765, %v779
      %v789 = vmul.f32 %v766, %v779
      %v790 = vmul.f32 %v767, %v779
      %v791 = vmul.f32 %v768, %v779
      %v792 = vmul.f32 %v769, %v779
      %v793 = vmul.f32 %v770, %v779
      %v794 = vmul.f32 %v771, %v779
      %v795 = vmul.f32 %v772, %v779
      %v796 = vmul.f32 %v773, %v779
      %v797 = vld [vmem:[%s3] sm:$0x1]
      %v799 = vlaneseq
      %v800 = vshrl.u32 %v799, 7
      %v801 = vsub.s32 0, %v800
      %v802 = vrot.slane %v797, %v801
      %v804 = vadd.f32 %v781, %v802
      %v805 = vadd.f32 %v782, %v802
      %v806 = vadd.f32 %v783, %v802
      %v807 = vadd.f32 %v784, %v802
      %v808 = vadd.f32 %v785, %v802
      %v809 = vadd.f32 %v786, %v802
      %v810 = vadd.f32 %v787, %v802
      %v811 = vadd.f32 %v788, %v802
      %v812 = vadd.f32 %v789, %v802
      %v813 = vadd.f32 %v790, %v802
      %v814 = vadd.f32 %v791, %v802
      %v815 = vadd.f32 %v792, %v802
      %v816 = vadd.f32 %v793, %v802
      %v817 = vadd.f32 %v794, %v802
      %v818 = vadd.f32 %v795, %v802
      %v819 = vadd.f32 %v796, %v802
      %v820 = vmax.f32 %v804, 0.0
      %v821 = vmax.f32 %v805, 0.0
      %v822 = vmax.f32 %v806, 0.0
      %v823 = vmax.f32 %v807, 0.0
      %v824 = vmax.f32 %v808, 0.0
      %v825 = vmax.f32 %v809, 0.0
      %v826 = vmax.f32 %v810, 0.0
      %v827 = vmax.f32 %v811, 0.0
      %v828 = vmax.f32 %v812, 0.0
      %v829 = vmax.f32 %v813, 0.0
      %v830 = vmax.f32 %v814, 0.0
      %v831 = vmax.f32 %v815, 0.0
      %v832 = vmax.f32 %v816, 0.0
      %v833 = vmax.f32 %v817, 0.0
      %v834 = vmax.f32 %v818, 0.0
      %v835 = vmax.f32 %v819, 0.0
      %v836 = vld [vmem:[%s4] sm:$0xff]
      %v837 = vld [vmem:[%s4 + $0x8] sm:$0xff]
      %v838 = vld [vmem:[%s4 + $0x10] sm:$0xff]
      %v839 = vld [vmem:[%s4 + $0x18] sm:$0xff]
      %v840 = vld [vmem:[%s4 + $0x20] sm:$0xff]
      %v841 = vld [vmem:[%s4 + $0x28] sm:$0xff]
      %v842 = vld [vmem:[%s4 + $0x30] sm:$0xff]
      %v843 = vld [vmem:[%s4 + $0x38] sm:$0xff]
      %v844 = vld [vmem:[%s4 + $0x40] sm:$0xff]
      %v845 = vld [vmem:[%s4 + $0x48] sm:$0xff]
      %v846 = vld [vmem:[%s4 + $0x50] sm:$0xff]
      %v847 = vld [vmem:[%s4 + $0x58] sm:$0xff]
      %v848 = vld [vmem:[%s4 + $0x60] sm:$0xff]
      %v849 = vld [vmem:[%s4 + $0x68] sm:$0xff]
      %v850 = vld [vmem:[%s4 + $0x70] sm:$0xff]
      %v851 = vld [vmem:[%s4 + $0x78] sm:$0xff]
      %852 = vmatprep.subr.mxu0 0.0
      %853 = vmatpush1.msra.mxu0 %v836
      %854 = vmatprep.subr.mxu0 0.0
      %855 = vmatpush1.msra.mxu0 %v837
      %856 = vmatprep.subr.mxu0 0.0
      %857 = vmatpush1.msra.mxu0 %v838
      %858 = vmatprep.subr.mxu0 0.0
      %859 = vmatpush1.msra.mxu0 %v839
      %860 = vmatprep.subr.mxu0 0.0
      %861 = vmatpush1.msra.mxu0 %v840
      %862 = vmatprep.subr.mxu0 0.0
      %863 = vmatpush1.msra.mxu0 %v841
      %864 = vmatprep.subr.mxu0 0.0
      %865 = vmatpush1.msra.mxu0 %v842
      %866 = vmatprep.subr.mxu0 0.0
      %867 = vmatpush1.msra.mxu0 %v843
      %868 = vmatprep.subr.mxu0 0.0
      %869 = vmatpush1.msra.mxu0 %v844
      %870 = vmatprep.subr.mxu0 0.0
      %871 = vmatpush1.msra.mxu0 %v845
      %872 = vmatprep.subr.mxu0 0.0
      %873 = vmatpush1.msra.mxu0 %v846
      %874 = vmatprep.subr.mxu0 0.0
      %875 = vmatpush1.msra.mxu0 %v847
      %876 = vmatprep.subr.mxu0 0.0
      %877 = vmatpush1.msra.mxu0 %v848
      %878 = vmatprep.subr.mxu0 0.0
      %879 = vmatpush1.msra.mxu0 %v849
      %880 = vmatprep.subr.mxu0 0.0
      %881 = vmatpush1.msra.mxu0 %v850
      %882 = vmatprep.subr.mxu0 0.0
      %883 = vmatpush1.msra.mxu0 %v851
      %884 = vmatprep.subr.mxu0 0.0
      %885 = vmatpush1.msra.mxu0 0.0
      %886 = vmatprep.subr.mxu0 0.0
      %887 = vmatpush1.msra.mxu0 0.0
      %888 = vmatprep.subr.mxu0 0.0
      %889 = vmatpush1.msra.mxu0 0.0
      %890 = vmatprep.subr.mxu0 0.0
      %891 = vmatpush1.msra.mxu0 0.0
      %892 = vmatprep.subr.mxu0 0.0
      %893 = vmatpush1.msra.mxu0 0.0
      %894 = vmatprep.subr.mxu0 0.0
      %895 = vmatpush1.msra.mxu0 0.0
      %896 = vmatprep.subr.mxu0 0.0
      %897 = vmatpush1.msra.mxu0 0.0
      %898 = vmatprep.subr.mxu0 0.0
      %899 = vmatpush1.msra.mxu0 0.0
      %900 = vmatprep.subr.mxu0 0.0
      %901 = vmatpush1.msra.mxu0 0.0
      %902 = vmatprep.subr.mxu0 0.0
      %903 = vmatpush1.msra.mxu0 0.0
      %904 = vmatprep.subr.mxu0 0.0
      %905 = vmatpush1.msra.mxu0 0.0
      %906 = vmatprep.subr.mxu0 0.0
      %907 = vmatpush1.msra.mxu0 0.0
      %908 = vmatprep.subr.mxu0 0.0
      %909 = vmatpush1.msra.mxu0 0.0
      %910 = vmatprep.subr.mxu0 0.0
      %911 = vmatpush1.msra.mxu0 0.0
      %912 = vmatprep.subr.mxu0 0.0
      %913 = vmatpush1.msra.mxu0 0.0
      %914 = vmatprep.subr.mxu0 0.0
      %915 = vmatpush1.msra.mxu0 0.0
      %916 = vmatprep.mubr.f32.mxu0 0.0
      %917 = vmatmul.mubr.f32.gmra.mrb[0].mxu0 %v820
      %v918 = vpop.f32.mrb[0].mxu0
      %v919 = vadd.f32 0.0, %v918
      %v920 = vpop.f32.mrb[0].mxu0
      %921 = vmatprep.mubr.f32.mxu0 0.0
      %922 = vmatmul.mubr.f32.gmra.mrb[0].mxu0 %v821
      %v923 = vpop.f32.mrb[0].mxu0
      %v924 = vadd.f32 0.0, %v923
      %v925 = vpop.f32.mrb[0].mxu0
      %926 = vmatprep.mubr.f32.mxu0 0.0
      %927 = vmatmul.mubr.f32.gmra.mrb[0].mxu0 %v822
      %v928 = vpop.f32.mrb[0].mxu0
      %v929 = vadd.f32 0.0, %v928
      %v930 = vpop.f32.mrb[0].mxu0
      %931 = vmatprep.mubr.f32.mxu0 0.0
      %932 = vmatmul.mubr.f32.gmra.mrb[0].mxu0 %v823
      %v933 = vpop.f32.mrb[0].mxu0
      %v934 = vadd.f32 0.0, %v933
      %v935 = vpop.f32.mrb[0].mxu0
      %936 = vmatprep.mubr.f32.mxu0 0.0
      %937 = vmatmul.mubr.f32.gmra.mrb[0].mxu0 %v824
      %v938 = vpop.f32.mrb[0].mxu0
      %v939 = vadd.f32 0.0, %v938
      %v940 = vpop.f32.mrb[0].mxu0
      %941 = vmatprep.mubr.f32.mxu0 0.0
      %942 = vmatmul.mubr.f32.gmra.mrb[0].mxu0 %v825
      %v943 = vpop.f32.mrb[0].mxu0
      %v944 = vadd.f32 0.0, %v943
      %v945 = vpop.f32.mrb[0].mxu0
      %946 = vmatprep.mubr.f32.mxu0 0.0
      %947 = vmatmul.mubr.f32.gmra.mrb[0].mxu0 %v826
      %v948 = vpop.f32.mrb[0].mxu0
      %v949 = vadd.f32 0.0, %v948
      %v950 = vpop.f32.mrb[0].mxu0
      %951 = vmatprep.mubr.f32.mxu0 0.0
      %952 = vmatmul.mubr.f32.gmra.mrb[0].mxu0 %v827
      %v953 = vpop.f32.mrb[0].mxu0
      %v954 = vadd.f32 0.0, %v953
      %v955 = vpop.f32.mrb[0].mxu0
      %956 = vmatprep.mubr.f32.mxu0 0.0
      %957 = vmatmul.mubr.f32.gmra.mrb[0].mxu0 %v828
      %v958 = vpop.f32.mrb[0].mxu0
      %v959 = vadd.f32 0.0, %v958
      %v960 = vpop.f32.mrb[0].mxu0
      %961 = vmatprep.mubr.f32.mxu0 0.0
      %962 = vmatmul.mubr.f32.gmra.mrb[0].mxu0 %v829
      %v963 = vpop.f32.mrb[0].mxu0
      %v964 = vadd.f32 0.0, %v963
      %v965 = vpop.f32.mrb[0].mxu0
      %966 = vmatprep.mubr.f32.mxu0 0.0
      %967 = vmatmul.mubr.f32.gmra.mrb[0].mxu0 %v830
      %v968 = vpop.f32.mrb[0].mxu0
      %v969 = vadd.f32 0.0, %v968
      %v970 = vpop.f32.mrb[0].mxu0
      %971 = vmatprep.mubr.f32.mxu0 0.0
      %972 = vmatmul.mubr.f32.gmra.mrb[0].mxu0 %v831
      %v973 = vpop.f32.mrb[0].mxu0
      %v974 = vadd.f32 0.0, %v973
      %v975 = vpop.f32.mrb[0].mxu0
      %976 = vmatprep.mubr.f32.mxu0 0.0
      %977 = vmatmul.mubr.f32.gmra.mrb[0].mxu0 %v832
      %v978 = vpop.f32.mrb[0].mxu0
      %v979 = vadd.f32 0.0, %v978
      %v980 = vpop.f32.mrb[0].mxu0
      %981 = vmatprep.mubr.f32.mxu0 0.0
      %982 = vmatmul.mubr.f32.gmra.mrb[0].mxu0 %v833
      %v983 = vpop.f32.mrb[0].mxu0
      %v984 = vadd.f32 0.0, %v983
      %v985 = vpop.f32.mrb[0].mxu0
      %986 = vmatprep.mubr.f32.mxu0 0.0
      %987 = vmatmul.mubr.f32.gmra.mrb[0].mxu0 %v834
      %v988 = vpop.f32.mrb[0].mxu0
      %v989 = vadd.f32 0.0, %v988
      %v990 = vpop.f32.mrb[0].mxu0
      %991 = vmatprep.mubr.f32.mxu0 0.0
      %992 = vmatmul.mubr.f32.gmra.mrb[0].mxu0 %v835
      %v993 = vpop.f32.mrb[0].mxu0
      %v994 = vadd.f32 0.0, %v993
      %v995 = vpop.f32.mrb[0].mxu0
      %996 = vdwg.mxu0
      %997 = vadd.xlane.f32.xlu0 %v919
      %v998 = vpop.xlane.xlu0 %997
      %999 = vadd.xlane.f32.xlu0 %v924
      %v1000 = vpop.xlane.xlu0 %999
      %1001 = vadd.xlane.f32.xlu0 %v929
      %v1002 = vpop.xlane.xlu0 %1001
      %1003 = vadd.xlane.f32.xlu0 %v934
      %v1004 = vpop.xlane.xlu0 %1003
      %1005 = vadd.xlane.f32.xlu0 %v939
      %v1006 = vpop.xlane.xlu0 %1005
      %1007 = vadd.xlane.f32.xlu0 %v944
      %v1008 = vpop.xlane.xlu0 %1007
      %1009 = vadd.xlane.f32.xlu0 %v949
      %v1010 = vpop.xlane.xlu0 %1009
      %1011 = vadd.xlane.f32.xlu0 %v954
      %v1012 = vpop.xlane.xlu0 %1011
      %1013 = vadd.xlane.f32.xlu0 %v959
      %v1014 = vpop.xlane.xlu0 %1013
      %1015 = vadd.xlane.f32.xlu0 %v964
      %v1016 = vpop.xlane.xlu0 %1015
      %1017 = vadd.xlane.f32.xlu0 %v969
      %v1018 = vpop.xlane.xlu0 %1017
      %1019 = vadd.xlane.f32.xlu0 %v974
      %v1020 = vpop.xlane.xlu0 %1019
      %1021 = vadd.xlane.f32.xlu0 %v979
      %v1022 = vpop.xlane.xlu0 %1021
      %1023 = vadd.xlane.f32.xlu0 %v984
      %v1024 = vpop.xlane.xlu0 %1023
      %1025 = vadd.xlane.f32.xlu0 %v989
      %v1026 = vpop.xlane.xlu0 %1025
      %1027 = vadd.xlane.f32.xlu0 %v994
      %v1028 = vpop.xlane.xlu0 %1027
      %v1029 = vmul.f32 %v919, %v919
      %v1030 = vmul.f32 %v924, %v924
      %v1031 = vmul.f32 %v929, %v929
      %v1032 = vmul.f32 %v934, %v934
      %v1033 = vmul.f32 %v939, %v939
      %v1034 = vmul.f32 %v944, %v944
      %v1035 = vmul.f32 %v949, %v949
      %v1036 = vmul.f32 %v954, %v954
      %v1037 = vmul.f32 %v959, %v959
      %v1038 = vmul.f32 %v964, %v964
      %v1039 = vmul.f32 %v969, %v969
      %v1040 = vmul.f32 %v974, %v974
      %v1041 = vmul.f32 %v979, %v979
      %v1042 = vmul.f32 %v984, %v984
      %v1043 = vmul.f32 %v989, %v989
      %v1044 = vmul.f32 %v994, %v994
      %1045 = vadd.xlane.f32.xlu0 %v1029
      %v1046 = vpop.xlane.xlu0 %1045
      %1047 = vadd.xlane.f32.xlu0 %v1030
      %v1048 = vpop.xlane.xlu0 %1047
      %1049 = vadd.xlane.f32.xlu0 %v1031
      %v1050 = vpop.xlane.xlu0 %1049
      %1051 = vadd.xlane.f32.xlu0 %v1032
      %v1052 = vpop.xlane.xlu0 %1051
      %1053 = vadd.xlane.f32.xlu0 %v1033
      %v1054 = vpop.xlane.xlu0 %1053
      %1055 = vadd.xlane.f32.xlu0 %v1034
      %v1056 = vpop.xlane.xlu0 %1055
      %1057 = vadd.xlane.f32.xlu0 %v1035
      %v1058 = vpop.xlane.xlu0 %1057
      %1059 = vadd.xlane.f32.xlu0 %v1036
      %v1060 = vpop.xlane.xlu0 %1059
      %1061 = vadd.xlane.f32.xlu0 %v1037
      %v1062 = vpop.xlane.xlu0 %1061
      %1063 = vadd.xlane.f32.xlu0 %v1038
      %v1064 = vpop.xlane.xlu0 %1063
      %1065 = vadd.xlane.f32.xlu0 %v1039
      %v1066 = vpop.xlane.xlu0 %1065
      %1067 = vadd.xlane.f32.xlu0 %v1040
      %v1068 = vpop.xlane.xlu0 %1067
      %1069 = vadd.xlane.f32.xlu0 %v1041
      %v1070 = vpop.xlane.xlu0 %1069
      %1071 = vadd.xlane.f32.xlu0 %v1042
      %v1072 = vpop.xlane.xlu0 %1071
      %1073 = vadd.xlane.f32.xlu0 %v1043
      %v1074 = vpop.xlane.xlu0 %1073
      %1075 = vadd.xlane.f32.xlu0 %v1044
      %v1076 = vpop.xlane.xlu0 %1075
      %v1077 = vmul.f32 %v998, 0.03125
      %v1078 = vmul.f32 %v1000, 0.03125
      %v1079 = vmul.f32 %v1002, 0.03125
      %v1080 = vmul.f32 %v1004, 0.03125
      %v1081 = vmul.f32 %v1006, 0.03125
      %v1082 = vmul.f32 %v1008, 0.03125
      %v1083 = vmul.f32 %v1010, 0.03125
      %v1084 = vmul.f32 %v1012, 0.03125
      %v1085 = vmul.f32 %v1014, 0.03125
      %v1086 = vmul.f32 %v1016, 0.03125
      %v1087 = vmul.f32 %v1018, 0.03125
      %v1088 = vmul.f32 %v1020, 0.03125
      %v1089 = vmul.f32 %v1022, 0.03125
      %v1090 = vmul.f32 %v1024, 0.03125
      %v1091 = vmul.f32 %v1026, 0.03125
      %v1092 = vmul.f32 %v1028, 0.03125
      %v1093 = vmul.f32 %v1046, 0.03125
      %v1094 = vmul.f32 %v1048, 0.03125
      %v1095 = vmul.f32 %v1050, 0.03125
      %v1096 = vmul.f32 %v1052, 0.03125
      %v1097 = vmul.f32 %v1054, 0.03125
      %v1098 = vmul.f32 %v1056, 0.03125
      %v1099 = vmul.f32 %v1058, 0.03125
      %v1100 = vmul.f32 %v1060, 0.03125
      %v1101 = vmul.f32 %v1062, 0.03125
      %v1102 = vmul.f32 %v1064, 0.03125
      %v1103 = vmul.f32 %v1066, 0.03125
      %v1104 = vmul.f32 %v1068, 0.03125
      %v1105 = vmul.f32 %v1070, 0.03125
      %v1106 = vmul.f32 %v1072, 0.03125
      %v1107 = vmul.f32 %v1074, 0.03125
      %v1108 = vmul.f32 %v1076, 0.03125
      %v1109 = vmul.f32 %v1077, %v1077
      %v1110 = vmul.f32 %v1078, %v1078
      %v1111 = vmul.f32 %v1079, %v1079
      %v1112 = vmul.f32 %v1080, %v1080
      %v1113 = vmul.f32 %v1081, %v1081
      %v1114 = vmul.f32 %v1082, %v1082
      %v1115 = vmul.f32 %v1083, %v1083
      %v1116 = vmul.f32 %v1084, %v1084
      %v1117 = vmul.f32 %v1085, %v1085
      %v1118 = vmul.f32 %v1086, %v1086
      %v1119 = vmul.f32 %v1087, %v1087
      %v1120 = vmul.f32 %v1088, %v1088
      %v1121 = vmul.f32 %v1089, %v1089
      %v1122 = vmul.f32 %v1090, %v1090
      %v1123 = vmul.f32 %v1091, %v1091
      %v1124 = vmul.f32 %v1092, %v1092
      %v1125 = vsub.f32 %v1093, %v1109
      %v1126 = vsub.f32 %v1094, %v1110
      %v1127 = vsub.f32 %v1095, %v1111
      %v1128 = vsub.f32 %v1096, %v1112
      %v1129 = vsub.f32 %v1097, %v1113
      %v1130 = vsub.f32 %v1098, %v1114
      %v1131 = vsub.f32 %v1099, %v1115
      %v1132 = vsub.f32 %v1100, %v1116
      %v1133 = vsub.f32 %v1101, %v1117
      %v1134 = vsub.f32 %v1102, %v1118
      %v1135 = vsub.f32 %v1103, %v1119
      %v1136 = vsub.f32 %v1104, %v1120
      %v1137 = vsub.f32 %v1105, %v1121
      %v1138 = vsub.f32 %v1106, %v1122
      %v1139 = vsub.f32 %v1107, %v1123
      %v1140 = vsub.f32 %v1108, %v1124
      %v1141 = vmax.f32 %v1125, 0.0
      %v1142 = vmax.f32 %v1126, 0.0
      %v1143 = vmax.f32 %v1127, 0.0
      %v1144 = vmax.f32 %v1128, 0.0
      %v1145 = vmax.f32 %v1129, 0.0
      %v1146 = vmax.f32 %v1130, 0.0
      %v1147 = vmax.f32 %v1131, 0.0
      %v1148 = vmax.f32 %v1132, 0.0
      %v1149 = vmax.f32 %v1133, 0.0
      %v1150 = vmax.f32 %v1134, 0.0
      %v1151 = vmax.f32 %v1135, 0.0
      %v1152 = vmax.f32 %v1136, 0.0
      %v1153 = vmax.f32 %v1137, 0.0
      %v1154 = vmax.f32 %v1138, 0.0
      %v1155 = vmax.f32 %v1139, 0.0
      %v1156 = vmax.f32 %v1140, 0.0
      %v1157 = vsub.f32 %v919, %v1077
      %v1158 = vsub.f32 %v924, %v1078
      %v1159 = vsub.f32 %v929, %v1079
      %v1160 = vsub.f32 %v934, %v1080
      %v1161 = vsub.f32 %v939, %v1081
      %v1162 = vsub.f32 %v944, %v1082
      %v1163 = vsub.f32 %v949, %v1083
      %v1164 = vsub.f32 %v954, %v1084
      %v1165 = vsub.f32 %v959, %v1085
      %v1166 = vsub.f32 %v964, %v1086
      %v1167 = vsub.f32 %v969, %v1087
      %v1168 = vsub.f32 %v974, %v1088
      %v1169 = vsub.f32 %v979, %v1089
      %v1170 = vsub.f32 %v984, %v1090
      %v1171 = vsub.f32 %v989, %v1091
      %v1172 = vsub.f32 %v994, %v1092
      %v1173 = vadd.f32 %v1141, 1e-05
      %v1174 = vadd.f32 %v1142, 1e-05
      %v1175 = vadd.f32 %v1143, 1e-05
      %v1176 = vadd.f32 %v1144, 1e-05
      %v1177 = vadd.f32 %v1145, 1e-05
      %v1178 = vadd.f32 %v1146, 1e-05
      %v1179 = vadd.f32 %v1147, 1e-05
      %v1180 = vadd.f32 %v1148, 1e-05
      %v1181 = vadd.f32 %v1149, 1e-05
      %v1182 = vadd.f32 %v1150, 1e-05
      %v1183 = vadd.f32 %v1151, 1e-05
      %v1184 = vadd.f32 %v1152, 1e-05
      %v1185 = vadd.f32 %v1153, 1e-05
      %v1186 = vadd.f32 %v1154, 1e-05
      %v1187 = vadd.f32 %v1155, 1e-05
      %v1188 = vadd.f32 %v1156, 1e-05
      %v1189 = vrsqrt.pop %v1173
      %v1190 = vrsqrt.pop %v1174
      %v1191 = vrsqrt.pop %v1175
      %v1192 = vrsqrt.pop %v1176
      %v1193 = vrsqrt.pop %v1177
      %v1194 = vrsqrt.pop %v1178
      %v1195 = vrsqrt.pop %v1179
      %v1196 = vrsqrt.pop %v1180
      %v1197 = vrsqrt.pop %v1181
      %v1198 = vrsqrt.pop %v1182
      %v1199 = vrsqrt.pop %v1183
      %v1200 = vrsqrt.pop %v1184
      %v1201 = vrsqrt.pop %v1185
      %v1202 = vrsqrt.pop %v1186
      %v1203 = vrsqrt.pop %v1187
      %v1204 = vrsqrt.pop %v1188
      %v1205 = vmul.f32 %v1157, %v1189
      %v1206 = vmul.f32 %v1158, %v1190
      %v1207 = vmul.f32 %v1159, %v1191
      %v1208 = vmul.f32 %v1160, %v1192
      %v1209 = vmul.f32 %v1161, %v1193
      %v1210 = vmul.f32 %v1162, %v1194
      %v1211 = vmul.f32 %v1163, %v1195
      %v1212 = vmul.f32 %v1164, %v1196
      %v1213 = vmul.f32 %v1165, %v1197
      %v1214 = vmul.f32 %v1166, %v1198
      %v1215 = vmul.f32 %v1167, %v1199
      %v1216 = vmul.f32 %v1168, %v1200
      %v1217 = vmul.f32 %v1169, %v1201
      %v1218 = vmul.f32 %v1170, %v1202
      %v1219 = vmul.f32 %v1171, %v1203
      %v1220 = vmul.f32 %v1172, %v1204
      %v1221 = vld [vmem:[%s5] sm:$0x1]
      %v1223 = vlaneseq
      %v1224 = vshrl.u32 %v1223, 7
      %v1225 = vsub.s32 0, %v1224
      %v1226 = vrot.slane %v1221, %v1225
      %v1228 = vmul.f32 %v1205, %v1226
      %v1229 = vmul.f32 %v1206, %v1226
      %v1230 = vmul.f32 %v1207, %v1226
      %v1231 = vmul.f32 %v1208, %v1226
      %v1232 = vmul.f32 %v1209, %v1226
      %v1233 = vmul.f32 %v1210, %v1226
      %v1234 = vmul.f32 %v1211, %v1226
      %v1235 = vmul.f32 %v1212, %v1226
      %v1236 = vmul.f32 %v1213, %v1226
      %v1237 = vmul.f32 %v1214, %v1226
      %v1238 = vmul.f32 %v1215, %v1226
      %v1239 = vmul.f32 %v1216, %v1226
      %v1240 = vmul.f32 %v1217, %v1226
      %v1241 = vmul.f32 %v1218, %v1226
      %v1242 = vmul.f32 %v1219, %v1226
      %v1243 = vmul.f32 %v1220, %v1226
      %v1244 = vld [vmem:[%s6] sm:$0x1]
      %v1246 = vlaneseq
      %v1247 = vshrl.u32 %v1246, 7
      %v1248 = vsub.s32 0, %v1247
      %v1249 = vrot.slane %v1244, %v1248
      %v1251 = vadd.f32 %v1228, %v1249
      %v1252 = vadd.f32 %v1229, %v1249
      %v1253 = vadd.f32 %v1230, %v1249
      %v1254 = vadd.f32 %v1231, %v1249
      %v1255 = vadd.f32 %v1232, %v1249
      %v1256 = vadd.f32 %v1233, %v1249
      %v1257 = vadd.f32 %v1234, %v1249
      %v1258 = vadd.f32 %v1235, %v1249
      %v1259 = vadd.f32 %v1236, %v1249
      %v1260 = vadd.f32 %v1237, %v1249
      %v1261 = vadd.f32 %v1238, %v1249
      %v1262 = vadd.f32 %v1239, %v1249
      %v1263 = vadd.f32 %v1240, %v1249
      %v1264 = vadd.f32 %v1241, %v1249
      %v1265 = vadd.f32 %v1242, %v1249
      %v1266 = vadd.f32 %v1243, %v1249
      %v1267 = vmax.f32 %v1251, 0.0
      %v1268 = vmax.f32 %v1252, 0.0
      %v1269 = vmax.f32 %v1253, 0.0
      %v1270 = vmax.f32 %v1254, 0.0
      %v1271 = vmax.f32 %v1255, 0.0
      %v1272 = vmax.f32 %v1256, 0.0
      %v1273 = vmax.f32 %v1257, 0.0
      %v1274 = vmax.f32 %v1258, 0.0
      %v1275 = vmax.f32 %v1259, 0.0
      %v1276 = vmax.f32 %v1260, 0.0
      %v1277 = vmax.f32 %v1261, 0.0
      %v1278 = vmax.f32 %v1262, 0.0
      %v1279 = vmax.f32 %v1263, 0.0
      %v1280 = vmax.f32 %v1264, 0.0
      %v1281 = vmax.f32 %v1265, 0.0
      %v1282 = vmax.f32 %v1266, 0.0
      %v1283 = vld [vmem:[%s7] sm:$0xff]
      %v1284 = vld [vmem:[%s7 + $0x8] sm:$0xff]
      %v1285 = vld [vmem:[%s7 + $0x10] sm:$0xff]
      %v1286 = vld [vmem:[%s7 + $0x18] sm:$0xff]
      %v1287 = vld [vmem:[%s7 + $0x20] sm:$0xff]
      %v1288 = vld [vmem:[%s7 + $0x28] sm:$0xff]
      %v1289 = vld [vmem:[%s7 + $0x30] sm:$0xff]
      %v1290 = vld [vmem:[%s7 + $0x38] sm:$0xff]
      %v1291 = vld [vmem:[%s7 + $0x40] sm:$0xff]
      %v1292 = vld [vmem:[%s7 + $0x48] sm:$0xff]
      %v1293 = vld [vmem:[%s7 + $0x50] sm:$0xff]
      %v1294 = vld [vmem:[%s7 + $0x58] sm:$0xff]
      %v1295 = vld [vmem:[%s7 + $0x60] sm:$0xff]
      %v1296 = vld [vmem:[%s7 + $0x68] sm:$0xff]
      %v1297 = vld [vmem:[%s7 + $0x70] sm:$0xff]
      %v1298 = vld [vmem:[%s7 + $0x78] sm:$0xff]
      %v1299 = vld [vmem:[%s8] sm:$0x1]
      %v1301 = vlaneseq
      %v1302 = vshrl.u32 %v1301, 7
      %v1303 = vsub.s32 0, %v1302
      %v1304 = vrot.slane %v1299, %v1303
      %1306 = vmatprep.subr.mxu0 0.0
      %1307 = vmatpush1.msra.mxu0 %v1283
      %1308 = vmatprep.subr.mxu0 0.0
      %1309 = vmatpush1.msra.mxu0 %v1284
      %1310 = vmatprep.subr.mxu0 0.0
      %1311 = vmatpush1.msra.mxu0 %v1285
      %1312 = vmatprep.subr.mxu0 0.0
      %1313 = vmatpush1.msra.mxu0 %v1286
      %1314 = vmatprep.subr.mxu0 0.0
      %1315 = vmatpush1.msra.mxu0 %v1287
      %1316 = vmatprep.subr.mxu0 0.0
      %1317 = vmatpush1.msra.mxu0 %v1288
      %1318 = vmatprep.subr.mxu0 0.0
      %1319 = vmatpush1.msra.mxu0 %v1289
      %1320 = vmatprep.subr.mxu0 0.0
      %1321 = vmatpush1.msra.mxu0 %v1290
      %1322 = vmatprep.subr.mxu0 0.0
      %1323 = vmatpush1.msra.mxu0 %v1291
      %1324 = vmatprep.subr.mxu0 0.0
      %1325 = vmatpush1.msra.mxu0 %v1292
      %1326 = vmatprep.subr.mxu0 0.0
      %1327 = vmatpush1.msra.mxu0 %v1293
      %1328 = vmatprep.subr.mxu0 0.0
      %1329 = vmatpush1.msra.mxu0 %v1294
      %1330 = vmatprep.subr.mxu0 0.0
      %1331 = vmatpush1.msra.mxu0 %v1295
      %1332 = vmatprep.subr.mxu0 0.0
      %1333 = vmatpush1.msra.mxu0 %v1296
      %1334 = vmatprep.subr.mxu0 0.0
      %1335 = vmatpush1.msra.mxu0 %v1297
      %1336 = vmatprep.subr.mxu0 0.0
      %1337 = vmatpush1.msra.mxu0 %v1298
      %1338 = vmatprep.subr.mxu0 0.0
      %1339 = vmatpush1.msra.mxu0 0.0
      %1340 = vmatprep.subr.mxu0 0.0
      %1341 = vmatpush1.msra.mxu0 0.0
      %1342 = vmatprep.subr.mxu0 0.0
      %1343 = vmatpush1.msra.mxu0 0.0
      %1344 = vmatprep.subr.mxu0 0.0
      %1345 = vmatpush1.msra.mxu0 0.0
      %1346 = vmatprep.subr.mxu0 0.0
      %1347 = vmatpush1.msra.mxu0 0.0
      %1348 = vmatprep.subr.mxu0 0.0
      %1349 = vmatpush1.msra.mxu0 0.0
      %1350 = vmatprep.subr.mxu0 0.0
      %1351 = vmatpush1.msra.mxu0 0.0
      %1352 = vmatprep.subr.mxu0 0.0
      %1353 = vmatpush1.msra.mxu0 0.0
      %1354 = vmatprep.subr.mxu0 0.0
      %1355 = vmatpush1.msra.mxu0 0.0
      %1356 = vmatprep.subr.mxu0 0.0
      %1357 = vmatpush1.msra.mxu0 0.0
      %1358 = vmatprep.subr.mxu0 0.0
      %1359 = vmatpush1.msra.mxu0 0.0
      %1360 = vmatprep.subr.mxu0 0.0
      %1361 = vmatpush1.msra.mxu0 0.0
      %1362 = vmatprep.subr.mxu0 0.0
      %1363 = vmatpush1.msra.mxu0 0.0
      %1364 = vmatprep.subr.mxu0 0.0
      %1365 = vmatpush1.msra.mxu0 0.0
      %1366 = vmatprep.subr.mxu0 0.0
      %1367 = vmatpush1.msra.mxu0 0.0
      %1368 = vmatprep.subr.mxu0 0.0
      %1369 = vmatpush1.msra.mxu0 0.0
      %1370 = vmatprep.mubr.f32.mxu0 0.0
      %1371 = vmatmul.mubr.f32.gmra.mrb[0].mxu0 %v1267
      %v1372 = vpop.f32.mrb[0].mxu0
      %v1373 = vadd.f32 %v1304, %v1372
      %v1374 = vpop.f32.mrb[0].mxu0
      %1375 = vmatprep.mubr.f32.mxu0 0.0
      %1376 = vmatmul.mubr.f32.gmra.mrb[0].mxu0 %v1268
      %v1377 = vpop.f32.mrb[0].mxu0
      %v1378 = vadd.f32 %v1304, %v1377
      %v1379 = vpop.f32.mrb[0].mxu0
      %1380 = vmatprep.mubr.f32.mxu0 0.0
      %1381 = vmatmul.mubr.f32.gmra.mrb[0].mxu0 %v1269
      %v1382 = vpop.f32.mrb[0].mxu0
      %v1383 = vadd.f32 %v1304, %v1382
      %v1384 = vpop.f32.mrb[0].mxu0
      %1385 = vmatprep.mubr.f32.mxu0 0.0
      %1386 = vmatmul.mubr.f32.gmra.mrb[0].mxu0 %v1270
      %v1387 = vpop.f32.mrb[0].mxu0
      %v1388 = vadd.f32 %v1304, %v1387
      %v1389 = vpop.f32.mrb[0].mxu0
      %1390 = vmatprep.mubr.f32.mxu0 0.0
      %1391 = vmatmul.mubr.f32.gmra.mrb[0].mxu0 %v1271
      %v1392 = vpop.f32.mrb[0].mxu0
      %v1393 = vadd.f32 %v1304, %v1392
      %v1394 = vpop.f32.mrb[0].mxu0
      %1395 = vmatprep.mubr.f32.mxu0 0.0
      %1396 = vmatmul.mubr.f32.gmra.mrb[0].mxu0 %v1272
      %v1397 = vpop.f32.mrb[0].mxu0
      %v1398 = vadd.f32 %v1304, %v1397
      %v1399 = vpop.f32.mrb[0].mxu0
      %1400 = vmatprep.mubr.f32.mxu0 0.0
      %1401 = vmatmul.mubr.f32.gmra.mrb[0].mxu0 %v1273
      %v1402 = vpop.f32.mrb[0].mxu0
      %v1403 = vadd.f32 %v1304, %v1402
      %v1404 = vpop.f32.mrb[0].mxu0
      %1405 = vmatprep.mubr.f32.mxu0 0.0
      %1406 = vmatmul.mubr.f32.gmra.mrb[0].mxu0 %v1274
      %v1407 = vpop.f32.mrb[0].mxu0
      %v1408 = vadd.f32 %v1304, %v1407
      %v1409 = vpop.f32.mrb[0].mxu0
      %1410 = vmatprep.mubr.f32.mxu0 0.0
      %1411 = vmatmul.mubr.f32.gmra.mrb[0].mxu0 %v1275
      %v1412 = vpop.f32.mrb[0].mxu0
      %v1413 = vadd.f32 %v1304, %v1412
      %v1414 = vpop.f32.mrb[0].mxu0
      %1415 = vmatprep.mubr.f32.mxu0 0.0
      %1416 = vmatmul.mubr.f32.gmra.mrb[0].mxu0 %v1276
      %v1417 = vpop.f32.mrb[0].mxu0
      %v1418 = vadd.f32 %v1304, %v1417
      %v1419 = vpop.f32.mrb[0].mxu0
      %1420 = vmatprep.mubr.f32.mxu0 0.0
      %1421 = vmatmul.mubr.f32.gmra.mrb[0].mxu0 %v1277
      %v1422 = vpop.f32.mrb[0].mxu0
      %v1423 = vadd.f32 %v1304, %v1422
      %v1424 = vpop.f32.mrb[0].mxu0
      %1425 = vmatprep.mubr.f32.mxu0 0.0
      %1426 = vmatmul.mubr.f32.gmra.mrb[0].mxu0 %v1278
      %v1427 = vpop.f32.mrb[0].mxu0
      %v1428 = vadd.f32 %v1304, %v1427
      %v1429 = vpop.f32.mrb[0].mxu0
      %1430 = vmatprep.mubr.f32.mxu0 0.0
      %1431 = vmatmul.mubr.f32.gmra.mrb[0].mxu0 %v1279
      %v1432 = vpop.f32.mrb[0].mxu0
      %v1433 = vadd.f32 %v1304, %v1432
      %v1434 = vpop.f32.mrb[0].mxu0
      %1435 = vmatprep.mubr.f32.mxu0 0.0
      %1436 = vmatmul.mubr.f32.gmra.mrb[0].mxu0 %v1280
      %v1437 = vpop.f32.mrb[0].mxu0
      %v1438 = vadd.f32 %v1304, %v1437
      %v1439 = vpop.f32.mrb[0].mxu0
      %1440 = vmatprep.mubr.f32.mxu0 0.0
      %1441 = vmatmul.mubr.f32.gmra.mrb[0].mxu0 %v1281
      %v1442 = vpop.f32.mrb[0].mxu0
      %v1443 = vadd.f32 %v1304, %v1442
      %v1444 = vpop.f32.mrb[0].mxu0
      %1445 = vmatprep.mubr.f32.mxu0 0.0
      %1446 = vmatmul.mubr.f32.gmra.mrb[0].mxu0 %v1282
      %v1447 = vpop.f32.mrb[0].mxu0
      %v1448 = vadd.f32 %v1304, %v1447
      %v1449 = vpop.f32.mrb[0].mxu0
      %1450 = vdwg.mxu0
      %v1451 = vmax.f32 %v1373, 0.0
      %v1452 = vmax.f32 %v1378, 0.0
      %v1453 = vmax.f32 %v1383, 0.0
      %v1454 = vmax.f32 %v1388, 0.0
      %v1455 = vmax.f32 %v1393, 0.0
      %v1456 = vmax.f32 %v1398, 0.0
      %v1457 = vmax.f32 %v1403, 0.0
      %v1458 = vmax.f32 %v1408, 0.0
      %v1459 = vmax.f32 %v1413, 0.0
      %v1460 = vmax.f32 %v1418, 0.0
      %v1461 = vmax.f32 %v1423, 0.0
      %v1462 = vmax.f32 %v1428, 0.0
      %v1463 = vmax.f32 %v1433, 0.0
      %v1464 = vmax.f32 %v1438, 0.0
      %v1465 = vmax.f32 %v1443, 0.0
      %v1466 = vmax.f32 %v1448, 0.0
      %1467 = vst [vmem:[%s334] sm:$0xff] %v1451
      %1468 = vst [vmem:[%s334 + $0x8] sm:$0xff] %v1452
      %1469 = vst [vmem:[%s334 + $0x10] sm:$0xff] %v1453
      %1470 = vst [vmem:[%s334 + $0x18] sm:$0xff] %v1454
      %1471 = vst [vmem:[%s334 + $0x20] sm:$0xff] %v1455
      %1472 = vst [vmem:[%s334 + $0x28] sm:$0xff] %v1456
      %1473 = vst [vmem:[%s334 + $0x30] sm:$0xff] %v1457
      %1474 = vst [vmem:[%s334 + $0x38] sm:$0xff] %v1458
      %1475 = vst [vmem:[%s334 + $0x40] sm:$0xff] %v1459
      %1476 = vst [vmem:[%s334 + $0x48] sm:$0xff] %v1460
      %1477 = vst [vmem:[%s334 + $0x50] sm:$0xff] %v1461
      %1478 = vst [vmem:[%s334 + $0x58] sm:$0xff] %v1462
      %1479 = vst [vmem:[%s334 + $0x60] sm:$0xff] %v1463
      %1480 = vst [vmem:[%s334 + $0x68] sm:$0xff] %v1464
      %1481 = vst [vmem:[%s334 + $0x70] sm:$0xff] %v1465
      %1482 = vst [vmem:[%s334 + $0x78] sm:$0xff] %v1466
      %s1483 = smul.u32 16, %s20
      %p1484 = scmp.lt.s32.totalorder %s1483, 31
      %s1485 = scalar_select %p1484, %s1483, 31
      %s1486 = smul.addr %s1485, 8
      %s1487 = scalar_lea.vmem %s9, %s1486
      // Predicated region
      $region57: #{fwd.1} parent=55 // pred_check
        %p1488 = pneg %p232
      $region58: #{fwd.1} parent=55 // pred_check_branch
        %1490 = sbr.rel (%p1488) target = $region60
      $region59: #{fwd.1} parent=55 // pred_region
        %s1491 = smul.u32 16, %s20
      $region60: #{fwd.1} parent=55 // pred_fallthru
        _
    $region56: #{fwd.1} parent=5 // pred_fallthru
      _
    %p1492 = scmp.le.s32.totalorder 2, %s15
    // Predicated region
    $region61: #{fwd.1} parent=5 // pred_check
      %p1493 = pneg %p1492
    $region62: #{fwd.1} parent=5 // pred_check_branch
      %1495 = sbr.rel (%p1493) target = $region64
    $region63: #{fwd.1} parent=5 // pred_region
      %s1496 = ssub.s32 %s15, 2
      // Predicated region
      $region65: #{fwd.1} parent=63 // pred_check
        %p1497 = pneg %p238
      $region66: #{fwd.1} parent=63 // pred_check_branch
        %1499 = sbr.rel (%p1497) target = $region68
      $region67: #{fwd.1} parent=63 // pred_region
        %s1500 = smul.u32 16, %s21
        %p1501 = scmp.lt.s32.totalorder %s1500, 31
        %s1502 = scalar_select %p1501, %s1500, 31
        %s1503 = smul.addr %s1502, 8
        %s1504 = scalar_lea.vmem %s9, %s1503
      $region68: #{fwd.1} parent=63 // pred_fallthru
        _
    $region64: #{fwd.1} parent=5 // pred_fallthru
      _
  $region6: #{fwd.1} parent=0 // loop_footer
    %s19 = sadd.s32 1, %s15
  $region7: #{fwd.1} parent=0 // loop_footer_branch
    %14 = sbr.rel target = $region3
  $region8: #{fwd.1} parent=0 // loop_exit
    _

// kernel: fwd.1
$region0: #{fwd.1}
  #allocation0 [shape = 'u32[]', space=smem, size = 0x4, offset = 0x4, fixed_abs, tag = 'smem constant byte address 0x4 - core index']
  #allocation1 [shape = 'u32[144,128]{1,0:T(1,128)}', space=vmem, size = 0x12000, scoped, tag = 'internal scratch']
  %s0 = inlined_call_operand.vmem [shape: f32[256,32], index: 0, kind: input, shape index: {}]
  %s1 = inlined_call_operand.vmem [shape: f32[32,128], index: 1, kind: input, shape index: {}]
  %s2 = inlined_call_operand.vmem [shape: f32[1,128], index: 2, kind: input, shape index: {}]
  %s3 = inlined_call_operand.vmem [shape: f32[1,128], index: 3, kind: input, shape index: {}]
  %s4 = inlined_call_operand.vmem [shape: f32[128,128], index: 4, kind: input, shape index: {}]
  %s5 = inlined_call_operand.vmem [shape: f32[1,128], index: 5, kind: input, shape index: {}]
  %s6 = inlined_call_operand.vmem [shape: f32[1,128], index: 6, kind: input, shape index: {}]
  %s7 = inlined_call_operand.vmem [shape: f32[128,128], index: 7, kind: input, shape index: {}]
  %s8 = inlined_call_operand.vmem [shape: f32[1,128], index: 8, kind: input, shape index: {}]
  %s9 = inlined_call_operand.vmem [shape: f32[256,128], index: 9, kind: output, shape index: {}]
  %s10 = sld [smem:[#allocation0]]
  $region69: #{fwd.1} parent=0
    _
  %s12 = ssub.s32 1, %s10
  %s13 = scalar_select 0, %s12, %s10
  loop: start=0, step=1, limit=4
  $region2: #{fwd.1} parent=0 // loop_pre_header
    _
  $region3: #{fwd.1} parent=0 // loop_header
    %s15 = sphi 0, %s19
    %p16 = scmp.ge.s32.totalorder %s15, 4
    %s25 = sphi 0, %s27
    %s28 = sphi 0, %s25
    %s29 = sphi 0, %s28
    %s45 = sphi 0, %s29
    %s49 = sphi 0, %s49
    %s51 = sphi 0, %s49
    %s52 = sphi 0, %s51
    %s66 = sphi 0, %s52
    %s70 = sphi 0, %s70
    %s72 = sphi 0, %s70
    %s73 = sphi 0, %s72
    %s87 = sphi 0, %s73
    %s91 = sphi 0, %s91
    %s93 = sphi 0, %s91
    %s94 = sphi 0, %s93
    %s108 = sphi 0, %s94
    %s112 = sphi 0, %s112
    %s114 = sphi 0, %s112
    %s115 = sphi 0, %s114
    %s129 = sphi 0, %s115
    %s133 = sphi 0, %s133
    %s135 = sphi 0, %s133
    %s136 = sphi 0, %s135
    %s150 = sphi 0, %s136
    %s154 = sphi 0, %s154
    %s156 = sphi 0, %s154
    %s157 = sphi 0, %s156
    %s171 = sphi 0, %s157
    %s175 = sphi 0, %s175
    %s177 = sphi 0, %s175
    %s178 = sphi 0, %s177
    %s192 = sphi 0, %s178
    %s196 = sphi 0, %s196
    %s198 = sphi 0, %s196
    %s199 = sphi 0, %s198
    %s213 = sphi 0, %s199
    %s219 = sphi 0, %s221
    %s222 = sphi 0, %s219
    %s223 = sphi 0, %s222
    %s239 = sphi 0, %s223
  $region4: #{fwd.1} parent=0 // loop_header_branch
    %18 = sbr.rel (%p16) target = $region8
  $region5: #{fwd.1} parent=0 // loop_body
    %s20 = ssub.s32 %s15, 1
    %s21 = ssub.s32 %s15, 2
    %s22 = sadd.s32 %s15, 1
    %s23 = ssub.s32 %s15, %s22
    %p24 = scmp.eq.s32.totalorder %s23, 0
    %s26 = sadd.s32 %s25, 1
    %s27 = scalar_select %p24, %s25, %s26
    %p30 = pneg %p24
    %p31 = scmp.eq.s32.totalorder %s15, 1
    %p32 = por %p30, %p31
    %p33 = scmp.ne.s32.totalorder %s25, %s28
    %p34 = scmp.eq.s32.totalorder %s15, 0
    %p35 = por %p33, %p34
    %p36 = scmp.ne.s32.totalorder %s25, %s28
    %p37 = scmp.eq.s32.totalorder %s20, 1
    %p38 = por %p36, %p37
    %p39 = scmp.ne.s32.totalorder %s28, %s29
    %p40 = scmp.eq.s32.totalorder %s20, 0
    %p41 = por %p39, %p40
    %p42 = scmp.ne.s32.totalorder %s28, %s29
    %p43 = scmp.eq.s32.totalorder %s21, 1
    %p44 = por %p42, %p43
    %p46 = scmp.ne.s32.totalorder %s29, %s45
    %p47 = scmp.eq.s32.totalorder %s21, 0
    %p48 = por %p46, %p47
    %s50 = sadd.s32 %s49, 1
    %p53 = scmp.eq.s32.totalorder %s15, 1
    %p54 = scmp.ne.s32.totalorder %s49, %s51
    %p55 = scmp.eq.s32.totalorder %s15, 0
    %p56 = por %p54, %p55
    %p57 = scmp.ne.s32.totalorder %s49, %s51
    %p58 = scmp.eq.s32.totalorder %s20, 1
    %p59 = por %p57, %p58
    %p60 = scmp.ne.s32.totalorder %s51, %s52
    %p61 = scmp.eq.s32.totalorder %s20, 0
    %p62 = por %p60, %p61
    %p63 = scmp.ne.s32.totalorder %s51, %s52
    %p64 = scmp.eq.s32.totalorder %s21, 1
    %p65 = por %p63, %p64
    %p67 = scmp.ne.s32.totalorder %s52, %s66
    %p68 = scmp.eq.s32.totalorder %s21, 0
    %p69 = por %p67, %p68
    %s71 = sadd.s32 %s70, 1
    %p74 = scmp.eq.s32.totalorder %s15, 1
    %p75 = scmp.ne.s32.totalorder %s70, %s72
    %p76 = scmp.eq.s32.totalorder %s15, 0
    %p77 = por %p75, %p76
    %p78 = scmp.ne.s32.totalorder %s70, %s72
    %p79 = scmp.eq.s32.totalorder %s20, 1
    %p80 = por %p78, %p79
    %p81 = scmp.ne.s32.totalorder %s72, %s73
    %p82 = scmp.eq.s32.totalorder %s20, 0
    %p83 = por %p81, %p82
    %p84 = scmp.ne.s32.totalorder %s72, %s73
    %p85 = scmp.eq.s32.totalorder %s21, 1
    %p86 = por %p84, %p85
    %p88 = scmp.ne.s32.totalorder %s73, %s87
    %p89 = scmp.eq.s32.totalorder %s21, 0
    %p90 = por %p88, %p89
    %s92 = sadd.s32 %s91, 1
    %p95 = scmp.eq.s32.totalorder %s15, 1
    %p96 = scmp.ne.s32.totalorder %s91, %s93
    %p97 = scmp.eq.s32.totalorder %s15, 0
    %p98 = por %p96, %p97
    %p99 = scmp.ne.s32.totalorder %s91, %s93
    %p100 = scmp.eq.s32.totalorder %s20, 1
    %p101 = por %p99, %p100
    %p102 = scmp.ne.s32.totalorder %s93, %s94
    %p103 = scmp.eq.s32.totalorder %s20, 0
    %p104 = por %p102, %p103
    %p105 = scmp.ne.s32.totalorder %s93, %s94
    %p106 = scmp.eq.s32.totalorder %s21, 1
    %p107 = por %p105, %p106
    %p109 = scmp.ne.s32.totalorder %s94, %s108
    %p110 = scmp.eq.s32.totalorder %s21, 0
    %p111 = por %p109, %p110
    %s113 = sadd.s32 %s112, 1
    %p116 = scmp.eq.s32.totalorder %s15, 1
    %p117 = scmp.ne.s32.totalorder %s112, %s114
    %p118 = scmp.eq.s32.totalorder %s15, 0
    %p119 = por %p117, %p118
    %p120 = scmp.ne.s32.totalorder %s112, %s114
    %p121 = scmp.eq.s32.totalorder %s20, 1
    %p122 = por %p120, %p121
    %p123 = scmp.ne.s32.totalorder %s114, %s115
    %p124 = scmp.eq.s32.totalorder %s20, 0
    %p125 = por %p123, %p124
    %p126 = scmp.ne.s32.totalorder %s114, %s115
    %p127 = scmp.eq.s32.totalorder %s21, 1
    %p128 = por %p126, %p127
    %p130 = scmp.ne.s32.totalorder %s115, %s129
    %p131 = scmp.eq.s32.totalorder %s21, 0
    %p132 = por %p130, %p131
    %s134 = sadd.s32 %s133, 1
    %p137 = scmp.eq.s32.totalorder %s15, 1
    %p138 = scmp.ne.s32.totalorder %s133, %s135
    %p139 = scmp.eq.s32.totalorder %s15, 0
    %p140 = por %p138, %p139
    %p141 = scmp.ne.s32.totalorder %s133, %s135
    %p142 = scmp.eq.s32.totalorder %s20, 1
    %p143 = por %p141, %p142
    %p144 = scmp.ne.s32.totalorder %s135, %s136
    %p145 = scmp.eq.s32.totalorder %s20, 0
    %p146 = por %p144, %p145
    %p147 = scmp.ne.s32.totalorder %s135, %s136
    %p148 = scmp.eq.s32.totalorder %s21, 1
    %p149 = por %p147, %p148
    %p151 = scmp.ne.s32.totalorder %s136, %s150
    %p152 = scmp.eq.s32.totalorder %s21, 0
    %p153 = por %p151, %p152
    %s155 = sadd.s32 %s154, 1
    %p158 = scmp.eq.s32.totalorder %s15, 1
    %p159 = scmp.ne.s32.totalorder %s154, %s156
    %p160 = scmp.eq.s32.totalorder %s15, 0
    %p161 = por %p159, %p160
    %p162 = scmp.ne.s32.totalorder %s154, %s156
    %p163 = scmp.eq.s32.totalorder %s20, 1
    %p164 = por %p162, %p163
    %p165 = scmp.ne.s32.totalorder %s156, %s157
    %p166 = scmp.eq.s32.totalorder %s20, 0
    %p167 = por %p165, %p166
    %p168 = scmp.ne.s32.totalorder %s156, %s157
    %p169 = scmp.eq.s32.totalorder %s21, 1
    %p170 = por %p168, %p169
    %p172 = scmp.ne.s32.totalorder %s157, %s171
    %p173 = scmp.eq.s32.totalorder %s21, 0
    %p174 = por %p172, %p173
    %s176 = sadd.s32 %s175, 1
    %p179 = scmp.eq.s32.totalorder %s15, 1
    %p180 = scmp.ne.s32.totalorder %s175, %s177
    %p181 = scmp.eq.s32.totalorder %s15, 0
    %p182 = por %p180, %p181
    %p183 = scmp.ne.s32.totalorder %s175, %s177
    %p184 = scmp.eq.s32.totalorder %s20, 1
    %p185 = por %p183, %p184
    %p186 = scmp.ne.s32.totalorder %s177, %s178
    %p187 = scmp.eq.s32.totalorder %s20, 0
    %p188 = por %p186, %p187
    %p189 = scmp.ne.s32.totalorder %s177, %s178
    %p190 = scmp.eq.s32.totalorder %s21, 1
    %p191 = por %p189, %p190
    %p193 = scmp.ne.s32.totalorder %s178, %s192
    %p194 = scmp.eq.s32.totalorder %s21, 0
    %p195 = por %p193, %p194
    %s197 = sadd.s32 %s196, 1
    %p200 = scmp.eq.s32.totalorder %s15, 1
    %p201 = scmp.ne.s32.totalorder %s196, %s198
    %p202 = scmp.eq.s32.totalorder %s15, 0
    %p203 = por %p201, %p202
    %p204 = scmp.ne.s32.totalorder %s196, %s198
    %p205 = scmp.eq.s32.totalorder %s20, 1
    %p206 = por %p204, %p205
    %p207 = scmp.ne.s32.totalorder %s198, %s199
    %p208 = scmp.eq.s32.totalorder %s20, 0
    %p209 = por %p207, %p208
    %p210 = scmp.ne.s32.totalorder %s198, %s199
    %p211 = scmp.eq.s32.totalorder %s21, 1
    %p212 = por %p210, %p211
    %p214 = scmp.ne.s32.totalorder %s199, %s213
    %p215 = scmp.eq.s32.totalorder %s21, 0
    %p216 = por %p214, %p215
    %s217 = ssub.s32 %s15, %s22
    %p218 = scmp.eq.s32.totalorder %s217, 0
    %s220 = sadd.s32 %s219, 1
    %s221 = scalar_select %p218, %s219, %s220
    %p224 = pneg %p218
    %p225 = scmp.eq.s32.totalorder %s15, 1
    %p226 = por %p224, %p225
    %p227 = scmp.ne.s32.totalorder %s219, %s222
    %p228 = scmp.eq.s32.totalorder %s15, 0
    %p229 = por %p227, %p228
    %p230 = scmp.ne.s32.totalorder %s219, %s222
    %p231 = scmp.eq.s32.totalorder %s20, 1
    %p232 = por %p230, %p231
    %p233 = scmp.ne.s32.totalorder %s222, %s223
    %p234 = scmp.eq.s32.totalorder %s20, 0
    %p235 = por %p233, %p234
    %p236 = scmp.ne.s32.totalorder %s222, %s223
    %p237 = scmp.eq.s32.totalorder %s21, 1
    %p238 = por %p236, %p237
    %p240 = scmp.ne.s32.totalorder %s223, %s239
    %p241 = scmp.eq.s32.totalorder %s21, 0
    %p242 = por %p240, %p241
    %p243 = scmp.le.s32.totalorder 1, %s15
    %p244 = scmp.lt.s32.totalorder %s15, 3
    %p245 = pnand %p243, %p244
    %p246 = pneg %p245
    // Predicated region
    $region9: #{fwd.1} parent=5 // pred_check
      _
    $region10: #{fwd.1} parent=5 // pred_check_branch
      %248 = sbr.rel (%p245) target = $region12
    $region11: #{fwd.1} parent=5 // pred_region
      %s249 = ssub.s32 %s15, 1
      // Predicated region
      $region13: #{fwd.1} parent=11 // pred_check
        %p250 = pneg %p62
      $region14: #{fwd.1} parent=11 // pred_check_branch
        %252 = sbr.rel (%p250) target = $region16
      $region15: #{fwd.1} parent=11 // pred_region
        _
      $region16: #{fwd.1} parent=11 // pred_fallthru
        _
      // Predicated region
      $region17: #{fwd.1} parent=11 // pred_check
        %p253 = pneg %p83
      $region18: #{fwd.1} parent=11 // pred_check_branch
        %255 = sbr.rel (%p253) target = $region20
      $region19: #{fwd.1} parent=11 // pred_region
        _
      $region20: #{fwd.1} parent=11 // pred_fallthru
        _
      // Predicated region
      $region21: #{fwd.1} parent=11 // pred_check
        %p256 = pneg %p104
      $region22: #{fwd.1} parent=11 // pred_check_branch
        %258 = sbr.rel (%p256) target = $region24
      $region23: #{fwd.1} parent=11 // pred_region
        _
      $region24: #{fwd.1} parent=11 // pred_fallthru
        _
      // Predicated region
      $region25: #{fwd.1} parent=11 // pred_check
        %p259 = pneg %p125
      $region26: #{fwd.1} parent=11 // pred_check_branch
        %261 = sbr.rel (%p259) target = $region28
      $region27: #{fwd.1} parent=11 // pred_region
        _
      $region28: #{fwd.1} parent=11 // pred_fallthru
        _
      // Predicated region
      $region29: #{fwd.1} parent=11 // pred_check
        %p262 = pneg %p146
      $region30: #{fwd.1} parent=11 // pred_check_branch
        %264 = sbr.rel (%p262) target = $region32
      $region31: #{fwd.1} parent=11 // pred_region
        _
      $region32: #{fwd.1} parent=11 // pred_fallthru
        _
      // Predicated region
      $region33: #{fwd.1} parent=11 // pred_check
        %p265 = pneg %p167
      $region34: #{fwd.1} parent=11 // pred_check_branch
        %267 = sbr.rel (%p265) target = $region36
      $region35: #{fwd.1} parent=11 // pred_region
        _
      $region36: #{fwd.1} parent=11 // pred_fallthru
        _
      // Predicated region
      $region37: #{fwd.1} parent=11 // pred_check
        %p268 = pneg %p188
      $region38: #{fwd.1} parent=11 // pred_check_branch
        %270 = sbr.rel (%p268) target = $region40
      $region39: #{fwd.1} parent=11 // pred_region
        _
      $region40: #{fwd.1} parent=11 // pred_fallthru
        _
      // Predicated region
      $region41: #{fwd.1} parent=11 // pred_check
        %p271 = pneg %p209
      $region42: #{fwd.1} parent=11 // pred_check_branch
        %273 = sbr.rel (%p271) target = $region44
      $region43: #{fwd.1} parent=11 // pred_region
        _
      $region44: #{fwd.1} parent=11 // pred_fallthru
        _
    $region12: #{fwd.1} parent=5 // pred_fallthru
      _
    %p274 = scmp.lt.s32.totalorder %s15, 2
    // Predicated region
    $region45: #{fwd.1} parent=5 // pred_check
      %p275 = pneg %p274
    $region46: #{fwd.1} parent=5 // pred_check_branch
      %277 = sbr.rel (%p275) target = $region48
    $region47: #{fwd.1} parent=5 // pred_region
      // Predicated region
      $region49: #{fwd.1} parent=47 // pred_check
        %p278 = pneg %p35
      $region50: #{fwd.1} parent=47 // pred_check_branch
        %280 = sbr.rel (%p278) target = $region52
      $region51: #{fwd.1} parent=47 // pred_region
        %s281 = smul.u32 16, %s15
        %p282 = scmp.lt.s32.totalorder %s281, 31
        %s283 = scalar_select %p282, %s281, 31
        %s284 = smul.addr %s283, 8
        %s285 = scalar_lea.vmem %s0, %s284
        %s286 = smul.u32 16, %s15
      $region52: #{fwd.1} parent=47 // pred_fallthru
        _
    $region48: #{fwd.1} parent=5 // pred_fallthru
      _
    %p287 = scmp.le.s32.totalorder 1, %s15
    %p288 = scmp.lt.s32.totalorder %s15, 3
    %p289 = pnand %p287, %p288
    %p290 = pneg %p289
    // Predicated region
    $region53: #{fwd.1} parent=5 // pred_check
      _
    $region54: #{fwd.1} parent=5 // pred_check_branch
      %292 = sbr.rel (%p289) target = $region56
    $region55: #{fwd.1} parent=5 // pred_region
      %s293 = ssub.s32 %s15, 1
      %s294 = smul.u32 16, %s20
      %p295 = scmp.lt.s32.totalorder %s294, 31
      %s296 = scalar_select %p295, %s294, 31
      %s297 = smul.addr %s296, 8
      %s298 = scalar_lea.vmem %s0, %s297
      %p299 = pneg %p41
      %p300 = pneg %p38
      %p301 = pneg %p62
      %p302 = pneg %p59
      %p303 = pneg %p83
      %p304 = pneg %p80
      %p305 = pneg %p104
      %p306 = pneg %p101
      %p307 = pneg %p125
      %p308 = pneg %p122
      %p309 = pneg %p146
      %p310 = pneg %p143
      %p311 = pneg %p167
      %p312 = pneg %p164
      %p313 = pneg %p188
      %p314 = pneg %p185
      %p315 = pneg %p209
      %p316 = pneg %p206
      %p317 = pneg %p235
      %p318 = pneg %p232
      %s319 = smul.u32 16, %s20
      %p320 = scmp.lt.s32.totalorder %s319, 31
      %s321 = scalar_select %p320, %s319, 31
      %s322 = smul.addr %s321, 8
      %s323 = scalar_lea.vmem %s9, %s322
      %s324 = smul.u32 16, %s20
      %p325 = scmp.lt.s32.totalorder %s324, 31
      %s326 = scalar_select %p325, %s324, 31
      %s327 = smul.addr %s326, 8
      %s328 = scalar_lea.vmem %s0, %s327
      %s329 = smul.u32 16, %s20
      %s330 = smul.u32 16, %s20
      %p331 = scmp.lt.s32.totalorder %s330, 31
      %s332 = scalar_select %p331, %s330, 31
      %s333 = smul.addr %s332, 8
      %s334 = scalar_lea.vmem %s9, %s333
      %s335 = smul.u32 16, %s20
      %v336 = vld [vmem:[%s328] sm:$0xff]
      %v337 = vld [vmem:[%s328 + $0x8] sm:$0xff]
      %v338 = vld [vmem:[%s328 + $0x10] sm:$0xff]
      %v339 = vld [vmem:[%s328 + $0x18] sm:$0xff]
      %v340 = vld [vmem:[%s328 + $0x20] sm:$0xff]
      %v341 = vld [vmem:[%s328 + $0x28] sm:$0xff]
      %v342 = vld [vmem:[%s328 + $0x30] sm:$0xff]
      %v343 = vld [vmem:[%s328 + $0x38] sm:$0xff]
      %v344 = vld [vmem:[%s328 + $0x40] sm:$0xff]
      %v345 = vld [vmem:[%s328 + $0x48] sm:$0xff]
      %v346 = vld [vmem:[%s328 + $0x50] sm:$0xff]
      %v347 = vld [vmem:[%s328 + $0x58] sm:$0xff]
      %v348 = vld [vmem:[%s328 + $0x60] sm:$0xff]
      %v349 = vld [vmem:[%s328 + $0x68] sm:$0xff]
      %v350 = vld [vmem:[%s328 + $0x70] sm:$0xff]
      %v351 = vld [vmem:[%s328 + $0x78] sm:$0xff]
      %v352 = vld [vmem:[%s1] sm:$0xff]
      %v353 = vld [vmem:[%s1 + $0x8] sm:$0xff]
      %v354 = vld [vmem:[%s1 + $0x10] sm:$0xff]
      %v355 = vld [vmem:[%s1 + $0x18] sm:$0xff]
      %vm356 = vcmask 261120
      %v358 = vsel %vm356, %v336, 0
      %v361 = vsel %vm356, %v337, 0
      %v364 = vsel %vm356, %v338, 0
      %v367 = vsel %vm356, %v339, 0
      %v370 = vsel %vm356, %v340, 0
      %v373 = vsel %vm356, %v341, 0
      %v376 = vsel %vm356, %v342, 0
      %v379 = vsel %vm356, %v343, 0
      %v382 = vsel %vm356, %v344, 0
      %v385 = vsel %vm356, %v345, 0
      %v388 = vsel %vm356, %v346, 0
      %v391 = vsel %vm356, %v347, 0
      %v394 = vsel %vm356, %v348, 0
      %v397 = vsel %vm356, %v349, 0
      %v400 = vsel %vm356, %v350, 0
      %v403 = vsel %vm356, %v351, 0
      %405 = vmatprep.subr.mxu0 0.0
      %406 = vmatpush1.msra.mxu0 %v352
      %407 = vmatprep.subr.mxu0 0.0
      %408 = vmatpush1.msra.mxu0 %v353
      %409 = vmatprep.subr.mxu0 0.0
      %410 = vmatpush1.msra.mxu0 %v354
      %411 = vmatprep.subr.mxu0 0.0
      %412 = vmatpush1.msra.mxu0 %v355
      %413 = vmatprep.subr.mxu0 0.0
      %414 = vmatpush1.msra.mxu0 0.0
      %415 = vmatprep.subr.mxu0 0.0
      %416 = vmatpush1.msra.mxu0 0.0
      %417 = vmatprep.subr.mxu0 0.0
      %418 = vmatpush1.msra.mxu0 0.0
      %419 = vmatprep.subr.mxu0 0.0
      %420 = vmatpush1.msra.mxu0 0.0
      %421 = vmatprep.subr.mxu0 0.0
      %422 = vmatpush1.msra.mxu0 0.0
      %423 = vmatprep.subr.mxu0 0.0
      %424 = vmatpush1.msra.mxu0 0.0
      %425 = vmatprep.subr.mxu0 0.0
      %426 = vmatpush1.msra.mxu0 0.0
      %427 = vmatprep.subr.mxu0 0.0
      %428 = vmatpush1.msra.mxu0 0.0
      %429 = vmatprep.subr.mxu0 0.0
      %430 = vmatpush1.msra.mxu0 0.0
      %431 = vmatprep.subr.mxu0 0.0
      %432 = vmatpush1.msra.mxu0 0.0
      %433 = vmatprep.subr.mxu0 0.0
      %434 = vmatpush1.msra.mxu0 0.0
      %435 = vmatprep.subr.mxu0 0.0
      %436 = vmatpush1.msra.mxu0 0.0
      %437 = vmatprep.subr.mxu0 0.0
      %438 = vmatpush1.msra.mxu0 0.0
      %439 = vmatprep.subr.mxu0 0.0
      %440 = vmatpush1.msra.mxu0 0.0
      %441 = vmatprep.subr.mxu0 0.0
      %442 = vmatpush1.msra.mxu0 0.0
      %443 = vmatprep.subr.mxu0 0.0
      %444 = vmatpush1.msra.mxu0 0.0
      %445 = vmatprep.subr.mxu0 0.0
      %446 = vmatpush1.msra.mxu0 0.0
      %447 = vmatprep.subr.mxu0 0.0
      %448 = vmatpush1.msra.mxu0 0.0
      %449 = vmatprep.subr.mxu0 0.0
      %450 = vmatpush1.msra.mxu0 0.0
      %451 = vmatprep.subr.mxu0 0.0
      %452 = vmatpush1.msra.mxu0 0.0
      %453 = vmatprep.subr.mxu0 0.0
      %454 = vmatpush1.msra.mxu0 0.0
      %455 = vmatprep.subr.mxu0 0.0
      %456 = vmatpush1.msra.mxu0 0.0
      %457 = vmatprep.subr.mxu0 0.0
      %458 = vmatpush1.msra.mxu0 0.0
      %459 = vmatprep.subr.mxu0 0.0
      %460 = vmatpush1.msra.mxu0 0.0
      %461 = vmatprep.subr.mxu0 0.0
      %462 = vmatpush1.msra.mxu0 0.0
      %463 = vmatprep.subr.mxu0 0.0
      %464 = vmatpush1.msra.mxu0 0.0
      %465 = vmatprep.subr.mxu0 0.0
      %466 = vmatpush1.msra.mxu0 0.0
      %467 = vmatprep.subr.mxu0 0.0
      %468 = vmatpush1.msra.mxu0 0.0
      %469 = vmatprep.mubr.f32.mxu0 0.0
      %470 = vmatmul.mubr.f32.gmra.mrb[0].mxu0 %v358
      %v471 = vpop.f32.mrb[0].mxu0
      %v472 = vadd.f32 0.0, %v471
      %v473 = vpop.f32.mrb[0].mxu0
      %474 = vmatprep.mubr.f32.mxu0 0.0
      %475 = vmatmul.mubr.f32.gmra.mrb[0].mxu0 %v361
      %v476 = vpop.f32.mrb[0].mxu0
      %v477 = vadd.f32 0.0, %v476
      %v478 = vpop.f32.mrb[0].mxu0
      %479 = vmatprep.mubr.f32.mxu0 0.0
      %480 = vmatmul.mubr.f32.gmra.mrb[0].mxu0 %v364
      %v481 = vpop.f32.mrb[0].mxu0
      %v482 = vadd.f32 0.0, %v481
      %v483 = vpop.f32.mrb[0].mxu0
      %484 = vmatprep.mubr.f32.mxu0 0.0
      %485 = vmatmul.mubr.f32.gmra.mrb[0].mxu0 %v367
      %v486 = vpop.f32.mrb[0].mxu0
      %v487 = vadd.f32 0.0, %v486
      %v488 = vpop.f32.mrb[0].mxu0
      %489 = vmatprep.mubr.f32.mxu0 0.0
      %490 = vmatmul.mubr.f32.gmra.mrb[0].mxu0 %v370
      %v491 = vpop.f32.mrb[0].mxu0
      %v492 = vadd.f32 0.0, %v491
      %v493 = vpop.f32.mrb[0].mxu0
      %494 = vmatprep.mubr.f32.mxu0 0.0
      %495 = vmatmul.mubr.f32.gmra.mrb[0].mxu0 %v373
      %v496 = vpop.f32.mrb[0].mxu0
      %v497 = vadd.f32 0.0, %v496
      %v498 = vpop.f32.mrb[0].mxu0
      %499 = vmatprep.mubr.f32.mxu0 0.0
      %500 = vmatmul.mubr.f32.gmra.mrb[0].mxu0 %v376
      %v501 = vpop.f32.mrb[0].mxu0
      %v502 = vadd.f32 0.0, %v501
      %v503 = vpop.f32.mrb[0].mxu0
      %504 = vmatprep.mubr.f32.mxu0 0.0
      %505 = vmatmul.mubr.f32.gmra.mrb[0].mxu0 %v379
      %v506 = vpop.f32.mrb[0].mxu0
      %v507 = vadd.f32 0.0, %v506
      %v508 = vpop.f32.mrb[0].mxu0
      %509 = vmatprep.mubr.f32.mxu0 0.0
      %510 = vmatmul.mubr.f32.gmra.mrb[0].mxu0 %v382
      %v511 = vpop.f32.mrb[0].mxu0
      %v512 = vadd.f32 0.0, %v511
      %v513 = vpop.f32.mrb[0].mxu0
      %514 = vmatprep.mubr.f32.mxu0 0.0
      %515 = vmatmul.mubr.f32.gmra.mrb[0].mxu0 %v385
      %v516 = vpop.f32.mrb[0].mxu0
      %v517 = vadd.f32 0.0, %v516
      %v518 = vpop.f32.mrb[0].mxu0
      %519 = vmatprep.mubr.f32.mxu0 0.0
      %520 = vmatmul.mubr.f32.gmra.mrb[0].mxu0 %v388
      %v521 = vpop.f32.mrb[0].mxu0
      %v522 = vadd.f32 0.0, %v521
      %v523 = vpop.f32.mrb[0].mxu0
      %524 = vmatprep.mubr.f32.mxu0 0.0
      %525 = vmatmul.mubr.f32.gmra.mrb[0].mxu0 %v391
      %v526 = vpop.f32.mrb[0].mxu0
      %v527 = vadd.f32 0.0, %v526
      %v528 = vpop.f32.mrb[0].mxu0
      %529 = vmatprep.mubr.f32.mxu0 0.0
      %530 = vmatmul.mubr.f32.gmra.mrb[0].mxu0 %v394
      %v531 = vpop.f32.mrb[0].mxu0
      %v532 = vadd.f32 0.0, %v531
      %v533 = vpop.f32.mrb[0].mxu0
      %534 = vmatprep.mubr.f32.mxu0 0.0
      %535 = vmatmul.mubr.f32.gmra.mrb[0].mxu0 %v397
      %v536 = vpop.f32.mrb[0].mxu0
      %v537 = vadd.f32 0.0, %v536
      %v538 = vpop.f32.mrb[0].mxu0
      %539 = vmatprep.mubr.f32.mxu0 0.0
      %540 = vmatmul.mubr.f32.gmra.mrb[0].mxu0 %v400
      %v541 = vpop.f32.mrb[0].mxu0
      %v542 = vadd.f32 0.0, %v541
      %v543 = vpop.f32.mrb[0].mxu0
      %544 = vmatprep.mubr.f32.mxu0 0.0
      %545 = vmatmul.mubr.f32.gmra.mrb[0].mxu0 %v403
      %v546 = vpop.f32.mrb[0].mxu0
      %v547 = vadd.f32 0.0, %v546
      %v548 = vpop.f32.mrb[0].mxu0
      %549 = vdwg.mxu0
      %550 = vadd.xlane.f32.xlu0 %v472
      %v551 = vpop.xlane.xlu0 %550
      %552 = vadd.xlane.f32.xlu0 %v477
      %v553 = vpop.xlane.xlu0 %552
      %554 = vadd.xlane.f32.xlu0 %v482
      %v555 = vpop.xlane.xlu0 %554
      %556 = vadd.xlane.f32.xlu0 %v487
      %v557 = vpop.xlane.xlu0 %556
      %558 = vadd.xlane.f32.xlu0 %v492
      %v559 = vpop.xlane.xlu0 %558
      %560 = vadd.xlane.f32.xlu0 %v497
      %v561 = vpop.xlane.xlu0 %560
      %562 = vadd.xlane.f32.xlu0 %v502
      %v563 = vpop.xlane.xlu0 %562
      %564 = vadd.xlane.f32.xlu0 %v507
      %v565 = vpop.xlane.xlu0 %564
      %566 = vadd.xlane.f32.xlu0 %v512
      %v567 = vpop.xlane.xlu0 %566
      %568 = vadd.xlane.f32.xlu0 %v517
      %v569 = vpop.xlane.xlu0 %568
      %570 = vadd.xlane.f32.xlu0 %v522
      %v571 = vpop.xlane.xlu0 %570
      %572 = vadd.xlane.f32.xlu0 %v527
      %v573 = vpop.xlane.xlu0 %572
      %574 = vadd.xlane.f32.xlu0 %v532
      %v575 = vpop.xlane.xlu0 %574
      %576 = vadd.xlane.f32.xlu0 %v537
      %v577 = vpop.xlane.xlu0 %576
      %578 = vadd.xlane.f32.xlu0 %v542
      %v579 = vpop.xlane.xlu0 %578
      %580 = vadd.xlane.f32.xlu0 %v547
      %v581 = vpop.xlane.xlu0 %580
      %v582 = vmul.f32 %v472, %v472
      %v583 = vmul.f32 %v477, %v477
      %v584 = vmul.f32 %v482, %v482
      %v585 = vmul.f32 %v487, %v487
      %v586 = vmul.f32 %v492, %v492
      %v587 = vmul.f32 %v497, %v497
      %v588 = vmul.f32 %v502, %v502
      %v589 = vmul.f32 %v507, %v507
      %v590 = vmul.f32 %v512, %v512
      %v591 = vmul.f32 %v517, %v517
      %v592 = vmul.f32 %v522, %v522
      %v593 = vmul.f32 %v527, %v527
      %v594 = vmul.f32 %v532, %v532
      %v595 = vmul.f32 %v537, %v537
      %v596 = vmul.f32 %v542, %v542
      %v597 = vmul.f32 %v547, %v547
      %598 = vadd.xlane.f32.xlu0 %v582
      %v599 = vpop.xlane.xlu0 %598
      %600 = vadd.xlane.f32.xlu0 %v583
      %v601 = vpop.xlane.xlu0 %600
      %602 = vadd.xlane.f32.xlu0 %v584
      %v603 = vpop.xlane.xlu0 %602
      %604 = vadd.xlane.f32.xlu0 %v585
      %v605 = vpop.xlane.xlu0 %604
      %606 = vadd.xlane.f32.xlu0 %v586
      %v607 = vpop.xlane.xlu0 %606
      %608 = vadd.xlane.f32.xlu0 %v587
      %v609 = vpop.xlane.xlu0 %608
      %610 = vadd.xlane.f32.xlu0 %v588
      %v611 = vpop.xlane.xlu0 %610
      %612 = vadd.xlane.f32.xlu0 %v589
      %v613 = vpop.xlane.xlu0 %612
      %614 = vadd.xlane.f32.xlu0 %v590
      %v615 = vpop.xlane.xlu0 %614
      %616 = vadd.xlane.f32.xlu0 %v591
      %v617 = vpop.xlane.xlu0 %616
      %618 = vadd.xlane.f32.xlu0 %v592
      %v619 = vpop.xlane.xlu0 %618
      %620 = vadd.xlane.f32.xlu0 %v593
      %v621 = vpop.xlane.xlu0 %620
      %622 = vadd.xlane.f32.xlu0 %v594
      %v623 = vpop.xlane.xlu0 %622
      %624 = vadd.xlane.f32.xlu0 %v595
      %v625 = vpop.xlane.xlu0 %624
      %626 = vadd.xlane.f32.xlu0 %v596
      %v627 = vpop.xlane.xlu0 %626
      %628 = vadd.xlane.f32.xlu0 %v597
      %v629 = vpop.xlane.xlu0 %628
      %v630 = vmul.f32 %v551, 0.03125
      %v631 = vmul.f32 %v553, 0.03125
      %v632 = vmul.f32 %v555, 0.03125
      %v633 = vmul.f32 %v557, 0.03125
      %v634 = vmul.f32 %v559, 0.03125
      %v635 = vmul.f32 %v561, 0.03125
      %v636 = vmul.f32 %v563, 0.03125
      %v637 = vmul.f32 %v565, 0.03125
      %v638 = vmul.f32 %v567, 0.03125
      %v639 = vmul.f32 %v569, 0.03125
      %v640 = vmul.f32 %v571, 0.03125
      %v641 = vmul.f32 %v573, 0.03125
      %v642 = vmul.f32 %v575, 0.03125
      %v643 = vmul.f32 %v577, 0.03125
      %v644 = vmul.f32 %v579, 0.03125
      %v645 = vmul.f32 %v581, 0.03125
      %v646 = vmul.f32 %v599, 0.03125
      %v647 = vmul.f32 %v601, 0.03125
      %v648 = vmul.f32 %v603, 0.03125
      %v649 = vmul.f32 %v605, 0.03125
      %v650 = vmul.f32 %v607, 0.03125
      %v651 = vmul.f32 %v609, 0.03125
      %v652 = vmul.f32 %v611, 0.03125
      %v653 = vmul.f32 %v613, 0.03125
      %v654 = vmul.f32 %v615, 0.03125
      %v655 = vmul.f32 %v617, 0.03125
      %v656 = vmul.f32 %v619, 0.03125
      %v657 = vmul.f32 %v621, 0.03125
      %v658 = vmul.f32 %v623, 0.03125
      %v659 = vmul.f32 %v625, 0.03125
      %v660 = vmul.f32 %v627, 0.03125
      %v661 = vmul.f32 %v629, 0.03125
      %v662 = vmul.f32 %v630, %v630
      %v663 = vmul.f32 %v631, %v631
      %v664 = vmul.f32 %v632, %v632
      %v665 = vmul.f32 %v633, %v633
      %v666 = vmul.f32 %v634, %v634
      %v667 = vmul.f32 %v635, %v635
      %v668 = vmul.f32 %v636, %v636
      %v669 = vmul.f32 %v637, %v637
      %v670 = vmul.f32 %v638, %v638
      %v671 = vmul.f32 %v639, %v639
      %v672 = vmul.f32 %v640, %v640
      %v673 = vmul.f32 %v641, %v641
      %v674 = vmul.f32 %v642, %v642
      %v675 = vmul.f32 %v643, %v643
      %v676 = vmul.f32 %v644, %v644
      %v677 = vmul.f32 %v645, %v645
      %v678 = vsub.f32 %v646, %v662
      %v679 = vsub.f32 %v647, %v663
      %v680 = vsub.f32 %v648, %v664
      %v681 = vsub.f32 %v649, %v665
      %v682 = vsub.f32 %v650, %v666
      %v683 = vsub.f32 %v651, %v667
      %v684 = vsub.f32 %v652, %v668
      %v685 = vsub.f32 %v653, %v669
      %v686 = vsub.f32 %v654, %v670
      %v687 = vsub.f32 %v655, %v671
      %v688 = vsub.f32 %v656, %v672
      %v689 = vsub.f32 %v657, %v673
      %v690 = vsub.f32 %v658, %v674
      %v691 = vsub.f32 %v659, %v675
      %v692 = vsub.f32 %v660, %v676
      %v693 = vsub.f32 %v661, %v677
      %v694 = vmax.f32 %v678, 0.0
      %v695 = vmax.f32 %v679, 0.0
      %v696 = vmax.f32 %v680, 0.0
      %v697 = vmax.f32 %v681, 0.0
      %v698 = vmax.f32 %v682, 0.0
      %v699 = vmax.f32 %v683, 0.0
      %v700 = vmax.f32 %v684, 0.0
      %v701 = vmax.f32 %v685, 0.0
      %v702 = vmax.f32 %v686, 0.0
      %v703 = vmax.f32 %v687, 0.0
      %v704 = vmax.f32 %v688, 0.0
      %v705 = vmax.f32 %v689, 0.0
      %v706 = vmax.f32 %v690, 0.0
      %v707 = vmax.f32 %v691, 0.0
      %v708 = vmax.f32 %v692, 0.0
      %v709 = vmax.f32 %v693, 0.0
      %v710 = vsub.f32 %v472, %v630
      %v711 = vsub.f32 %v477, %v631
      %v712 = vsub.f32 %v482, %v632
      %v713 = vsub.f32 %v487, %v633
      %v714 = vsub.f32 %v492, %v634
      %v715 = vsub.f32 %v497, %v635
      %v716 = vsub.f32 %v502, %v636
      %v717 = vsub.f32 %v507, %v637
      %v718 = vsub.f32 %v512, %v638
      %v719 = vsub.f32 %v517, %v639
      %v720 = vsub.f32 %v522, %v640
      %v721 = vsub.f32 %v527, %v641
      %v722 = vsub.f32 %v532, %v642
      %v723 = vsub.f32 %v537, %v643
      %v724 = vsub.f32 %v542, %v644
      %v725 = vsub.f32 %v547, %v645
      %v726 = vadd.f32 %v694, 1e-05
      %v727 = vadd.f32 %v695, 1e-05
      %v728 = vadd.f32 %v696, 1e-05
      %v729 = vadd.f32 %v697, 1e-05
      %v730 = vadd.f32 %v698, 1e-05
      %v731 = vadd.f32 %v699, 1e-05
      %v732 = vadd.f32 %v700, 1e-05
      %v733 = vadd.f32 %v701, 1e-05
      %v734 = vadd.f32 %v702, 1e-05
      %v735 = vadd.f32 %v703, 1e-05
      %v736 = vadd.f32 %v704, 1e-05
      %v737 = vadd.f32 %v705, 1e-05
      %v738 = vadd.f32 %v706, 1e-05
      %v739 = vadd.f32 %v707, 1e-05
      %v740 = vadd.f32 %v708, 1e-05
      %v741 = vadd.f32 %v709, 1e-05
      %v742 = vrsqrt.pop %v726
      %v743 = vrsqrt.pop %v727
      %v744 = vrsqrt.pop %v728
      %v745 = vrsqrt.pop %v729
      %v746 = vrsqrt.pop %v730
      %v747 = vrsqrt.pop %v731
      %v748 = vrsqrt.pop %v732
      %v749 = vrsqrt.pop %v733
      %v750 = vrsqrt.pop %v734
      %v751 = vrsqrt.pop %v735
      %v752 = vrsqrt.pop %v736
      %v753 = vrsqrt.pop %v737
      %v754 = vrsqrt.pop %v738
      %v755 = vrsqrt.pop %v739
      %v756 = vrsqrt.pop %v740
      %v757 = vrsqrt.pop %v741
      %v758 = vmul.f32 %v710, %v742
      %v759 = vmul.f32 %v711, %v743
      %v760 = vmul.f32 %v712, %v744
      %v761 = vmul.f32 %v713, %v745
      %v762 = vmul.f32 %v714, %v746
      %v763 = vmul.f32 %v715, %v747
      %v764 = vmul.f32 %v716, %v748
      %v765 = vmul.f32 %v717, %v749
      %v766 = vmul.f32 %v718, %v750
      %v767 = vmul.f32 %v719, %v751
      %v768 = vmul.f32 %v720, %v752
      %v769 = vmul.f32 %v721, %v753
      %v770 = vmul.f32 %v722, %v754
      %v771 = vmul.f32 %v723, %v755
      %v772 = vmul.f32 %v724, %v756
      %v773 = vmul.f32 %v725, %v757
      %v774 = vld [vmem:[%s2] sm:$0x1]
      %v776 = vlaneseq
      %v777 = vshrl.u32 %v776, 7
      %v778 = vsub.s32 0, %v777
      %v779 = vrot.slane %v774, %v778
      %v781 = vmul.f32 %v758, %v779
      %v782 = vmul.f32 %v759, %v779
      %v783 = vmul.f32 %v760, %v779
      %v784 = vmul.f32 %v761, %v779
      %v785 = vmul.f32 %v762, %v779
      %v786 = vmul.f32 %v763, %v779
      %v787 = vmul.f32 %v764, %v779
      %v788 = vmul.f32 %v765, %v779
      %v789 = vmul.f32 %v766, %v779
      %v790 = vmul.f32 %v767, %v779
      %v791 = vmul.f32 %v768, %v779
      %v792 = vmul.f32 %v769, %v779
      %v793 = vmul.f32 %v770, %v779
      %v794 = vmul.f32 %v771, %v779
      %v795 = vmul.f32 %v772, %v779
      %v796 = vmul.f32 %v773, %v779
      %v797 = vld [vmem:[%s3] sm:$0x1]
      %v799 = vlaneseq
      %v800 = vshrl.u32 %v799, 7
      %v801 = vsub.s32 0, %v800
      %v802 = vrot.slane %v797, %v801
      %v804 = vadd.f32 %v781, %v802
      %v805 = vadd.f32 %v782, %v802
      %v806 = vadd.f32 %v783, %v802
      %v807 = vadd.f32 %v784, %v802
      %v808 = vadd.f32 %v785, %v802
      %v809 = vadd.f32 %v786, %v802
      %v810 = vadd.f32 %v787, %v802
      %v811 = vadd.f32 %v788, %v802
      %v812 = vadd.f32 %v789, %v802
      %v813 = vadd.f32 %v790, %v802
      %v814 = vadd.f32 %v791, %v802
      %v815 = vadd.f32 %v792, %v802
      %v816 = vadd.f32 %v793, %v802
      %v817 = vadd.f32 %v794, %v802
      %v818 = vadd.f32 %v795, %v802
      %v819 = vadd.f32 %v796, %v802
      %v820 = vmax.f32 %v804, 0.0
      %v821 = vmax.f32 %v805, 0.0
      %v822 = vmax.f32 %v806, 0.0
      %v823 = vmax.f32 %v807, 0.0
      %v824 = vmax.f32 %v808, 0.0
      %v825 = vmax.f32 %v809, 0.0
      %v826 = vmax.f32 %v810, 0.0
      %v827 = vmax.f32 %v811, 0.0
      %v828 = vmax.f32 %v812, 0.0
      %v829 = vmax.f32 %v813, 0.0
      %v830 = vmax.f32 %v814, 0.0
      %v831 = vmax.f32 %v815, 0.0
      %v832 = vmax.f32 %v816, 0.0
      %v833 = vmax.f32 %v817, 0.0
      %v834 = vmax.f32 %v818, 0.0
      %v835 = vmax.f32 %v819, 0.0
      %v836 = vld [vmem:[%s4] sm:$0xff]
      %v837 = vld [vmem:[%s4 + $0x8] sm:$0xff]
      %v838 = vld [vmem:[%s4 + $0x10] sm:$0xff]
      %v839 = vld [vmem:[%s4 + $0x18] sm:$0xff]
      %v840 = vld [vmem:[%s4 + $0x20] sm:$0xff]
      %v841 = vld [vmem:[%s4 + $0x28] sm:$0xff]
      %v842 = vld [vmem:[%s4 + $0x30] sm:$0xff]
      %v843 = vld [vmem:[%s4 + $0x38] sm:$0xff]
      %v844 = vld [vmem:[%s4 + $0x40] sm:$0xff]
      %v845 = vld [vmem:[%s4 + $0x48] sm:$0xff]
      %v846 = vld [vmem:[%s4 + $0x50] sm:$0xff]
      %v847 = vld [vmem:[%s4 + $0x58] sm:$0xff]
      %v848 = vld [vmem:[%s4 + $0x60] sm:$0xff]
      %v849 = vld [vmem:[%s4 + $0x68] sm:$0xff]
      %v850 = vld [vmem:[%s4 + $0x70] sm:$0xff]
      %v851 = vld [vmem:[%s4 + $0x78] sm:$0xff]
      %852 = vmatprep.subr.mxu0 0.0
      %853 = vmatpush1.msra.mxu0 %v836
      %854 = vmatprep.subr.mxu0 0.0
      %855 = vmatpush1.msra.mxu0 %v837
      %856 = vmatprep.subr.mxu0 0.0
      %857 = vmatpush1.msra.mxu0 %v838
      %858 = vmatprep.subr.mxu0 0.0
      %859 = vmatpush1.msra.mxu0 %v839
      %860 = vmatprep.subr.mxu0 0.0
      %861 = vmatpush1.msra.mxu0 %v840
      %862 = vmatprep.subr.mxu0 0.0
      %863 = vmatpush1.msra.mxu0 %v841
      %864 = vmatprep.subr.mxu0 0.0
      %865 = vmatpush1.msra.mxu0 %v842
      %866 = vmatprep.subr.mxu0 0.0
      %867 = vmatpush1.msra.mxu0 %v843
      %868 = vmatprep.subr.mxu0 0.0
      %869 = vmatpush1.msra.mxu0 %v844
      %870 = vmatprep.subr.mxu0 0.0
      %871 = vmatpush1.msra.mxu0 %v845
      %872 = vmatprep.subr.mxu0 0.0
      %873 = vmatpush1.msra.mxu0 %v846
      %874 = vmatprep.subr.mxu0 0.0
      %875 = vmatpush1.msra.mxu0 %v847
      %876 = vmatprep.subr.mxu0 0.0
      %877 = vmatpush1.msra.mxu0 %v848
      %878 = vmatprep.subr.mxu0 0.0
      %879 = vmatpush1.msra.mxu0 %v849
      %880 = vmatprep.subr.mxu0 0.0
      %881 = vmatpush1.msra.mxu0 %v850
      %882 = vmatprep.subr.mxu0 0.0
      %883 = vmatpush1.msra.mxu0 %v851
      %884 = vmatprep.subr.mxu0 0.0
      %885 = vmatpush1.msra.mxu0 0.0
      %886 = vmatprep.subr.mxu0 0.0
      %887 = vmatpush1.msra.mxu0 0.0
      %888 = vmatprep.subr.mxu0 0.0
      %889 = vmatpush1.msra.mxu0 0.0
      %890 = vmatprep.subr.mxu0 0.0
      %891 = vmatpush1.msra.mxu0 0.0
      %892 = vmatprep.subr.mxu0 0.0
      %893 = vmatpush1.msra.mxu0 0.0
      %894 = vmatprep.subr.mxu0 0.0
      %895 = vmatpush1.msra.mxu0 0.0
      %896 = vmatprep.subr.mxu0 0.0
      %897 = vmatpush1.msra.mxu0 0.0
      %898 = vmatprep.subr.mxu0 0.0
      %899 = vmatpush1.msra.mxu0 0.0
      %900 = vmatprep.subr.mxu0 0.0
      %901 = vmatpush1.msra.mxu0 0.0
      %902 = vmatprep.subr.mxu0 0.0
      %903 = vmatpush1.msra.mxu0 0.0
      %904 = vmatprep.subr.mxu0 0.0
      %905 = vmatpush1.msra.mxu0 0.0
      %906 = vmatprep.subr.mxu0 0.0
      %907 = vmatpush1.msra.mxu0 0.0
      %908 = vmatprep.subr.mxu0 0.0
      %909 = vmatpush1.msra.mxu0 0.0
      %910 = vmatprep.subr.mxu0 0.0
      %911 = vmatpush1.msra.mxu0 0.0
      %912 = vmatprep.subr.mxu0 0.0
      %913 = vmatpush1.msra.mxu0 0.0
      %914 = vmatprep.subr.mxu0 0.0
      %915 = vmatpush1.msra.mxu0 0.0
      %916 = vmatprep.mubr.f32.mxu0 0.0
      %917 = vmatmul.mubr.f32.gmra.mrb[0].mxu0 %v820
      %v918 = vpop.f32.mrb[0].mxu0
      %v919 = vadd.f32 0.0, %v918
      %v920 = vpop.f32.mrb[0].mxu0
      %921 = vmatprep.mubr.f32.mxu0 0.0
      %922 = vmatmul.mubr.f32.gmra.mrb[0].mxu0 %v821
      %v923 = vpop.f32.mrb[0].mxu0
      %v924 = vadd.f32 0.0, %v923
      %v925 = vpop.f32.mrb[0].mxu0
      %926 = vmatprep.mubr.f32.mxu0 0.0
      %927 = vmatmul.mubr.f32.gmra.mrb[0].mxu0 %v822
      %v928 = vpop.f32.mrb[0].mxu0
      %v929 = vadd.f32 0.0, %v928
      %v930 = vpop.f32.mrb[0].mxu0
      %931 = vmatprep.mubr.f32.mxu0 0.0
      %932 = vmatmul.mubr.f32.gmra.mrb[0].mxu0 %v823
      %v933 = vpop.f32.mrb[0].mxu0
      %v934 = vadd.f32 0.0, %v933
      %v935 = vpop.f32.mrb[0].mxu0
      %936 = vmatprep.mubr.f32.mxu0 0.0
      %937 = vmatmul.mubr.f32.gmra.mrb[0].mxu0 %v824
      %v938 = vpop.f32.mrb[0].mxu0
      %v939 = vadd.f32 0.0, %v938
      %v940 = vpop.f32.mrb[0].mxu0
      %941 = vmatprep.mubr.f32.mxu0 0.0
      %942 = vmatmul.mubr.f32.gmra.mrb[0].mxu0 %v825
      %v943 = vpop.f32.mrb[0].mxu0
      %v944 = vadd.f32 0.0, %v943
      %v945 = vpop.f32.mrb[0].mxu0
      %946 = vmatprep.mubr.f32.mxu0 0.0
      %947 = vmatmul.mubr.f32.gmra.mrb[0].mxu0 %v826
      %v948 = vpop.f32.mrb[0].mxu0
      %v949 = vadd.f32 0.0, %v948
      %v950 = vpop.f32.mrb[0].mxu0
      %951 = vmatprep.mubr.f32.mxu0 0.0
      %952 = vmatmul.mubr.f32.gmra.mrb[0].mxu0 %v827
      %v953 = vpop.f32.mrb[0].mxu0
      %v954 = vadd.f32 0.0, %v953
      %v955 = vpop.f32.mrb[0].mxu0
      %956 = vmatprep.mubr.f32.mxu0 0.0
      %957 = vmatmul.mubr.f32.gmra.mrb[0].mxu0 %v828
      %v958 = vpop.f32.mrb[0].mxu0
      %v959 = vadd.f32 0.0, %v958
      %v960 = vpop.f32.mrb[0].mxu0
      %961 = vmatprep.mubr.f32.mxu0 0.0
      %962 = vmatmul.mubr.f32.gmra.mrb[0].mxu0 %v829
      %v963 = vpop.f32.mrb[0].mxu0
      %v964 = vadd.f32 0.0, %v963
      %v965 = vpop.f32.mrb[0].mxu0
      %966 = vmatprep.mubr.f32.mxu0 0.0
      %967 = vmatmul.mubr.f32.gmra.mrb[0].mxu0 %v830
      %v968 = vpop.f32.mrb[0].mxu0
      %v969 = vadd.f32 0.0, %v968
      %v970 = vpop.f32.mrb[0].mxu0
      %971 = vmatprep.mubr.f32.mxu0 0.0
      %972 = vmatmul.mubr.f32.gmra.mrb[0].mxu0 %v831
      %v973 = vpop.f32.mrb[0].mxu0
      %v974 = vadd.f32 0.0, %v973
      %v975 = vpop.f32.mrb[0].mxu0
      %976 = vmatprep.mubr.f32.mxu0 0.0
      %977 = vmatmul.mubr.f32.gmra.mrb[0].mxu0 %v832
      %v978 = vpop.f32.mrb[0].mxu0
      %v979 = vadd.f32 0.0, %v978
      %v980 = vpop.f32.mrb[0].mxu0
      %981 = vmatprep.mubr.f32.mxu0 0.0
      %982 = vmatmul.mubr.f32.gmra.mrb[0].mxu0 %v833
      %v983 = vpop.f32.mrb[0].mxu0
      %v984 = vadd.f32 0.0, %v983
      %v985 = vpop.f32.mrb[0].mxu0
      %986 = vmatprep.mubr.f32.mxu0 0.0
      %987 = vmatmul.mubr.f32.gmra.mrb[0].mxu0 %v834
      %v988 = vpop.f32.mrb[0].mxu0
      %v989 = vadd.f32 0.0, %v988
      %v990 = vpop.f32.mrb[0].mxu0
      %991 = vmatprep.mubr.f32.mxu0 0.0
      %992 = vmatmul.mubr.f32.gmra.mrb[0].mxu0 %v835
      %v993 = vpop.f32.mrb[0].mxu0
      %v994 = vadd.f32 0.0, %v993
      %v995 = vpop.f32.mrb[0].mxu0
      %996 = vdwg.mxu0
      %997 = vadd.xlane.f32.xlu0 %v919
      %v998 = vpop.xlane.xlu0 %997
      %999 = vadd.xlane.f32.xlu0 %v924
      %v1000 = vpop.xlane.xlu0 %999
      %1001 = vadd.xlane.f32.xlu0 %v929
      %v1002 = vpop.xlane.xlu0 %1001
      %1003 = vadd.xlane.f32.xlu0 %v934
      %v1004 = vpop.xlane.xlu0 %1003
      %1005 = vadd.xlane.f32.xlu0 %v939
      %v1006 = vpop.xlane.xlu0 %1005
      %1007 = vadd.xlane.f32.xlu0 %v944
      %v1008 = vpop.xlane.xlu0 %1007
      %1009 = vadd.xlane.f32.xlu0 %v949
      %v1010 = vpop.xlane.xlu0 %1009
      %1011 = vadd.xlane.f32.xlu0 %v954
      %v1012 = vpop.xlane.xlu0 %1011
      %1013 = vadd.xlane.f32.xlu0 %v959
      %v1014 = vpop.xlane.xlu0 %1013
      %1015 = vadd.xlane.f32.xlu0 %v964
      %v1016 = vpop.xlane.xlu0 %1015
      %1017 = vadd.xlane.f32.xlu0 %v969
      %v1018 = vpop.xlane.xlu0 %1017
      %1019 = vadd.xlane.f32.xlu0 %v974
      %v1020 = vpop.xlane.xlu0 %1019
      %1021 = vadd.xlane.f32.xlu0 %v979
      %v1022 = vpop.xlane.xlu0 %1021
      %1023 = vadd.xlane.f32.xlu0 %v984
      %v1024 = vpop.xlane.xlu0 %1023
      %1025 = vadd.xlane.f32.xlu0 %v989
      %v1026 = vpop.xlane.xlu0 %1025
      %1027 = vadd.xlane.f32.xlu0 %v994
      %v1028 = vpop.xlane.xlu0 %1027
      %v1029 = vmul.f32 %v919, %v919
      %v1030 = vmul.f32 %v924, %v924
      %v1031 = vmul.f32 %v929, %v929
      %v1032 = vmul.f32 %v934, %v934
      %v1033 = vmul.f32 %v939, %v939
      %v1034 = vmul.f32 %v944, %v944
      %v1035 = vmul.f32 %v949, %v949
      %v1036 = vmul.f32 %v954, %v954
      %v1037 = vmul.f32 %v959, %v959
      %v1038 = vmul.f32 %v964, %v964
      %v1039 = vmul.f32 %v969, %v969
      %v1040 = vmul.f32 %v974, %v974
      %v1041 = vmul.f32 %v979, %v979
      %v1042 = vmul.f32 %v984, %v984
      %v1043 = vmul.f32 %v989, %v989
      %v1044 = vmul.f32 %v994, %v994
      %1045 = vadd.xlane.f32.xlu0 %v1029
      %v1046 = vpop.xlane.xlu0 %1045
      %1047 = vadd.xlane.f32.xlu0 %v1030
      %v1048 = vpop.xlane.xlu0 %1047
      %1049 = vadd.xlane.f32.xlu0 %v1031
      %v1050 = vpop.xlane.xlu0 %1049
      %1051 = vadd.xlane.f32.xlu0 %v1032
      %v1052 = vpop.xlane.xlu0 %1051
      %1053 = vadd.xlane.f32.xlu0 %v1033
      %v1054 = vpop.xlane.xlu0 %1053
      %1055 = vadd.xlane.f32.xlu0 %v1034
      %v1056 = vpop.xlane.xlu0 %1055
      %1057 = vadd.xlane.f32.xlu0 %v1035
      %v1058 = vpop.xlane.xlu0 %1057
      %1059 = vadd.xlane.f32.xlu0 %v1036
      %v1060 = vpop.xlane.xlu0 %1059
      %1061 = vadd.xlane.f32.xlu0 %v1037
      %v1062 = vpop.xlane.xlu0 %1061
      %1063 = vadd.xlane.f32.xlu0 %v1038
      %v1064 = vpop.xlane.xlu0 %1063
      %1065 = vadd.xlane.f32.xlu0 %v1039
      %v1066 = vpop.xlane.xlu0 %1065
      %1067 = vadd.xlane.f32.xlu0 %v1040
      %v1068 = vpop.xlane.xlu0 %1067
      %1069 = vadd.xlane.f32.xlu0 %v1041
      %v1070 = vpop.xlane.xlu0 %1069
      %1071 = vadd.xlane.f32.xlu0 %v1042
      %v1072 = vpop.xlane.xlu0 %1071
      %1073 = vadd.xlane.f32.xlu0 %v1043
      %v1074 = vpop.xlane.xlu0 %1073
      %1075 = vadd.xlane.f32.xlu0 %v1044
      %v1076 = vpop.xlane.xlu0 %1075
      %v1077 = vmul.f32 %v998, 0.03125
      %v1078 = vmul.f32 %v1000, 0.03125
      %v1079 = vmul.f32 %v1002, 0.03125
      %v1080 = vmul.f32 %v1004, 0.03125
      %v1081 = vmul.f32 %v1006, 0.03125
      %v1082 = vmul.f32 %v1008, 0.03125
      %v1083 = vmul.f32 %v1010, 0.03125
      %v1084 = vmul.f32 %v1012, 0.03125
      %v1085 = vmul.f32 %v1014, 0.03125
      %v1086 = vmul.f32 %v1016, 0.03125
      %v1087 = vmul.f32 %v1018, 0.03125
      %v1088 = vmul.f32 %v1020, 0.03125
      %v1089 = vmul.f32 %v1022, 0.03125
      %v1090 = vmul.f32 %v1024, 0.03125
      %v1091 = vmul.f32 %v1026, 0.03125
      %v1092 = vmul.f32 %v1028, 0.03125
      %v1093 = vmul.f32 %v1046, 0.03125
      %v1094 = vmul.f32 %v1048, 0.03125
      %v1095 = vmul.f32 %v1050, 0.03125
      %v1096 = vmul.f32 %v1052, 0.03125
      %v1097 = vmul.f32 %v1054, 0.03125
      %v1098 = vmul.f32 %v1056, 0.03125
      %v1099 = vmul.f32 %v1058, 0.03125
      %v1100 = vmul.f32 %v1060, 0.03125
      %v1101 = vmul.f32 %v1062, 0.03125
      %v1102 = vmul.f32 %v1064, 0.03125
      %v1103 = vmul.f32 %v1066, 0.03125
      %v1104 = vmul.f32 %v1068, 0.03125
      %v1105 = vmul.f32 %v1070, 0.03125
      %v1106 = vmul.f32 %v1072, 0.03125
      %v1107 = vmul.f32 %v1074, 0.03125
      %v1108 = vmul.f32 %v1076, 0.03125
      %v1109 = vmul.f32 %v1077, %v1077
      %v1110 = vmul.f32 %v1078, %v1078
      %v1111 = vmul.f32 %v1079, %v1079
      %v1112 = vmul.f32 %v1080, %v1080
      %v1113 = vmul.f32 %v1081, %v1081
      %v1114 = vmul.f32 %v1082, %v1082
      %v1115 = vmul.f32 %v1083, %v1083
      %v1116 = vmul.f32 %v1084, %v1084
      %v1117 = vmul.f32 %v1085, %v1085
      %v1118 = vmul.f32 %v1086, %v1086
      %v1119 = vmul.f32 %v1087, %v1087
      %v1120 = vmul.f32 %v1088, %v1088
      %v1121 = vmul.f32 %v1089, %v1089
      %v1122 = vmul.f32 %v1090, %v1090
      %v1123 = vmul.f32 %v1091, %v1091
      %v1124 = vmul.f32 %v1092, %v1092
      %v1125 = vsub.f32 %v1093, %v1109
      %v1126 = vsub.f32 %v1094, %v1110
      %v1127 = vsub.f32 %v1095, %v1111
      %v1128 = vsub.f32 %v1096, %v1112
      %v1129 = vsub.f32 %v1097, %v1113
      %v1130 = vsub.f32 %v1098, %v1114
      %v1131 = vsub.f32 %v1099, %v1115
      %v1132 = vsub.f32 %v1100, %v1116
      %v1133 = vsub.f32 %v1101, %v1117
      %v1134 = vsub.f32 %v1102, %v1118
      %v1135 = vsub.f32 %v1103, %v1119
      %v1136 = vsub.f32 %v1104, %v1120
      %v1137 = vsub.f32 %v1105, %v1121
      %v1138 = vsub.f32 %v1106, %v1122
      %v1139 = vsub.f32 %v1107, %v1123
      %v1140 = vsub.f32 %v1108, %v1124
      %v1141 = vmax.f32 %v1125, 0.0
      %v1142 = vmax.f32 %v1126, 0.0
      %v1143 = vmax.f32 %v1127, 0.0
      %v1144 = vmax.f32 %v1128, 0.0
      %v1145 = vmax.f32 %v1129, 0.0
      %v1146 = vmax.f32 %v1130, 0.0
      %v1147 = vmax.f32 %v1131, 0.0
      %v1148 = vmax.f32 %v1132, 0.0
      %v1149 = vmax.f32 %v1133, 0.0
      %v1150 = vmax.f32 %v1134, 0.0
      %v1151 = vmax.f32 %v1135, 0.0
      %v1152 = vmax.f32 %v1136, 0.0
      %v1153 = vmax.f32 %v1137, 0.0
      %v1154 = vmax.f32 %v1138, 0.0
      %v1155 = vmax.f32 %v1139, 0.0
      %v1156 = vmax.f32 %v1140, 0.0
      %v1157 = vsub.f32 %v919, %v1077
      %v1158 = vsub.f32 %v924, %v1078
      %v1159 = vsub.f32 %v929, %v1079
      %v1160 = vsub.f32 %v934, %v1080
      %v1161 = vsub.f32 %v939, %v1081
      %v1162 = vsub.f32 %v944, %v1082
      %v1163 = vsub.f32 %v949, %v1083
      %v1164 = vsub.f32 %v954, %v1084
      %v1165 = vsub.f32 %v959, %v1085
      %v1166 = vsub.f32 %v964, %v1086
      %v1167 = vsub.f32 %v969, %v1087
      %v1168 = vsub.f32 %v974, %v1088
      %v1169 = vsub.f32 %v979, %v1089
      %v1170 = vsub.f32 %v984, %v1090
      %v1171 = vsub.f32 %v989, %v1091
      %v1172 = vsub.f32 %v994, %v1092
      %v1173 = vadd.f32 %v1141, 1e-05
      %v1174 = vadd.f32 %v1142, 1e-05
      %v1175 = vadd.f32 %v1143, 1e-05
      %v1176 = vadd.f32 %v1144, 1e-05
      %v1177 = vadd.f32 %v1145, 1e-05
      %v1178 = vadd.f32 %v1146, 1e-05
      %v1179 = vadd.f32 %v1147, 1e-05
      %v1180 = vadd.f32 %v1148, 1e-05
      %v1181 = vadd.f32 %v1149, 1e-05
      %v1182 = vadd.f32 %v1150, 1e-05
      %v1183 = vadd.f32 %v1151, 1e-05
      %v1184 = vadd.f32 %v1152, 1e-05
      %v1185 = vadd.f32 %v1153, 1e-05
      %v1186 = vadd.f32 %v1154, 1e-05
      %v1187 = vadd.f32 %v1155, 1e-05
      %v1188 = vadd.f32 %v1156, 1e-05
      %v1189 = vrsqrt.pop %v1173
      %v1190 = vrsqrt.pop %v1174
      %v1191 = vrsqrt.pop %v1175
      %v1192 = vrsqrt.pop %v1176
      %v1193 = vrsqrt.pop %v1177
      %v1194 = vrsqrt.pop %v1178
      %v1195 = vrsqrt.pop %v1179
      %v1196 = vrsqrt.pop %v1180
      %v1197 = vrsqrt.pop %v1181
      %v1198 = vrsqrt.pop %v1182
      %v1199 = vrsqrt.pop %v1183
      %v1200 = vrsqrt.pop %v1184
      %v1201 = vrsqrt.pop %v1185
      %v1202 = vrsqrt.pop %v1186
      %v1203 = vrsqrt.pop %v1187
      %v1204 = vrsqrt.pop %v1188
      %v1205 = vmul.f32 %v1157, %v1189
      %v1206 = vmul.f32 %v1158, %v1190
      %v1207 = vmul.f32 %v1159, %v1191
      %v1208 = vmul.f32 %v1160, %v1192
      %v1209 = vmul.f32 %v1161, %v1193
      %v1210 = vmul.f32 %v1162, %v1194
      %v1211 = vmul.f32 %v1163, %v1195
      %v1212 = vmul.f32 %v1164, %v1196
      %v1213 = vmul.f32 %v1165, %v1197
      %v1214 = vmul.f32 %v1166, %v1198
      %v1215 = vmul.f32 %v1167, %v1199
      %v1216 = vmul.f32 %v1168, %v1200
      %v1217 = vmul.f32 %v1169, %v1201
      %v1218 = vmul.f32 %v1170, %v1202
      %v1219 = vmul.f32 %v1171, %v1203
      %v1220 = vmul.f32 %v1172, %v1204
      %v1221 = vld [vmem:[%s5] sm:$0x1]
      %v1223 = vlaneseq
      %v1224 = vshrl.u32 %v1223, 7
      %v1225 = vsub.s32 0, %v1224
      %v1226 = vrot.slane %v1221, %v1225
      %v1228 = vmul.f32 %v1205, %v1226
      %v1229 = vmul.f32 %v1206, %v1226
      %v1230 = vmul.f32 %v1207, %v1226
      %v1231 = vmul.f32 %v1208, %v1226
      %v1232 = vmul.f32 %v1209, %v1226
      %v1233 = vmul.f32 %v1210, %v1226
      %v1234 = vmul.f32 %v1211, %v1226
      %v1235 = vmul.f32 %v1212, %v1226
      %v1236 = vmul.f32 %v1213, %v1226
      %v1237 = vmul.f32 %v1214, %v1226
      %v1238 = vmul.f32 %v1215, %v1226
      %v1239 = vmul.f32 %v1216, %v1226
      %v1240 = vmul.f32 %v1217, %v1226
      %v1241 = vmul.f32 %v1218, %v1226
      %v1242 = vmul.f32 %v1219, %v1226
      %v1243 = vmul.f32 %v1220, %v1226
      %v1244 = vld [vmem:[%s6] sm:$0x1]
      %v1246 = vlaneseq
      %v1247 = vshrl.u32 %v1246, 7
      %v1248 = vsub.s32 0, %v1247
      %v1249 = vrot.slane %v1244, %v1248
      %v1251 = vadd.f32 %v1228, %v1249
      %v1252 = vadd.f32 %v1229, %v1249
      %v1253 = vadd.f32 %v1230, %v1249
      %v1254 = vadd.f32 %v1231, %v1249
      %v1255 = vadd.f32 %v1232, %v1249
      %v1256 = vadd.f32 %v1233, %v1249
      %v1257 = vadd.f32 %v1234, %v1249
      %v1258 = vadd.f32 %v1235, %v1249
      %v1259 = vadd.f32 %v1236, %v1249
      %v1260 = vadd.f32 %v1237, %v1249
      %v1261 = vadd.f32 %v1238, %v1249
      %v1262 = vadd.f32 %v1239, %v1249
      %v1263 = vadd.f32 %v1240, %v1249
      %v1264 = vadd.f32 %v1241, %v1249
      %v1265 = vadd.f32 %v1242, %v1249
      %v1266 = vadd.f32 %v1243, %v1249
      %v1267 = vmax.f32 %v1251, 0.0
      %v1268 = vmax.f32 %v1252, 0.0
      %v1269 = vmax.f32 %v1253, 0.0
      %v1270 = vmax.f32 %v1254, 0.0
      %v1271 = vmax.f32 %v1255, 0.0
      %v1272 = vmax.f32 %v1256, 0.0
      %v1273 = vmax.f32 %v1257, 0.0
      %v1274 = vmax.f32 %v1258, 0.0
      %v1275 = vmax.f32 %v1259, 0.0
      %v1276 = vmax.f32 %v1260, 0.0
      %v1277 = vmax.f32 %v1261, 0.0
      %v1278 = vmax.f32 %v1262, 0.0
      %v1279 = vmax.f32 %v1263, 0.0
      %v1280 = vmax.f32 %v1264, 0.0
      %v1281 = vmax.f32 %v1265, 0.0
      %v1282 = vmax.f32 %v1266, 0.0
      %v1283 = vld [vmem:[%s7] sm:$0xff]
      %v1284 = vld [vmem:[%s7 + $0x8] sm:$0xff]
      %v1285 = vld [vmem:[%s7 + $0x10] sm:$0xff]
      %v1286 = vld [vmem:[%s7 + $0x18] sm:$0xff]
      %v1287 = vld [vmem:[%s7 + $0x20] sm:$0xff]
      %v1288 = vld [vmem:[%s7 + $0x28] sm:$0xff]
      %v1289 = vld [vmem:[%s7 + $0x30] sm:$0xff]
      %v1290 = vld [vmem:[%s7 + $0x38] sm:$0xff]
      %v1291 = vld [vmem:[%s7 + $0x40] sm:$0xff]
      %v1292 = vld [vmem:[%s7 + $0x48] sm:$0xff]
      %v1293 = vld [vmem:[%s7 + $0x50] sm:$0xff]
      %v1294 = vld [vmem:[%s7 + $0x58] sm:$0xff]
      %v1295 = vld [vmem:[%s7 + $0x60] sm:$0xff]
      %v1296 = vld [vmem:[%s7 + $0x68] sm:$0xff]
      %v1297 = vld [vmem:[%s7 + $0x70] sm:$0xff]
      %v1298 = vld [vmem:[%s7 + $0x78] sm:$0xff]
      %v1299 = vld [vmem:[%s8] sm:$0x1]
      %v1301 = vlaneseq
      %v1302 = vshrl.u32 %v1301, 7
      %v1303 = vsub.s32 0, %v1302
      %v1304 = vrot.slane %v1299, %v1303
      %1306 = vmatprep.subr.mxu0 0.0
      %1307 = vmatpush1.msra.mxu0 %v1283
      %1308 = vmatprep.subr.mxu0 0.0
      %1309 = vmatpush1.msra.mxu0 %v1284
      %1310 = vmatprep.subr.mxu0 0.0
      %1311 = vmatpush1.msra.mxu0 %v1285
      %1312 = vmatprep.subr.mxu0 0.0
      %1313 = vmatpush1.msra.mxu0 %v1286
      %1314 = vmatprep.subr.mxu0 0.0
      %1315 = vmatpush1.msra.mxu0 %v1287
      %1316 = vmatprep.subr.mxu0 0.0
      %1317 = vmatpush1.msra.mxu0 %v1288
      %1318 = vmatprep.subr.mxu0 0.0
      %1319 = vmatpush1.msra.mxu0 %v1289
      %1320 = vmatprep.subr.mxu0 0.0
      %1321 = vmatpush1.msra.mxu0 %v1290
      %1322 = vmatprep.subr.mxu0 0.0
      %1323 = vmatpush1.msra.mxu0 %v1291
      %1324 = vmatprep.subr.mxu0 0.0
      %1325 = vmatpush1.msra.mxu0 %v1292
      %1326 = vmatprep.subr.mxu0 0.0
      %1327 = vmatpush1.msra.mxu0 %v1293
      %1328 = vmatprep.subr.mxu0 0.0
      %1329 = vmatpush1.msra.mxu0 %v1294
      %1330 = vmatprep.subr.mxu0 0.0
      %1331 = vmatpush1.msra.mxu0 %v1295
      %1332 = vmatprep.subr.mxu0 0.0
      %1333 = vmatpush1.msra.mxu0 %v1296
      %1334 = vmatprep.subr.mxu0 0.0
      %1335 = vmatpush1.msra.mxu0 %v1297
      %1336 = vmatprep.subr.mxu0 0.0
      %1337 = vmatpush1.msra.mxu0 %v1298
      %1338 = vmatprep.subr.mxu0 0.0
      %1339 = vmatpush1.msra.mxu0 0.0
      %1340 = vmatprep.subr.mxu0 0.0
      %1341 = vmatpush1.msra.mxu0 0.0
      %1342 = vmatprep.subr.mxu0 0.0
      %1343 = vmatpush1.msra.mxu0 0.0
      %1344 = vmatprep.subr.mxu0 0.0
      %1345 = vmatpush1.msra.mxu0 0.0
      %1346 = vmatprep.subr.mxu0 0.0
      %1347 = vmatpush1.msra.mxu0 0.0
      %1348 = vmatprep.subr.mxu0 0.0
      %1349 = vmatpush1.msra.mxu0 0.0
      %1350 = vmatprep.subr.mxu0 0.0
      %1351 = vmatpush1.msra.mxu0 0.0
      %1352 = vmatprep.subr.mxu0 0.0
      %1353 = vmatpush1.msra.mxu0 0.0
      %1354 = vmatprep.subr.mxu0 0.0
      %1355 = vmatpush1.msra.mxu0 0.0
      %1356 = vmatprep.subr.mxu0 0.0
      %1357 = vmatpush1.msra.mxu0 0.0
      %1358 = vmatprep.subr.mxu0 0.0
      %1359 = vmatpush1.msra.mxu0 0.0
      %1360 = vmatprep.subr.mxu0 0.0
      %1361 = vmatpush1.msra.mxu0 0.0
      %1362 = vmatprep.subr.mxu0 0.0
      %1363 = vmatpush1.msra.mxu0 0.0
      %1364 = vmatprep.subr.mxu0 0.0
      %1365 = vmatpush1.msra.mxu0 0.0
      %1366 = vmatprep.subr.mxu0 0.0
      %1367 = vmatpush1.msra.mxu0 0.0
      %1368 = vmatprep.subr.mxu0 0.0
      %1369 = vmatpush1.msra.mxu0 0.0
      %1370 = vmatprep.mubr.f32.mxu0 0.0
      %1371 = vmatmul.mubr.f32.gmra.mrb[0].mxu0 %v1267
      %v1372 = vpop.f32.mrb[0].mxu0
      %v1373 = vadd.f32 %v1304, %v1372
      %v1374 = vpop.f32.mrb[0].mxu0
      %1375 = vmatprep.mubr.f32.mxu0 0.0
      %1376 = vmatmul.mubr.f32.gmra.mrb[0].mxu0 %v1268
      %v1377 = vpop.f32.mrb[0].mxu0
      %v1378 = vadd.f32 %v1304, %v1377
      %v1379 = vpop.f32.mrb[0].mxu0
      %1380 = vmatprep.mubr.f32.mxu0 0.0
      %1381 = vmatmul.mubr.f32.gmra.mrb[0].mxu0 %v1269
      %v1382 = vpop.f32.mrb[0].mxu0
      %v1383 = vadd.f32 %v1304, %v1382
      %v1384 = vpop.f32.mrb[0].mxu0
      %1385 = vmatprep.mubr.f32.mxu0 0.0
      %1386 = vmatmul.mubr.f32.gmra.mrb[0].mxu0 %v1270
      %v1387 = vpop.f32.mrb[0].mxu0
      %v1388 = vadd.f32 %v1304, %v1387
      %v1389 = vpop.f32.mrb[0].mxu0
      %1390 = vmatprep.mubr.f32.mxu0 0.0
      %1391 = vmatmul.mubr.f32.gmra.mrb[0].mxu0 %v1271
      %v1392 = vpop.f32.mrb[0].mxu0
      %v1393 = vadd.f32 %v1304, %v1392
      %v1394 = vpop.f32.mrb[0].mxu0
      %1395 = vmatprep.mubr.f32.mxu0 0.0
      %1396 = vmatmul.mubr.f32.gmra.mrb[0].mxu0 %v1272
      %v1397 = vpop.f32.mrb[0].mxu0
      %v1398 = vadd.f32 %v1304, %v1397
      %v1399 = vpop.f32.mrb[0].mxu0
      %1400 = vmatprep.mubr.f32.mxu0 0.0
      %1401 = vmatmul.mubr.f32.gmra.mrb[0].mxu0 %v1273
      %v1402 = vpop.f32.mrb[0].mxu0
      %v1403 = vadd.f32 %v1304, %v1402
      %v1404 = vpop.f32.mrb[0].mxu0
      %1405 = vmatprep.mubr.f32.mxu0 0.0
      %1406 = vmatmul.mubr.f32.gmra.mrb[0].mxu0 %v1274
      %v1407 = vpop.f32.mrb[0].mxu0
      %v1408 = vadd.f32 %v1304, %v1407
      %v1409 = vpop.f32.mrb[0].mxu0
      %1410 = vmatprep.mubr.f32.mxu0 0.0
      %1411 = vmatmul.mubr.f32.gmra.mrb[0].mxu0 %v1275
      %v1412 = vpop.f32.mrb[0].mxu0
      %v1413 = vadd.f32 %v1304, %v1412
      %v1414 = vpop.f32.mrb[0].mxu0
      %1415 = vmatprep.mubr.f32.mxu0 0.0
      %1416 = vmatmul.mubr.f32.gmra.mrb[0].mxu0 %v1276
      %v1417 = vpop.f32.mrb[0].mxu0
      %v1418 = vadd.f32 %v1304, %v1417
      %v1419 = vpop.f32.mrb[0].mxu0
      %1420 = vmatprep.mubr.f32.mxu0 0.0
      %1421 = vmatmul.mubr.f32.gmra.mrb[0].mxu0 %v1277
      %v1422 = vpop.f32.mrb[0].mxu0
      %v1423 = vadd.f32 %v1304, %v1422
      %v1424 = vpop.f32.mrb[0].mxu0
      %1425 = vmatprep.mubr.f32.mxu0 0.0
      %1426 = vmatmul.mubr.f32.gmra.mrb[0].mxu0 %v1278
      %v1427 = vpop.f32.mrb[0].mxu0
      %v1428 = vadd.f32 %v1304, %v1427
      %v1429 = vpop.f32.mrb[0].mxu0
      %1430 = vmatprep.mubr.f32.mxu0 0.0
      %1431 = vmatmul.mubr.f32.gmra.mrb[0].mxu0 %v1279
      %v1432 = vpop.f32.mrb[0].mxu0
      %v1433 = vadd.f32 %v1304, %v1432
      %v1434 = vpop.f32.mrb[0].mxu0
      %1435 = vmatprep.mubr.f32.mxu0 0.0
      %1436 = vmatmul.mubr.f32.gmra.mrb[0].mxu0 %v1280
      %v1437 = vpop.f32.mrb[0].mxu0
      %v1438 = vadd.f32 %v1304, %v1437
      %v1439 = vpop.f32.mrb[0].mxu0
      %1440 = vmatprep.mubr.f32.mxu0 0.0
      %1441 = vmatmul.mubr.f32.gmra.mrb[0].mxu0 %v1281
      %v1442 = vpop.f32.mrb[0].mxu0
      %v1443 = vadd.f32 %v1304, %v1442
      %v1444 = vpop.f32.mrb[0].mxu0
      %1445 = vmatprep.mubr.f32.mxu0 0.0
      %1446 = vmatmul.mubr.f32.gmra.mrb[0].mxu0 %v1282
      %v1447 = vpop.f32.mrb[0].mxu0
      %v1448 = vadd.f32 %v1304, %v1447
      %v1449 = vpop.f32.mrb[0].mxu0
      %1450 = vdwg.mxu0
      %v1451 = vmax.f32 %v1373, 0.0
      %v1452 = vmax.f32 %v1378, 0.0
      %v1453 = vmax.f32 %v1383, 0.0
      %v1454 = vmax.f32 %v1388, 0.0
      %v1455 = vmax.f32 %v1393, 0.0
      %v1456 = vmax.f32 %v1398, 0.0
      %v1457 = vmax.f32 %v1403, 0.0
      %v1458 = vmax.f32 %v1408, 0.0
      %v1459 = vmax.f32 %v1413, 0.0
      %v1460 = vmax.f32 %v1418, 0.0
      %v1461 = vmax.f32 %v1423, 0.0
      %v1462 = vmax.f32 %v1428, 0.0
      %v1463 = vmax.f32 %v1433, 0.0
      %v1464 = vmax.f32 %v1438, 0.0
      %v1465 = vmax.f32 %v1443, 0.0
      %v1466 = vmax.f32 %v1448, 0.0
      %1467 = vst [vmem:[%s334] sm:$0xff] %v1451
      %1468 = vst [vmem:[%s334 + $0x8] sm:$0xff] %v1452
      %1469 = vst [vmem:[%s334 + $0x10] sm:$0xff] %v1453
      %1470 = vst [vmem:[%s334 + $0x18] sm:$0xff] %v1454
      %1471 = vst [vmem:[%s334 + $0x20] sm:$0xff] %v1455
      %1472 = vst [vmem:[%s334 + $0x28] sm:$0xff] %v1456
      %1473 = vst [vmem:[%s334 + $0x30] sm:$0xff] %v1457
      %1474 = vst [vmem:[%s334 + $0x38] sm:$0xff] %v1458
      %1475 = vst [vmem:[%s334 + $0x40] sm:$0xff] %v1459
      %1476 = vst [vmem:[%s334 + $0x48] sm:$0xff] %v1460
      %1477 = vst [vmem:[%s334 + $0x50] sm:$0xff] %v1461
      %1478 = vst [vmem:[%s334 + $0x58] sm:$0xff] %v1462
      %1479 = vst [vmem:[%s334 + $0x60] sm:$0xff] %v1463
      %1480 = vst [vmem:[%s334 + $0x68] sm:$0xff] %v1464
      %1481 = vst [vmem:[%s334 + $0x70] sm:$0xff] %v1465
      %1482 = vst [vmem:[%s334 + $0x78] sm:$0xff] %v1466
      %s1483 = smul.u32 16, %s20
      %p1484 = scmp.lt.s32.totalorder %s1483, 31
      %s1485 = scalar_select %p1484, %s1483, 31
      %s1486 = smul.addr %s1485, 8
      %s1487 = scalar_lea.vmem %s9, %s1486
      // Predicated region
      $region57: #{fwd.1} parent=55 // pred_check
        %p1488 = pneg %p232
      $region58: #{fwd.1} parent=55 // pred_check_branch
        %1490 = sbr.rel (%p1488) target = $region60
      $region59: #{fwd.1} parent=55 // pred_region
        %s1491 = smul.u32 16, %s20
      $region60: #{fwd.1} parent=55 // pred_fallthru
        _
    $region56: #{fwd.1} parent=5 // pred_fallthru
      _
    %p1492 = scmp.le.s32.totalorder 2, %s15
    // Predicated region
    $region61: #{fwd.1} parent=5 // pred_check
      %p1493 = pneg %p1492
    $region62: #{fwd.1} parent=5 // pred_check_branch
      %1495 = sbr.rel (%p1493) target = $region64
    $region63: #{fwd.1} parent=5 // pred_region
      %s1496 = ssub.s32 %s15, 2
      // Predicated region
      $region65: #{fwd.1} parent=63 // pred_check
        %p1497 = pneg %p238
      $region66: #{fwd.1} parent=63 // pred_check_branch
        %1499 = sbr.rel (%p1497) target = $region68
      $region67: #{fwd.1} parent=63 // pred_region
        %s1500 = smul.u32 16, %s21
        %p1501 = scmp.lt.s32.totalorder %s1500, 31
        %s1502 = scalar_select %p1501, %s1500, 31
        %s1503 = smul.addr %s1502, 8
        %s1504 = scalar_lea.vmem %s9, %s1503
      $region68: #{fwd.1} parent=63 // pred_fallthru
        _
    $region64: #{fwd.1} parent=5 // pred_fallthru
      _
  $region6: #{fwd.1} parent=0 // loop_footer
    %s19 = sadd.s32 1, %s15
  $region7: #{fwd.1} parent=0 // loop_footer_branch
    %14 = sbr.rel target = $region3
  $region8: #{fwd.1} parent=0 // loop_exit
    _

</llo_original>
